<compile_context>
chip_gen: v7x
topology: tpu7x:2x2x1
jax: 0.10.0
libtpu: 0.0.40
codegen_flags: <defaults>
</compile_context>

<pallas_src>
import numpy as np
import jax
import jax.numpy as jnp
from jax.experimental import pallas as pl
from jax.experimental.pallas import tpu as pltpu

_EPS_GN = 1e-5
_EPS_BN = 1e-5


# --------------------------------------------------------------------------
# Fused kernel (one grid step == one batch sample)
# --------------------------------------------------------------------------
def _make_kernel(C, H, W, D, n_blocks):
    HW = H * W
    PAD = W + 1  # flat zero padding on each side of the flattened image

    def kernel(x_ref, dww_ref, bn1a_ref, bn1b_ref, pw1w_ref, pw1b_ref,
               segS_ref, segB_ref,
               gn1g_ref, gn1b_ref, qkvw_ref, qkvb_ref, ow_ref, ob_ref,
               gn2g_ref, gn2b_ref, f1w_ref, f1b_ref, f2w_ref, f2b_ref,
               gnfg_ref, gnfb_ref, projw_ref, projb_ref, bn2a_ref, bn2b_ref,
               o_ref):
        f32 = jnp.float32
        bf16 = jnp.bfloat16

        # W-boundary masks for the depthwise 3x3 (H boundary falls into the
        # explicit flat zero padding).
        pos = jax.lax.broadcasted_iota(jnp.int32, (1, HW), 1)
        w_idx = pos % W
        left_ok = (w_idx >= 1).astype(f32)
        right_ok = (w_idx < W - 1).astype(f32)

        # ---- local_rep: depthwise 3x3 (+folded BN1) + SiLU -----------------
        xs = x_ref[0]                                   # (C, HW + 2*PAD)
        dww = dww_ref[...]                              # (C, 9)
        acc = jnp.zeros((C, HW), f32)
        for kh in range(3):
            base = PAD + (kh - 1) * W
            row = xs[:, base - 1:base + HW + 1]          # one load per kh row
            acc = acc + (row[:, 0:HW] * left_ok) * dww[:, kh * 3 + 0:kh * 3 + 1]
            acc = acc + row[:, 1:HW + 1] * dww[:, kh * 3 + 1:kh * 3 + 2]
            acc = acc + (row[:, 2:HW + 2] * right_ok) * dww[:, kh * 3 + 2:kh * 3 + 3]
        y = acc * bn1a_ref[...] + bn1b_ref[...]
        y = y * jax.nn.sigmoid(y)                        # SiLU in f32

        # ---- 1x1 conv C -> D (bf16 MXU, f32 accumulate) --------------------
        x = jnp.dot(pw1w_ref[...], y.astype(bf16),
                    preferred_element_type=f32) + pw1b_ref[...]

        def group_norm(t, gamma, beta):
            # one-pass GroupNorm(1): var = E[x^2] - mu^2
            mu = jnp.mean(t)
            ms = jnp.mean(t * t)
            inv = jax.lax.rsqrt(ms - mu * mu + _EPS_GN)
            return (t - mu) * inv * gamma + beta

        # ---- global_rep: n_blocks x LinearAttnFFN (per-block ref reads) ----
        for blk in range(n_blocks):
            segS = segS_ref[...]                         # (HW, Pp) 0/1
            segB = segB_ref[...]                         # (Pp, HW) 0/1

            # pre_norm_attn: GroupNorm + linear self-attention
            xn = group_norm(x, gn1g_ref[blk], gn1b_ref[blk])
            xb = xn.astype(bf16)
            qkv = jnp.dot(qkvw_ref[blk], xb,
                          preferred_element_type=f32) + qkvb_ref[blk]
            q8 = qkv[0:8]                                # 8 replicated q rows
            k = qkv[8:8 + D]                             # (D, HW)
            v = qkv[8 + D:8 + 2 * D]                     # (D, HW)

            # softmax over the N patches within each intra-patch slot p
            # (global max shift cancels per segment)
            e8 = jnp.exp(q8 - jnp.max(q8))
            den_seg = jnp.dot(e8, segS, preferred_element_type=f32)    # (8, Pp)
            den8 = jnp.dot(den_seg, segB, preferred_element_type=f32)  # (8, HW)
            scores = (e8 * pl.reciprocal(den8, approx=True))[0:1]      # (1, HW)

            ks = k * scores
            ctx_seg = jnp.dot(ks, segS, preferred_element_type=f32)    # (D, Pp)
            ctx = jnp.dot(ctx_seg, segB, preferred_element_type=f32)   # (D, HW)
            attn = jnp.maximum(v, 0.0) * ctx
            attn = jnp.dot(ow_ref[blk], attn.astype(bf16),
                           preferred_element_type=f32) + ob_ref[blk]
            x = x + attn

            # pre_norm_ffn: GroupNorm + 1x1 (D->F) + SiLU + 1x1 (F->D)
            xn2 = group_norm(x, gn2g_ref[blk], gn2b_ref[blk])
            h = jnp.dot(f1w_ref[blk], xn2.astype(bf16),
                        preferred_element_type=f32) + f1b_ref[blk]
            h = h * jax.nn.sigmoid(h)
            h = jnp.dot(f2w_ref[blk], h.astype(bf16),
                        preferred_element_type=f32) + f2b_ref[blk]
            x = x + h

        # ---- final GroupNorm + conv_proj 1x1 (D->C) + folded BN2 -----------
        xf = group_norm(x, gnfg_ref[...], gnfb_ref[...])
        yo = jnp.dot(projw_ref[...], xf.astype(bf16),
                     preferred_element_type=f32) + projb_ref[...]
        o_ref[0] = yo * bn2a_ref[...] + bn2b_ref[...]

    return kernel


# --------------------------------------------------------------------------
# Wrapper: layout plumbing + BN folding + single gridded pallas_call
# --------------------------------------------------------------------------
def mobilevit_block_v2(x_nchw, params, patch_h, patch_w):
    B, C, H, W = x_nchw.shape
    D = params["pw1_w"].shape[0]
    blocks = params["blocks"]
    n_blocks = len(blocks)
    Fdim = blocks[0]["f1_w"].shape[0]

    # resize_input: inputs here are patch aligned so bilinear resize is a no-op.
    # TODO(synk): bilinear F.interpolate path for non patch-aligned H/W not implemented.
    assert H % patch_h == 0 and W % patch_w == 0

    HW = H * W
    PAD = W + 1
    HWP = HW + 2 * PAD
    P = patch_h * patch_w
    Pp = max(8, ((P + 7) // 8) * 8)      # pad intra-patch slots to 8 (zeros inert)
    f32 = jnp.float32
    bf16 = jnp.bfloat16

    # channels on sublanes, flattened (h,w) on lanes, zero-padded by W+1 on
    # both ends so every depthwise tap is a static lane slice.
    x_flat = x_nchw.astype(f32).reshape(B, C, HW)
    x_pad = jnp.pad(x_flat, ((0, 0), (0, 0), (PAD, PAD)))

    # Skinny segment matrices built directly in (h,w) order (no dense unfold):
    # segS sums over the N patches per intra-patch slot p, segB broadcasts back.
    hh = np.arange(H)[:, None]
    ww = np.arange(W)[None, :]
    p_of = ((hh % patch_h) * patch_w + (ww % patch_w)).reshape(-1)
    segS_np = np.zeros((HW, Pp), np.float32)
    segS_np[np.arange(HW), p_of] = 1.0
    segS = jnp.asarray(segS_np)
    segB = jnp.asarray(segS_np.T.copy())

    # fold BatchNorms (eval mode: running stats) into per-channel scale/shift
    a1 = params["bn1_g"] / jnp.sqrt(params["bn1_rv"] + _EPS_BN)
    s1 = a1 * (params["dw_b"] - params["bn1_rm"]) + params["bn1_b"]
    a2 = params["bn2_g"] / jnp.sqrt(params["bn2_rv"] + _EPS_BN)
    s2 = params["bn2_b"] - a2 * params["bn2_rm"]

    # Fused qkv with q replicated into 8 sublane-aligned rows.
    def fuse_w(p):
        q8 = jnp.tile(p["qkv_w"][0:1], (8, 1))
        return jnp.concatenate(
            [q8, p["qkv_w"][1:1 + D], p["qkv_w"][1 + D:1 + 2 * D]], axis=0)

    def fuse_b(p):
        q8 = jnp.tile(p["qkv_b"][0:1], (8,))
        return jnp.concatenate(
            [q8, p["qkv_b"][1:1 + D], p["qkv_b"][1 + D:1 + 2 * D]]).reshape(-1, 1)

    stk = lambda fn, dt=f32: jnp.stack([fn(p) for p in blocks]).astype(dt)
    gn1g = stk(lambda p: p["gn1_g"].reshape(D, 1))
    gn1b = stk(lambda p: p["gn1_b"].reshape(D, 1))
    qkvw = stk(fuse_w, bf16)
    qkvb = stk(fuse_b)
    ow = stk(lambda p: p["out_w"], bf16)
    ob = stk(lambda p: p["out_b"].reshape(D, 1))
    gn2g = stk(lambda p: p["gn2_g"].reshape(D, 1))
    gn2b = stk(lambda p: p["gn2_b"].reshape(D, 1))
    f1w = stk(lambda p: p["f1_w"], bf16)
    f1b = stk(lambda p: p["f1_b"].reshape(-1, 1))
    f2w = stk(lambda p: p["f2_w"], bf16)
    f2b = stk(lambda p: p["f2_b"].reshape(D, 1))

    weights = [
        params["dw_w"].reshape(C, 9).astype(f32),
        a1.reshape(C, 1).astype(f32), s1.reshape(C, 1).astype(f32),
        params["pw1_w"].astype(bf16), params["pw1_b"].reshape(D, 1).astype(f32),
        segS, segB,
        gn1g, gn1b, qkvw, qkvb, ow, ob, gn2g, gn2b, f1w, f1b, f2w, f2b,
        params["gnf_g"].reshape(D, 1).astype(f32),
        params["gnf_b"].reshape(D, 1).astype(f32),
        params["proj_w"].astype(bf16), params["proj_b"].reshape(C, 1).astype(f32),
        a2.reshape(C, 1).astype(f32), s2.reshape(C, 1).astype(f32),
    ]

    def const_spec(arr):
        nd = arr.ndim
        return pl.BlockSpec(arr.shape, lambda b, _n=nd: (0,) * _n)

    in_specs = [pl.BlockSpec((1, C, HWP), lambda b: (b, 0, 0))]
    in_specs += [const_spec(w) for w in weights]
    out_specs = pl.BlockSpec((1, C, HW), lambda b: (b, 0, 0))

    # advisory cost estimate
    matmul_flops = 2 * HW * (D * C + C * D +
                             n_blocks * ((8 + 2 * D) * D + D * D + 2 * D * Fdim))
    seg_flops = 2 * HW * Pp * (8 + D) * 2 * n_blocks
    dw_flops = 2 * 9 * C * HW
    flops = B * (matmul_flops + seg_flops + dw_flops)
    transcendentals = B * HW * (C + n_blocks * (8 + 8 + Fdim) + 1)
    bytes_accessed = (x_pad.size * 4 + B * C * HW * 4 +
                      sum(int(np.prod(w.shape)) * int(np.dtype(w.dtype).itemsize)
                          for w in weights))

    kernel = _make_kernel(C, H, W, D, n_blocks)
    out_flat = pl.pallas_call(
        kernel,
        grid=(B,),
        in_specs=in_specs,
        out_specs=out_specs,
        out_shape=jax.ShapeDtypeStruct((B, C, HW), f32),
        compiler_params=pltpu.CompilerParams(
            dimension_semantics=("parallel",),
            vmem_limit_bytes=32 * 1024 * 1024),
        cost_estimate=pl.CostEstimate(flops=int(flops),
                                      transcendentals=int(transcendentals),
                                      bytes_accessed=int(bytes_accessed)),
    )(x_pad, *weights)

    # activations stayed in (h,w) order: plain reshape, no fold transpose
    return out_flat.reshape(B, C, H, W)


# --------------------------------------------------------------------------
# Deterministic parameter construction + demo run
# --------------------------------------------------------------------------
if __name__ == "__main__":
    B, C, H, W = 2, 4, 16, 16          # input NCHW
    D = 16                             # attn_unit_dim
    ffn_multiplier = 2
    n_attn_blocks = 2
    patch_h = patch_w = 2
    ffn_dim = int((ffn_multiplier * D) // 16 * 16)   # == 32

    key = jax.random.PRNGKey(0)
    keys = iter(jax.random.split(key, 128))

    def rnd(shape, scale=0.2):
        return jax.random.normal(next(keys), shape, dtype=jnp.float32) * scale

    x = jax.random.normal(next(keys), (B, C, H, W), dtype=jnp.float32)

    params = {
        "dw_w": rnd((C, 3, 3)),          # depthwise 3x3 taps (C, kh, kw)
        "dw_b": rnd((C,), 0.1),
        "bn1_g": 1.0 + rnd((C,), 0.05),
        "bn1_b": rnd((C,), 0.05),
        "bn1_rm": jnp.zeros((C,), jnp.float32),
        "bn1_rv": jnp.ones((C,), jnp.float32),
        "pw1_w": rnd((D, C)),            # 1x1 conv C->D, (out, in)
        "pw1_b": rnd((D,), 0.1),
        "blocks": [],
        "gnf_g": 1.0 + rnd((D,), 0.05),
        "gnf_b": rnd((D,), 0.05),
        "proj_w": rnd((C, D)),           # 1x1 conv D->C, (out, in)
        "proj_b": rnd((C,), 0.1),
        "bn2_g": 1.0 + rnd((C,), 0.05),
        "bn2_b": rnd((C,), 0.05),
        "bn2_rm": jnp.zeros((C,), jnp.float32),
        "bn2_rv": jnp.ones((C,), jnp.float32),
    }
    for _ in range(n_attn_blocks):
        params["blocks"].append({
            "gn1_g": 1.0 + rnd((D,), 0.05), "gn1_b": rnd((D,), 0.05),
            "qkv_w": rnd((1 + 2 * D, D)), "qkv_b": rnd((1 + 2 * D,), 0.1),
            "out_w": rnd((D, D)), "out_b": rnd((D,), 0.1),
            "gn2_g": 1.0 + rnd((D,), 0.05), "gn2_b": rnd((D,), 0.05),
            "f1_w": rnd((ffn_dim, D)), "f1_b": rnd((ffn_dim,), 0.1),
            "f2_w": rnd((D, ffn_dim)), "f2_b": rnd((D,), 0.1),
        })

    fwd = jax.jit(mobilevit_block_v2, static_argnums=(2, 3))
    out = jax.block_until_ready(fwd(x, params, patch_h, patch_w))
    assert out.shape == (B, C, H, W), out.shape
    assert bool(jnp.all(jnp.isfinite(out)))
    print("KERNEL_OK")
</pallas_src>

<mosaic_0001>
module attributes {stable_mosaic.version = 11 : i64} {
  func.func @kernel(%arg0: i32, %arg1: memref<1x4x290xf32, #tpu.memory_space<vmem>>, %arg2: memref<4x9xf32, #tpu.memory_space<vmem>>, %arg3: memref<4x1xf32, #tpu.memory_space<vmem>>, %arg4: memref<4x1xf32, #tpu.memory_space<vmem>>, %arg5: memref<16x4xbf16, #tpu.memory_space<vmem>>, %arg6: memref<16x1xf32, #tpu.memory_space<vmem>>, %arg7: memref<256x8xf32, #tpu.memory_space<vmem>>, %arg8: memref<8x256xf32, #tpu.memory_space<vmem>>, %arg9: memref<2x16x1xf32, #tpu.memory_space<vmem>>, %arg10: memref<2x16x1xf32, #tpu.memory_space<vmem>>, %arg11: memref<2x40x16xbf16, #tpu.memory_space<vmem>>, %arg12: memref<2x40x1xf32, #tpu.memory_space<vmem>>, %arg13: memref<2x16x16xbf16, #tpu.memory_space<vmem>>, %arg14: memref<2x16x1xf32, #tpu.memory_space<vmem>>, %arg15: memref<2x16x1xf32, #tpu.memory_space<vmem>>, %arg16: memref<2x16x1xf32, #tpu.memory_space<vmem>>, %arg17: memref<2x32x16xbf16, #tpu.memory_space<vmem>>, %arg18: memref<2x32x1xf32, #tpu.memory_space<vmem>>, %arg19: memref<2x16x32xbf16, #tpu.memory_space<vmem>>, %arg20: memref<2x16x1xf32, #tpu.memory_space<vmem>>, %arg21: memref<16x1xf32, #tpu.memory_space<vmem>>, %arg22: memref<16x1xf32, #tpu.memory_space<vmem>>, %arg23: memref<4x16xbf16, #tpu.memory_space<vmem>>, %arg24: memref<4x1xf32, #tpu.memory_space<vmem>>, %arg25: memref<4x1xf32, #tpu.memory_space<vmem>>, %arg26: memref<4x1xf32, #tpu.memory_space<vmem>>, %arg27: memref<1x4x256xf32, #tpu.memory_space<vmem>>) attributes {dimension_semantics = [#tpu.dimension_semantics<parallel>], iteration_bounds = array<i64: 2>, scalar_prefetch = 0 : i64, scratch_operands = 0 : i64, tpu.core_type = #tpu.core_type<tc>, window_params = [{transform_indices = @transform_0, window_bounds = array<i64: 1, 4, 290>}, {pipeline_mode = #tpu.pipeline_mode<synchronous>, transform_indices = @transform_1, window_bounds = array<i64: 4, 9>}, {pipeline_mode = #tpu.pipeline_mode<synchronous>, transform_indices = @transform_2, window_bounds = array<i64: 4, 1>}, {pipeline_mode = #tpu.pipeline_mode<synchronous>, transform_indices = @transform_3, window_bounds = array<i64: 4, 1>}, {pipeline_mode = #tpu.pipeline_mode<synchronous>, transform_indices = @transform_4, window_bounds = array<i64: 16, 4>}, {pipeline_mode = #tpu.pipeline_mode<synchronous>, transform_indices = @transform_5, window_bounds = array<i64: 16, 1>}, {pipeline_mode = #tpu.pipeline_mode<synchronous>, transform_indices = @transform_6, window_bounds = array<i64: 256, 8>}, {pipeline_mode = #tpu.pipeline_mode<synchronous>, transform_indices = @transform_7, window_bounds = array<i64: 8, 256>}, {pipeline_mode = #tpu.pipeline_mode<synchronous>, transform_indices = @transform_8, window_bounds = array<i64: 2, 16, 1>}, {pipeline_mode = #tpu.pipeline_mode<synchronous>, transform_indices = @transform_9, window_bounds = array<i64: 2, 16, 1>}, {pipeline_mode = #tpu.pipeline_mode<synchronous>, transform_indices = @transform_10, window_bounds = array<i64: 2, 40, 16>}, {pipeline_mode = #tpu.pipeline_mode<synchronous>, transform_indices = @transform_11, window_bounds = array<i64: 2, 40, 1>}, {pipeline_mode = #tpu.pipeline_mode<synchronous>, transform_indices = @transform_12, window_bounds = array<i64: 2, 16, 16>}, {pipeline_mode = #tpu.pipeline_mode<synchronous>, transform_indices = @transform_13, window_bounds = array<i64: 2, 16, 1>}, {pipeline_mode = #tpu.pipeline_mode<synchronous>, transform_indices = @transform_14, window_bounds = array<i64: 2, 16, 1>}, {pipeline_mode = #tpu.pipeline_mode<synchronous>, transform_indices = @transform_15, window_bounds = array<i64: 2, 16, 1>}, {pipeline_mode = #tpu.pipeline_mode<synchronous>, transform_indices = @transform_16, window_bounds = array<i64: 2, 32, 16>}, {pipeline_mode = #tpu.pipeline_mode<synchronous>, transform_indices = @transform_17, window_bounds = array<i64: 2, 32, 1>}, {pipeline_mode = #tpu.pipeline_mode<synchronous>, transform_indices = @transform_18, window_bounds = array<i64: 2, 16, 32>}, {pipeline_mode = #tpu.pipeline_mode<synchronous>, transform_indices = @transform_19, window_bounds = array<i64: 2, 16, 1>}, {pipeline_mode = #tpu.pipeline_mode<synchronous>, transform_indices = @transform_20, window_bounds = array<i64: 16, 1>}, {pipeline_mode = #tpu.pipeline_mode<synchronous>, transform_indices = @transform_21, window_bounds = array<i64: 16, 1>}, {pipeline_mode = #tpu.pipeline_mode<synchronous>, transform_indices = @transform_22, window_bounds = array<i64: 4, 16>}, {pipeline_mode = #tpu.pipeline_mode<synchronous>, transform_indices = @transform_23, window_bounds = array<i64: 4, 1>}, {pipeline_mode = #tpu.pipeline_mode<synchronous>, transform_indices = @transform_24, window_bounds = array<i64: 4, 1>}, {pipeline_mode = #tpu.pipeline_mode<synchronous>, transform_indices = @transform_25, window_bounds = array<i64: 4, 1>}, {transform_indices = @transform_26, window_bounds = array<i64: 1, 4, 256>}]} {
    %0 = tpu.iota {dimensions = array<i32: 1>} : vector<1x256xi32>
    %c16_i32 = arith.constant 16 : i32
    %c0_i32 = arith.constant 0 : i32
    %1 = arith.cmpi eq, %c16_i32, %c0_i32 : i32
    %c1_i32 = arith.constant 1 : i32
    %2 = arith.select %1, %c1_i32, %c16_i32 : i32
    %3 = vector.broadcast %2 : i32 to vector<1x256xi32>
    %4 = arith.remsi %0, %3 : vector<1x256xi32>
    %c0_i32_0 = arith.constant 0 : i32
    %5 = vector.broadcast %c0_i32_0 : i32 to vector<1x256xi32>
    %6 = arith.cmpi ne, %4, %5 : vector<1x256xi32>
    %c0_i32_1 = arith.constant 0 : i32
    %7 = vector.broadcast %c0_i32_1 : i32 to vector<1x256xi32>
    %8 = arith.cmpi slt, %4, %7 : vector<1x256xi32>
    %c0_i32_2 = arith.constant 0 : i32
    %9 = arith.cmpi slt, %2, %c0_i32_2 : i32
    %10 = vector.broadcast %9 : i1 to vector<1x256xi1>
    %11 = vector.broadcast %10 : vector<1x256xi1> to vector<1x256xi1>
    %12 = arith.xori %8, %11 : vector<1x256xi1>
    %13 = arith.andi %12, %6 : vector<1x256xi1>
    %14 = vector.broadcast %2 : i32 to vector<1x256xi32>
    %15 = arith.addi %4, %14 : vector<1x256xi32>
    %16 = arith.select %13, %15, %4 : vector<1x256xi1>, vector<1x256xi32>
    %c1_i32_3 = arith.constant 1 : i32
    %17 = vector.broadcast %c1_i32_3 : i32 to vector<1x256xi32>
    %18 = arith.cmpi sge, %16, %17 : vector<1x256xi32>
    %19 = arith.extui %18 : vector<1x256xi1> to vector<1x256xi32>
    %20 = arith.sitofp %19 : vector<1x256xi32> to vector<1x256xf32>
    %c15_i32 = arith.constant 15 : i32
    %21 = vector.broadcast %c15_i32 : i32 to vector<1x256xi32>
    %22 = arith.cmpi slt, %16, %21 : vector<1x256xi32>
    %23 = arith.extui %22 : vector<1x256xi1> to vector<1x256xi32>
    %24 = arith.sitofp %23 : vector<1x256xi32> to vector<1x256xf32>
    %c0 = arith.constant 0 : index
    %c0_4 = arith.constant 0 : index
    %c0_5 = arith.constant 0 : index
    %25 = vector.load %arg1[%c0, %c0_4, %c0_5] : memref<1x4x290xf32, #tpu.memory_space<vmem>>, vector<1x4x290xf32>
    %26 = vector.shape_cast %25 : vector<1x4x290xf32> to vector<4x290xf32>
    %c0_6 = arith.constant 0 : index
    %c0_7 = arith.constant 0 : index
    %27 = vector.load %arg2[%c0_6, %c0_7] : memref<4x9xf32, #tpu.memory_space<vmem>>, vector<4x9xf32>
    %cst = arith.constant 0.000000e+00 : f32
    %28 = vector.broadcast %cst : f32 to vector<4x256xf32>
    %29 = vector.extract_strided_slice %26 {offsets = [0, 0], sizes = [4, 258], strides = [1, 1]} : vector<4x290xf32> to vector<4x258xf32>
    %30 = vector.extract_strided_slice %29 {offsets = [0, 0], sizes = [4, 256], strides = [1, 1]} : vector<4x258xf32> to vector<4x256xf32>
    %31 = vector.broadcast %20 : vector<1x256xf32> to vector<4x256xf32>
    %32 = arith.mulf %30, %31 : vector<4x256xf32>
    %33 = vector.extract_strided_slice %27 {offsets = [0, 0], sizes = [4, 1], strides = [1, 1]} : vector<4x9xf32> to vector<4x1xf32>
    %34 = vector.broadcast %33 : vector<4x1xf32> to vector<4x256xf32>
    %35 = arith.mulf %32, %34 : vector<4x256xf32>
    %36 = arith.addf %28, %35 : vector<4x256xf32>
    %37 = vector.extract_strided_slice %29 {offsets = [0, 1], sizes = [4, 256], strides = [1, 1]} : vector<4x258xf32> to vector<4x256xf32>
    %38 = vector.extract_strided_slice %27 {offsets = [0, 1], sizes = [4, 1], strides = [1, 1]} : vector<4x9xf32> to vector<4x1xf32>
    %39 = vector.broadcast %38 : vector<4x1xf32> to vector<4x256xf32>
    %40 = arith.mulf %37, %39 : vector<4x256xf32>
    %41 = arith.addf %36, %40 : vector<4x256xf32>
    %42 = vector.extract_strided_slice %29 {offsets = [0, 2], sizes = [4, 256], strides = [1, 1]} : vector<4x258xf32> to vector<4x256xf32>
    %43 = vector.broadcast %24 : vector<1x256xf32> to vector<4x256xf32>
    %44 = arith.mulf %42, %43 : vector<4x256xf32>
    %45 = vector.extract_strided_slice %27 {offsets = [0, 2], sizes = [4, 1], strides = [1, 1]} : vector<4x9xf32> to vector<4x1xf32>
    %46 = vector.broadcast %45 : vector<4x1xf32> to vector<4x256xf32>
    %47 = arith.mulf %44, %46 : vector<4x256xf32>
    %48 = arith.addf %41, %47 : vector<4x256xf32>
    %49 = vector.extract_strided_slice %26 {offsets = [0, 16], sizes = [4, 258], strides = [1, 1]} : vector<4x290xf32> to vector<4x258xf32>
    %50 = vector.extract_strided_slice %49 {offsets = [0, 0], sizes = [4, 256], strides = [1, 1]} : vector<4x258xf32> to vector<4x256xf32>
    %51 = vector.broadcast %20 : vector<1x256xf32> to vector<4x256xf32>
    %52 = arith.mulf %50, %51 : vector<4x256xf32>
    %53 = vector.extract_strided_slice %27 {offsets = [0, 3], sizes = [4, 1], strides = [1, 1]} : vector<4x9xf32> to vector<4x1xf32>
    %54 = vector.broadcast %53 : vector<4x1xf32> to vector<4x256xf32>
    %55 = arith.mulf %52, %54 : vector<4x256xf32>
    %56 = arith.addf %48, %55 : vector<4x256xf32>
    %57 = vector.extract_strided_slice %49 {offsets = [0, 1], sizes = [4, 256], strides = [1, 1]} : vector<4x258xf32> to vector<4x256xf32>
    %58 = vector.extract_strided_slice %27 {offsets = [0, 4], sizes = [4, 1], strides = [1, 1]} : vector<4x9xf32> to vector<4x1xf32>
    %59 = vector.broadcast %58 : vector<4x1xf32> to vector<4x256xf32>
    %60 = arith.mulf %57, %59 : vector<4x256xf32>
    %61 = arith.addf %56, %60 : vector<4x256xf32>
    %62 = vector.extract_strided_slice %49 {offsets = [0, 2], sizes = [4, 256], strides = [1, 1]} : vector<4x258xf32> to vector<4x256xf32>
    %63 = vector.broadcast %24 : vector<1x256xf32> to vector<4x256xf32>
    %64 = arith.mulf %62, %63 : vector<4x256xf32>
    %65 = vector.extract_strided_slice %27 {offsets = [0, 5], sizes = [4, 1], strides = [1, 1]} : vector<4x9xf32> to vector<4x1xf32>
    %66 = vector.broadcast %65 : vector<4x1xf32> to vector<4x256xf32>
    %67 = arith.mulf %64, %66 : vector<4x256xf32>
    %68 = arith.addf %61, %67 : vector<4x256xf32>
    %69 = vector.extract_strided_slice %26 {offsets = [0, 32], sizes = [4, 258], strides = [1, 1]} : vector<4x290xf32> to vector<4x258xf32>
    %70 = vector.extract_strided_slice %69 {offsets = [0, 0], sizes = [4, 256], strides = [1, 1]} : vector<4x258xf32> to vector<4x256xf32>
    %71 = vector.broadcast %20 : vector<1x256xf32> to vector<4x256xf32>
    %72 = arith.mulf %70, %71 : vector<4x256xf32>
    %73 = vector.extract_strided_slice %27 {offsets = [0, 6], sizes = [4, 1], strides = [1, 1]} : vector<4x9xf32> to vector<4x1xf32>
    %74 = vector.broadcast %73 : vector<4x1xf32> to vector<4x256xf32>
    %75 = arith.mulf %72, %74 : vector<4x256xf32>
    %76 = arith.addf %68, %75 : vector<4x256xf32>
    %77 = vector.extract_strided_slice %69 {offsets = [0, 1], sizes = [4, 256], strides = [1, 1]} : vector<4x258xf32> to vector<4x256xf32>
    %78 = vector.extract_strided_slice %27 {offsets = [0, 7], sizes = [4, 1], strides = [1, 1]} : vector<4x9xf32> to vector<4x1xf32>
    %79 = vector.broadcast %78 : vector<4x1xf32> to vector<4x256xf32>
    %80 = arith.mulf %77, %79 : vector<4x256xf32>
    %81 = arith.addf %76, %80 : vector<4x256xf32>
    %82 = vector.extract_strided_slice %69 {offsets = [0, 2], sizes = [4, 256], strides = [1, 1]} : vector<4x258xf32> to vector<4x256xf32>
    %83 = vector.broadcast %24 : vector<1x256xf32> to vector<4x256xf32>
    %84 = arith.mulf %82, %83 : vector<4x256xf32>
    %85 = vector.extract_strided_slice %27 {offsets = [0, 8], sizes = [4, 1], strides = [1, 1]} : vector<4x9xf32> to vector<4x1xf32>
    %86 = vector.broadcast %85 : vector<4x1xf32> to vector<4x256xf32>
    %87 = arith.mulf %84, %86 : vector<4x256xf32>
    %88 = arith.addf %81, %87 : vector<4x256xf32>
    %c0_8 = arith.constant 0 : index
    %c0_9 = arith.constant 0 : index
    %89 = vector.load %arg3[%c0_8, %c0_9] : memref<4x1xf32, #tpu.memory_space<vmem>>, vector<4x1xf32>
    %90 = vector.broadcast %89 : vector<4x1xf32> to vector<4x256xf32>
    %91 = arith.mulf %88, %90 : vector<4x256xf32>
    %c0_10 = arith.constant 0 : index
    %c0_11 = arith.constant 0 : index
    %92 = vector.load %arg4[%c0_10, %c0_11] : memref<4x1xf32, #tpu.memory_space<vmem>>, vector<4x1xf32>
    %93 = vector.broadcast %92 : vector<4x1xf32> to vector<4x256xf32>
    %94 = arith.addf %91, %93 : vector<4x256xf32>
    %95 = arith.negf %94 : vector<4x256xf32>
    %96 = math.exp %95 : vector<4x256xf32>
    %cst_12 = arith.constant 1.000000e+00 : f32
    %97 = vector.broadcast %cst_12 : f32 to vector<4x256xf32>
    %98 = arith.addf %97, %96 : vector<4x256xf32>
    %99 = arith.divf %97, %98 : vector<4x256xf32>
    %100 = arith.mulf %94, %99 : vector<4x256xf32>
    %c0_13 = arith.constant 0 : index
    %c0_14 = arith.constant 0 : index
    %101 = vector.load %arg5[%c0_13, %c0_14] : memref<16x4xbf16, #tpu.memory_space<vmem>>, vector<16x4xbf16>
    %102 = arith.truncf %100 : vector<4x256xf32> to vector<4x256xbf16>
    %cst_15 = arith.constant dense<0.000000e+00> : vector<16x256xf32>
    %103 = tpu.matmul %101, %102, %cst_15 {dimension_numbers = #tpu.dot_dimension_numbers<[1], [0], [0], [1], [0, 0, 1, 1], [], []>} : vector<16x4xbf16>, vector<4x256xbf16>, vector<16x256xf32> -> vector<16x256xf32>
    %c0_16 = arith.constant 0 : index
    %c0_17 = arith.constant 0 : index
    %104 = vector.load %arg6[%c0_16, %c0_17] : memref<16x1xf32, #tpu.memory_space<vmem>>, vector<16x1xf32>
    %105 = vector.broadcast %104 : vector<16x1xf32> to vector<16x256xf32>
    %106 = arith.addf %103, %105 : vector<16x256xf32>
    %c0_18 = arith.constant 0 : index
    %c0_19 = arith.constant 0 : index
    %107 = vector.load %arg7[%c0_18, %c0_19] : memref<256x8xf32, #tpu.memory_space<vmem>>, vector<256x8xf32>
    %c0_20 = arith.constant 0 : index
    %c0_21 = arith.constant 0 : index
    %108 = vector.load %arg8[%c0_20, %c0_21] : memref<8x256xf32, #tpu.memory_space<vmem>>, vector<8x256xf32>
    %c0_22 = arith.constant 0 : index
    %c0_23 = arith.constant 0 : index
    %c0_24 = arith.constant 0 : index
    %109 = vector.load %arg9[%c0_22, %c0_23, %c0_24] : memref<2x16x1xf32, #tpu.memory_space<vmem>>, vector<1x16x1xf32>
    %110 = vector.shape_cast %109 : vector<1x16x1xf32> to vector<16x1xf32>
    %c0_25 = arith.constant 0 : index
    %c0_26 = arith.constant 0 : index
    %c0_27 = arith.constant 0 : index
    %111 = vector.load %arg10[%c0_25, %c0_26, %c0_27] : memref<2x16x1xf32, #tpu.memory_space<vmem>>, vector<1x16x1xf32>
    %112 = vector.shape_cast %111 : vector<1x16x1xf32> to vector<16x1xf32>
    %113 = vector.shape_cast %106 : vector<16x256xf32> to vector<1x16x256xf32>
    %cst_28 = arith.constant dense<0.000000e+00> : vector<1xf32>
    %114 = vector.multi_reduction <add>, %113, %cst_28 [1, 2] : vector<1x16x256xf32> to vector<1xf32>
    %115 = vector.shape_cast %114 : vector<1xf32> to vector<1x1x1xf32>
    %116 = vector.extract %115[0, 0, 0] : f32 from vector<1x1x1xf32>
    %cst_29 = arith.constant 4.096000e+03 : f32
    %117 = arith.divf %116, %cst_29 : f32
    %118 = arith.mulf %106, %106 : vector<16x256xf32>
    %119 = vector.shape_cast %118 : vector<16x256xf32> to vector<1x16x256xf32>
    %cst_30 = arith.constant dense<0.000000e+00> : vector<1xf32>
    %120 = vector.multi_reduction <add>, %119, %cst_30 [1, 2] : vector<1x16x256xf32> to vector<1xf32>
    %121 = vector.shape_cast %120 : vector<1xf32> to vector<1x1x1xf32>
    %122 = vector.extract %121[0, 0, 0] : f32 from vector<1x1x1xf32>
    %cst_31 = arith.constant 4.096000e+03 : f32
    %123 = arith.divf %122, %cst_31 : f32
    %124 = arith.mulf %117, %117 : f32
    %125 = arith.subf %123, %124 : f32
    %cst_32 = arith.constant 9.99999974E-6 : f32
    %126 = arith.addf %125, %cst_32 : f32
    %127 = math.rsqrt %126 : f32
    %128 = vector.broadcast %117 : f32 to vector<16x256xf32>
    %129 = arith.subf %106, %128 : vector<16x256xf32>
    %130 = vector.broadcast %127 : f32 to vector<16x256xf32>
    %131 = arith.mulf %129, %130 : vector<16x256xf32>
    %132 = vector.broadcast %110 : vector<16x1xf32> to vector<16x256xf32>
    %133 = arith.mulf %131, %132 : vector<16x256xf32>
    %134 = vector.broadcast %112 : vector<16x1xf32> to vector<16x256xf32>
    %135 = arith.addf %133, %134 : vector<16x256xf32>
    %136 = arith.truncf %135 : vector<16x256xf32> to vector<16x256xbf16>
    %c0_33 = arith.constant 0 : index
    %c0_34 = arith.constant 0 : index
    %c0_35 = arith.constant 0 : index
    %137 = vector.load %arg11[%c0_33, %c0_34, %c0_35] : memref<2x40x16xbf16, #tpu.memory_space<vmem>>, vector<1x40x16xbf16>
    %138 = vector.shape_cast %137 : vector<1x40x16xbf16> to vector<40x16xbf16>
    %cst_36 = arith.constant dense<0.000000e+00> : vector<40x256xf32>
    %139 = tpu.matmul %138, %136, %cst_36 {dimension_numbers = #tpu.dot_dimension_numbers<[1], [0], [0], [1], [0, 0, 1, 1], [], []>} : vector<40x16xbf16>, vector<16x256xbf16>, vector<40x256xf32> -> vector<40x256xf32>
    %c0_37 = arith.constant 0 : index
    %c0_38 = arith.constant 0 : index
    %c0_39 = arith.constant 0 : index
    %140 = vector.load %arg12[%c0_37, %c0_38, %c0_39] : memref<2x40x1xf32, #tpu.memory_space<vmem>>, vector<1x40x1xf32>
    %141 = vector.shape_cast %140 : vector<1x40x1xf32> to vector<40x1xf32>
    %142 = vector.broadcast %141 : vector<40x1xf32> to vector<40x256xf32>
    %143 = arith.addf %139, %142 : vector<40x256xf32>
    %144 = vector.extract_strided_slice %143 {offsets = [0, 0], sizes = [8, 256], strides = [1, 1]} : vector<40x256xf32> to vector<8x256xf32>
    %145 = vector.extract_strided_slice %143 {offsets = [8, 0], sizes = [16, 256], strides = [1, 1]} : vector<40x256xf32> to vector<16x256xf32>
    %146 = vector.extract_strided_slice %143 {offsets = [24, 0], sizes = [16, 256], strides = [1, 1]} : vector<40x256xf32> to vector<16x256xf32>
    %147 = vector.shape_cast %144 : vector<8x256xf32> to vector<1x8x256xf32>
    %cst_40 = arith.constant dense<0xFF800000> : vector<1xf32>
    %148 = vector.multi_reduction <maximumf>, %147, %cst_40 [1, 2] : vector<1x8x256xf32> to vector<1xf32>
    %149 = vector.shape_cast %148 : vector<1xf32> to vector<1x1x1xf32>
    %150 = vector.extract %149[0, 0, 0] : f32 from vector<1x1x1xf32>
    %151 = vector.broadcast %150 : f32 to vector<8x256xf32>
    %152 = arith.subf %144, %151 : vector<8x256xf32>
    %153 = math.exp %152 : vector<8x256xf32>
    %cst_41 = arith.constant dense<0.000000e+00> : vector<8x8xf32>
    %154 = tpu.matmul %153, %107, %cst_41 {dimension_numbers = #tpu.dot_dimension_numbers<[1], [0], [0], [1], [0, 0, 1, 1], [], []>} : vector<8x256xf32>, vector<256x8xf32>, vector<8x8xf32> -> vector<8x8xf32>
    %cst_42 = arith.constant dense<0.000000e+00> : vector<8x256xf32>
    %155 = tpu.matmul %154, %108, %cst_42 {dimension_numbers = #tpu.dot_dimension_numbers<[1], [0], [0], [1], [0, 0, 1, 1], [], []>} : vector<8x8xf32>, vector<8x256xf32>, vector<8x256xf32> -> vector<8x256xf32>
    %156 = tpu.reciprocal %155 {approx = true} : vector<8x256xf32> -> vector<8x256xf32>
    %157 = arith.mulf %153, %156 : vector<8x256xf32>
    %158 = vector.extract_strided_slice %157 {offsets = [0, 0], sizes = [1, 256], strides = [1, 1]} : vector<8x256xf32> to vector<1x256xf32>
    %159 = vector.broadcast %158 : vector<1x256xf32> to vector<16x256xf32>
    %160 = arith.mulf %145, %159 : vector<16x256xf32>
    %cst_43 = arith.constant dense<0.000000e+00> : vector<16x8xf32>
    %161 = tpu.matmul %160, %107, %cst_43 {dimension_numbers = #tpu.dot_dimension_numbers<[1], [0], [0], [1], [0, 0, 1, 1], [], []>} : vector<16x256xf32>, vector<256x8xf32>, vector<16x8xf32> -> vector<16x8xf32>
    %cst_44 = arith.constant dense<0.000000e+00> : vector<16x256xf32>
    %162 = tpu.matmul %161, %108, %cst_44 {dimension_numbers = #tpu.dot_dimension_numbers<[1], [0], [0], [1], [0, 0, 1, 1], [], []>} : vector<16x8xf32>, vector<8x256xf32>, vector<16x256xf32> -> vector<16x256xf32>
    %cst_45 = arith.constant 0.000000e+00 : f32
    %163 = vector.broadcast %cst_45 : f32 to vector<16x256xf32>
    %164 = arith.maximumf %146, %163 : vector<16x256xf32>
    %165 = arith.mulf %164, %162 : vector<16x256xf32>
    %c0_46 = arith.constant 0 : index
    %c0_47 = arith.constant 0 : index
    %c0_48 = arith.constant 0 : index
    %166 = vector.load %arg13[%c0_46, %c0_47, %c0_48] : memref<2x16x16xbf16, #tpu.memory_space<vmem>>, vector<1x16x16xbf16>
    %167 = vector.shape_cast %166 : vector<1x16x16xbf16> to vector<16x16xbf16>
    %168 = arith.truncf %165 : vector<16x256xf32> to vector<16x256xbf16>
    %cst_49 = arith.constant dense<0.000000e+00> : vector<16x256xf32>
    %169 = tpu.matmul %167, %168, %cst_49 {dimension_numbers = #tpu.dot_dimension_numbers<[1], [0], [0], [1], [0, 0, 1, 1], [], []>} : vector<16x16xbf16>, vector<16x256xbf16>, vector<16x256xf32> -> vector<16x256xf32>
    %c0_50 = arith.constant 0 : index
    %c0_51 = arith.constant 0 : index
    %c0_52 = arith.constant 0 : index
    %170 = vector.load %arg14[%c0_50, %c0_51, %c0_52] : memref<2x16x1xf32, #tpu.memory_space<vmem>>, vector<1x16x1xf32>
    %171 = vector.shape_cast %170 : vector<1x16x1xf32> to vector<16x1xf32>
    %172 = vector.broadcast %171 : vector<16x1xf32> to vector<16x256xf32>
    %173 = arith.addf %169, %172 : vector<16x256xf32>
    %174 = arith.addf %106, %173 : vector<16x256xf32>
    %c0_53 = arith.constant 0 : index
    %c0_54 = arith.constant 0 : index
    %c0_55 = arith.constant 0 : index
    %175 = vector.load %arg15[%c0_53, %c0_54, %c0_55] : memref<2x16x1xf32, #tpu.memory_space<vmem>>, vector<1x16x1xf32>
    %176 = vector.shape_cast %175 : vector<1x16x1xf32> to vector<16x1xf32>
    %c0_56 = arith.constant 0 : index
    %c0_57 = arith.constant 0 : index
    %c0_58 = arith.constant 0 : index
    %177 = vector.load %arg16[%c0_56, %c0_57, %c0_58] : memref<2x16x1xf32, #tpu.memory_space<vmem>>, vector<1x16x1xf32>
    %178 = vector.shape_cast %177 : vector<1x16x1xf32> to vector<16x1xf32>
    %179 = vector.shape_cast %174 : vector<16x256xf32> to vector<1x16x256xf32>
    %cst_59 = arith.constant dense<0.000000e+00> : vector<1xf32>
    %180 = vector.multi_reduction <add>, %179, %cst_59 [1, 2] : vector<1x16x256xf32> to vector<1xf32>
    %181 = vector.shape_cast %180 : vector<1xf32> to vector<1x1x1xf32>
    %182 = vector.extract %181[0, 0, 0] : f32 from vector<1x1x1xf32>
    %cst_60 = arith.constant 4.096000e+03 : f32
    %183 = arith.divf %182, %cst_60 : f32
    %184 = arith.mulf %174, %174 : vector<16x256xf32>
    %185 = vector.shape_cast %184 : vector<16x256xf32> to vector<1x16x256xf32>
    %cst_61 = arith.constant dense<0.000000e+00> : vector<1xf32>
    %186 = vector.multi_reduction <add>, %185, %cst_61 [1, 2] : vector<1x16x256xf32> to vector<1xf32>
    %187 = vector.shape_cast %186 : vector<1xf32> to vector<1x1x1xf32>
    %188 = vector.extract %187[0, 0, 0] : f32 from vector<1x1x1xf32>
    %cst_62 = arith.constant 4.096000e+03 : f32
    %189 = arith.divf %188, %cst_62 : f32
    %190 = arith.mulf %183, %183 : f32
    %191 = arith.subf %189, %190 : f32
    %cst_63 = arith.constant 9.99999974E-6 : f32
    %192 = arith.addf %191, %cst_63 : f32
    %193 = math.rsqrt %192 : f32
    %194 = vector.broadcast %183 : f32 to vector<16x256xf32>
    %195 = arith.subf %174, %194 : vector<16x256xf32>
    %196 = vector.broadcast %193 : f32 to vector<16x256xf32>
    %197 = arith.mulf %195, %196 : vector<16x256xf32>
    %198 = vector.broadcast %176 : vector<16x1xf32> to vector<16x256xf32>
    %199 = arith.mulf %197, %198 : vector<16x256xf32>
    %200 = vector.broadcast %178 : vector<16x1xf32> to vector<16x256xf32>
    %201 = arith.addf %199, %200 : vector<16x256xf32>
    %c0_64 = arith.constant 0 : index
    %c0_65 = arith.constant 0 : index
    %c0_66 = arith.constant 0 : index
    %202 = vector.load %arg17[%c0_64, %c0_65, %c0_66] : memref<2x32x16xbf16, #tpu.memory_space<vmem>>, vector<1x32x16xbf16>
    %203 = vector.shape_cast %202 : vector<1x32x16xbf16> to vector<32x16xbf16>
    %204 = arith.truncf %201 : vector<16x256xf32> to vector<16x256xbf16>
    %cst_67 = arith.constant dense<0.000000e+00> : vector<32x256xf32>
    %205 = tpu.matmul %203, %204, %cst_67 {dimension_numbers = #tpu.dot_dimension_numbers<[1], [0], [0], [1], [0, 0, 1, 1], [], []>} : vector<32x16xbf16>, vector<16x256xbf16>, vector<32x256xf32> -> vector<32x256xf32>
    %c0_68 = arith.constant 0 : index
    %c0_69 = arith.constant 0 : index
    %c0_70 = arith.constant 0 : index
    %206 = vector.load %arg18[%c0_68, %c0_69, %c0_70] : memref<2x32x1xf32, #tpu.memory_space<vmem>>, vector<1x32x1xf32>
    %207 = vector.shape_cast %206 : vector<1x32x1xf32> to vector<32x1xf32>
    %208 = vector.broadcast %207 : vector<32x1xf32> to vector<32x256xf32>
    %209 = arith.addf %205, %208 : vector<32x256xf32>
    %210 = arith.negf %209 : vector<32x256xf32>
    %211 = math.exp %210 : vector<32x256xf32>
    %cst_71 = arith.constant 1.000000e+00 : f32
    %212 = vector.broadcast %cst_71 : f32 to vector<32x256xf32>
    %213 = arith.addf %212, %211 : vector<32x256xf32>
    %214 = arith.divf %212, %213 : vector<32x256xf32>
    %215 = arith.mulf %209, %214 : vector<32x256xf32>
    %c0_72 = arith.constant 0 : index
    %c0_73 = arith.constant 0 : index
    %c0_74 = arith.constant 0 : index
    %216 = vector.load %arg19[%c0_72, %c0_73, %c0_74] : memref<2x16x32xbf16, #tpu.memory_space<vmem>>, vector<1x16x32xbf16>
    %217 = vector.shape_cast %216 : vector<1x16x32xbf16> to vector<16x32xbf16>
    %218 = arith.truncf %215 : vector<32x256xf32> to vector<32x256xbf16>
    %cst_75 = arith.constant dense<0.000000e+00> : vector<16x256xf32>
    %219 = tpu.matmul %217, %218, %cst_75 {dimension_numbers = #tpu.dot_dimension_numbers<[1], [0], [0], [1], [0, 0, 1, 1], [], []>} : vector<16x32xbf16>, vector<32x256xbf16>, vector<16x256xf32> -> vector<16x256xf32>
    %c0_76 = arith.constant 0 : index
    %c0_77 = arith.constant 0 : index
    %c0_78 = arith.constant 0 : index
    %220 = vector.load %arg20[%c0_76, %c0_77, %c0_78] : memref<2x16x1xf32, #tpu.memory_space<vmem>>, vector<1x16x1xf32>
    %221 = vector.shape_cast %220 : vector<1x16x1xf32> to vector<16x1xf32>
    %222 = vector.broadcast %221 : vector<16x1xf32> to vector<16x256xf32>
    %223 = arith.addf %219, %222 : vector<16x256xf32>
    %224 = arith.addf %174, %223 : vector<16x256xf32>
    %c0_79 = arith.constant 0 : index
    %c0_80 = arith.constant 0 : index
    %225 = vector.load %arg7[%c0_79, %c0_80] : memref<256x8xf32, #tpu.memory_space<vmem>>, vector<256x8xf32>
    %c0_81 = arith.constant 0 : index
    %c0_82 = arith.constant 0 : index
    %226 = vector.load %arg8[%c0_81, %c0_82] : memref<8x256xf32, #tpu.memory_space<vmem>>, vector<8x256xf32>
    %c1 = arith.constant 1 : index
    %c0_83 = arith.constant 0 : index
    %c0_84 = arith.constant 0 : index
    %227 = vector.load %arg9[%c1, %c0_83, %c0_84] : memref<2x16x1xf32, #tpu.memory_space<vmem>>, vector<1x16x1xf32>
    %228 = vector.shape_cast %227 : vector<1x16x1xf32> to vector<16x1xf32>
    %c1_85 = arith.constant 1 : index
    %c0_86 = arith.constant 0 : index
    %c0_87 = arith.constant 0 : index
    %229 = vector.load %arg10[%c1_85, %c0_86, %c0_87] : memref<2x16x1xf32, #tpu.memory_space<vmem>>, vector<1x16x1xf32>
    %230 = vector.shape_cast %229 : vector<1x16x1xf32> to vector<16x1xf32>
    %231 = vector.shape_cast %224 : vector<16x256xf32> to vector<1x16x256xf32>
    %cst_88 = arith.constant dense<0.000000e+00> : vector<1xf32>
    %232 = vector.multi_reduction <add>, %231, %cst_88 [1, 2] : vector<1x16x256xf32> to vector<1xf32>
    %233 = vector.shape_cast %232 : vector<1xf32> to vector<1x1x1xf32>
    %234 = vector.extract %233[0, 0, 0] : f32 from vector<1x1x1xf32>
    %cst_89 = arith.constant 4.096000e+03 : f32
    %235 = arith.divf %234, %cst_89 : f32
    %236 = arith.mulf %224, %224 : vector<16x256xf32>
    %237 = vector.shape_cast %236 : vector<16x256xf32> to vector<1x16x256xf32>
    %cst_90 = arith.constant dense<0.000000e+00> : vector<1xf32>
    %238 = vector.multi_reduction <add>, %237, %cst_90 [1, 2] : vector<1x16x256xf32> to vector<1xf32>
    %239 = vector.shape_cast %238 : vector<1xf32> to vector<1x1x1xf32>
    %240 = vector.extract %239[0, 0, 0] : f32 from vector<1x1x1xf32>
    %cst_91 = arith.constant 4.096000e+03 : f32
    %241 = arith.divf %240, %cst_91 : f32
    %242 = arith.mulf %235, %235 : f32
    %243 = arith.subf %241, %242 : f32
    %cst_92 = arith.constant 9.99999974E-6 : f32
    %244 = arith.addf %243, %cst_92 : f32
    %245 = math.rsqrt %244 : f32
    %246 = vector.broadcast %235 : f32 to vector<16x256xf32>
    %247 = arith.subf %224, %246 : vector<16x256xf32>
    %248 = vector.broadcast %245 : f32 to vector<16x256xf32>
    %249 = arith.mulf %247, %248 : vector<16x256xf32>
    %250 = vector.broadcast %228 : vector<16x1xf32> to vector<16x256xf32>
    %251 = arith.mulf %249, %250 : vector<16x256xf32>
    %252 = vector.broadcast %230 : vector<16x1xf32> to vector<16x256xf32>
    %253 = arith.addf %251, %252 : vector<16x256xf32>
    %254 = arith.truncf %253 : vector<16x256xf32> to vector<16x256xbf16>
    %c1_93 = arith.constant 1 : index
    %c0_94 = arith.constant 0 : index
    %c0_95 = arith.constant 0 : index
    %255 = vector.load %arg11[%c1_93, %c0_94, %c0_95] : memref<2x40x16xbf16, #tpu.memory_space<vmem>>, vector<1x40x16xbf16>
    %256 = vector.shape_cast %255 : vector<1x40x16xbf16> to vector<40x16xbf16>
    %cst_96 = arith.constant dense<0.000000e+00> : vector<40x256xf32>
    %257 = tpu.matmul %256, %254, %cst_96 {dimension_numbers = #tpu.dot_dimension_numbers<[1], [0], [0], [1], [0, 0, 1, 1], [], []>} : vector<40x16xbf16>, vector<16x256xbf16>, vector<40x256xf32> -> vector<40x256xf32>
    %c1_97 = arith.constant 1 : index
    %c0_98 = arith.constant 0 : index
    %c0_99 = arith.constant 0 : index
    %258 = vector.load %arg12[%c1_97, %c0_98, %c0_99] : memref<2x40x1xf32, #tpu.memory_space<vmem>>, vector<1x40x1xf32>
    %259 = vector.shape_cast %258 : vector<1x40x1xf32> to vector<40x1xf32>
    %260 = vector.broadcast %259 : vector<40x1xf32> to vector<40x256xf32>
    %261 = arith.addf %257, %260 : vector<40x256xf32>
    %262 = vector.extract_strided_slice %261 {offsets = [0, 0], sizes = [8, 256], strides = [1, 1]} : vector<40x256xf32> to vector<8x256xf32>
    %263 = vector.extract_strided_slice %261 {offsets = [8, 0], sizes = [16, 256], strides = [1, 1]} : vector<40x256xf32> to vector<16x256xf32>
    %264 = vector.extract_strided_slice %261 {offsets = [24, 0], sizes = [16, 256], strides = [1, 1]} : vector<40x256xf32> to vector<16x256xf32>
    %265 = vector.shape_cast %262 : vector<8x256xf32> to vector<1x8x256xf32>
    %cst_100 = arith.constant dense<0xFF800000> : vector<1xf32>
    %266 = vector.multi_reduction <maximumf>, %265, %cst_100 [1, 2] : vector<1x8x256xf32> to vector<1xf32>
    %267 = vector.shape_cast %266 : vector<1xf32> to vector<1x1x1xf32>
    %268 = vector.extract %267[0, 0, 0] : f32 from vector<1x1x1xf32>
    %269 = vector.broadcast %268 : f32 to vector<8x256xf32>
    %270 = arith.subf %262, %269 : vector<8x256xf32>
    %271 = math.exp %270 : vector<8x256xf32>
    %cst_101 = arith.constant dense<0.000000e+00> : vector<8x8xf32>
    %272 = tpu.matmul %271, %225, %cst_101 {dimension_numbers = #tpu.dot_dimension_numbers<[1], [0], [0], [1], [0, 0, 1, 1], [], []>} : vector<8x256xf32>, vector<256x8xf32>, vector<8x8xf32> -> vector<8x8xf32>
    %cst_102 = arith.constant dense<0.000000e+00> : vector<8x256xf32>
    %273 = tpu.matmul %272, %226, %cst_102 {dimension_numbers = #tpu.dot_dimension_numbers<[1], [0], [0], [1], [0, 0, 1, 1], [], []>} : vector<8x8xf32>, vector<8x256xf32>, vector<8x256xf32> -> vector<8x256xf32>
    %274 = tpu.reciprocal %273 {approx = true} : vector<8x256xf32> -> vector<8x256xf32>
    %275 = arith.mulf %271, %274 : vector<8x256xf32>
    %276 = vector.extract_strided_slice %275 {offsets = [0, 0], sizes = [1, 256], strides = [1, 1]} : vector<8x256xf32> to vector<1x256xf32>
    %277 = vector.broadcast %276 : vector<1x256xf32> to vector<16x256xf32>
    %278 = arith.mulf %263, %277 : vector<16x256xf32>
    %cst_103 = arith.constant dense<0.000000e+00> : vector<16x8xf32>
    %279 = tpu.matmul %278, %225, %cst_103 {dimension_numbers = #tpu.dot_dimension_numbers<[1], [0], [0], [1], [0, 0, 1, 1], [], []>} : vector<16x256xf32>, vector<256x8xf32>, vector<16x8xf32> -> vector<16x8xf32>
    %cst_104 = arith.constant dense<0.000000e+00> : vector<16x256xf32>
    %280 = tpu.matmul %279, %226, %cst_104 {dimension_numbers = #tpu.dot_dimension_numbers<[1], [0], [0], [1], [0, 0, 1, 1], [], []>} : vector<16x8xf32>, vector<8x256xf32>, vector<16x256xf32> -> vector<16x256xf32>
    %cst_105 = arith.constant 0.000000e+00 : f32
    %281 = vector.broadcast %cst_105 : f32 to vector<16x256xf32>
    %282 = arith.maximumf %264, %281 : vector<16x256xf32>
    %283 = arith.mulf %282, %280 : vector<16x256xf32>
    %c1_106 = arith.constant 1 : index
    %c0_107 = arith.constant 0 : index
    %c0_108 = arith.constant 0 : index
    %284 = vector.load %arg13[%c1_106, %c0_107, %c0_108] : memref<2x16x16xbf16, #tpu.memory_space<vmem>>, vector<1x16x16xbf16>
    %285 = vector.shape_cast %284 : vector<1x16x16xbf16> to vector<16x16xbf16>
    %286 = arith.truncf %283 : vector<16x256xf32> to vector<16x256xbf16>
    %cst_109 = arith.constant dense<0.000000e+00> : vector<16x256xf32>
    %287 = tpu.matmul %285, %286, %cst_109 {dimension_numbers = #tpu.dot_dimension_numbers<[1], [0], [0], [1], [0, 0, 1, 1], [], []>} : vector<16x16xbf16>, vector<16x256xbf16>, vector<16x256xf32> -> vector<16x256xf32>
    %c1_110 = arith.constant 1 : index
    %c0_111 = arith.constant 0 : index
    %c0_112 = arith.constant 0 : index
    %288 = vector.load %arg14[%c1_110, %c0_111, %c0_112] : memref<2x16x1xf32, #tpu.memory_space<vmem>>, vector<1x16x1xf32>
    %289 = vector.shape_cast %288 : vector<1x16x1xf32> to vector<16x1xf32>
    %290 = vector.broadcast %289 : vector<16x1xf32> to vector<16x256xf32>
    %291 = arith.addf %287, %290 : vector<16x256xf32>
    %292 = arith.addf %224, %291 : vector<16x256xf32>
    %c1_113 = arith.constant 1 : index
    %c0_114 = arith.constant 0 : index
    %c0_115 = arith.constant 0 : index
    %293 = vector.load %arg15[%c1_113, %c0_114, %c0_115] : memref<2x16x1xf32, #tpu.memory_space<vmem>>, vector<1x16x1xf32>
    %294 = vector.shape_cast %293 : vector<1x16x1xf32> to vector<16x1xf32>
    %c1_116 = arith.constant 1 : index
    %c0_117 = arith.constant 0 : index
    %c0_118 = arith.constant 0 : index
    %295 = vector.load %arg16[%c1_116, %c0_117, %c0_118] : memref<2x16x1xf32, #tpu.memory_space<vmem>>, vector<1x16x1xf32>
    %296 = vector.shape_cast %295 : vector<1x16x1xf32> to vector<16x1xf32>
    %297 = vector.shape_cast %292 : vector<16x256xf32> to vector<1x16x256xf32>
    %cst_119 = arith.constant dense<0.000000e+00> : vector<1xf32>
    %298 = vector.multi_reduction <add>, %297, %cst_119 [1, 2] : vector<1x16x256xf32> to vector<1xf32>
    %299 = vector.shape_cast %298 : vector<1xf32> to vector<1x1x1xf32>
    %300 = vector.extract %299[0, 0, 0] : f32 from vector<1x1x1xf32>
    %cst_120 = arith.constant 4.096000e+03 : f32
    %301 = arith.divf %300, %cst_120 : f32
    %302 = arith.mulf %292, %292 : vector<16x256xf32>
    %303 = vector.shape_cast %302 : vector<16x256xf32> to vector<1x16x256xf32>
    %cst_121 = arith.constant dense<0.000000e+00> : vector<1xf32>
    %304 = vector.multi_reduction <add>, %303, %cst_121 [1, 2] : vector<1x16x256xf32> to vector<1xf32>
    %305 = vector.shape_cast %304 : vector<1xf32> to vector<1x1x1xf32>
    %306 = vector.extract %305[0, 0, 0] : f32 from vector<1x1x1xf32>
    %cst_122 = arith.constant 4.096000e+03 : f32
    %307 = arith.divf %306, %cst_122 : f32
    %308 = arith.mulf %301, %301 : f32
    %309 = arith.subf %307, %308 : f32
    %cst_123 = arith.constant 9.99999974E-6 : f32
    %310 = arith.addf %309, %cst_123 : f32
    %311 = math.rsqrt %310 : f32
    %312 = vector.broadcast %301 : f32 to vector<16x256xf32>
    %313 = arith.subf %292, %312 : vector<16x256xf32>
    %314 = vector.broadcast %311 : f32 to vector<16x256xf32>
    %315 = arith.mulf %313, %314 : vector<16x256xf32>
    %316 = vector.broadcast %294 : vector<16x1xf32> to vector<16x256xf32>
    %317 = arith.mulf %315, %316 : vector<16x256xf32>
    %318 = vector.broadcast %296 : vector<16x1xf32> to vector<16x256xf32>
    %319 = arith.addf %317, %318 : vector<16x256xf32>
    %c1_124 = arith.constant 1 : index
    %c0_125 = arith.constant 0 : index
    %c0_126 = arith.constant 0 : index
    %320 = vector.load %arg17[%c1_124, %c0_125, %c0_126] : memref<2x32x16xbf16, #tpu.memory_space<vmem>>, vector<1x32x16xbf16>
    %321 = vector.shape_cast %320 : vector<1x32x16xbf16> to vector<32x16xbf16>
    %322 = arith.truncf %319 : vector<16x256xf32> to vector<16x256xbf16>
    %cst_127 = arith.constant dense<0.000000e+00> : vector<32x256xf32>
    %323 = tpu.matmul %321, %322, %cst_127 {dimension_numbers = #tpu.dot_dimension_numbers<[1], [0], [0], [1], [0, 0, 1, 1], [], []>} : vector<32x16xbf16>, vector<16x256xbf16>, vector<32x256xf32> -> vector<32x256xf32>
    %c1_128 = arith.constant 1 : index
    %c0_129 = arith.constant 0 : index
    %c0_130 = arith.constant 0 : index
    %324 = vector.load %arg18[%c1_128, %c0_129, %c0_130] : memref<2x32x1xf32, #tpu.memory_space<vmem>>, vector<1x32x1xf32>
    %325 = vector.shape_cast %324 : vector<1x32x1xf32> to vector<32x1xf32>
    %326 = vector.broadcast %325 : vector<32x1xf32> to vector<32x256xf32>
    %327 = arith.addf %323, %326 : vector<32x256xf32>
    %328 = arith.negf %327 : vector<32x256xf32>
    %329 = math.exp %328 : vector<32x256xf32>
    %cst_131 = arith.constant 1.000000e+00 : f32
    %330 = vector.broadcast %cst_131 : f32 to vector<32x256xf32>
    %331 = arith.addf %330, %329 : vector<32x256xf32>
    %332 = arith.divf %330, %331 : vector<32x256xf32>
    %333 = arith.mulf %327, %332 : vector<32x256xf32>
    %c1_132 = arith.constant 1 : index
    %c0_133 = arith.constant 0 : index
    %c0_134 = arith.constant 0 : index
    %334 = vector.load %arg19[%c1_132, %c0_133, %c0_134] : memref<2x16x32xbf16, #tpu.memory_space<vmem>>, vector<1x16x32xbf16>
    %335 = vector.shape_cast %334 : vector<1x16x32xbf16> to vector<16x32xbf16>
    %336 = arith.truncf %333 : vector<32x256xf32> to vector<32x256xbf16>
    %cst_135 = arith.constant dense<0.000000e+00> : vector<16x256xf32>
    %337 = tpu.matmul %335, %336, %cst_135 {dimension_numbers = #tpu.dot_dimension_numbers<[1], [0], [0], [1], [0, 0, 1, 1], [], []>} : vector<16x32xbf16>, vector<32x256xbf16>, vector<16x256xf32> -> vector<16x256xf32>
    %c1_136 = arith.constant 1 : index
    %c0_137 = arith.constant 0 : index
    %c0_138 = arith.constant 0 : index
    %338 = vector.load %arg20[%c1_136, %c0_137, %c0_138] : memref<2x16x1xf32, #tpu.memory_space<vmem>>, vector<1x16x1xf32>
    %339 = vector.shape_cast %338 : vector<1x16x1xf32> to vector<16x1xf32>
    %340 = vector.broadcast %339 : vector<16x1xf32> to vector<16x256xf32>
    %341 = arith.addf %337, %340 : vector<16x256xf32>
    %342 = arith.addf %292, %341 : vector<16x256xf32>
    %c0_139 = arith.constant 0 : index
    %c0_140 = arith.constant 0 : index
    %343 = vector.load %arg21[%c0_139, %c0_140] : memref<16x1xf32, #tpu.memory_space<vmem>>, vector<16x1xf32>
    %c0_141 = arith.constant 0 : index
    %c0_142 = arith.constant 0 : index
    %344 = vector.load %arg22[%c0_141, %c0_142] : memref<16x1xf32, #tpu.memory_space<vmem>>, vector<16x1xf32>
    %345 = vector.shape_cast %342 : vector<16x256xf32> to vector<1x16x256xf32>
    %cst_143 = arith.constant dense<0.000000e+00> : vector<1xf32>
    %346 = vector.multi_reduction <add>, %345, %cst_143 [1, 2] : vector<1x16x256xf32> to vector<1xf32>
    %347 = vector.shape_cast %346 : vector<1xf32> to vector<1x1x1xf32>
    %348 = vector.extract %347[0, 0, 0] : f32 from vector<1x1x1xf32>
    %cst_144 = arith.constant 4.096000e+03 : f32
    %349 = arith.divf %348, %cst_144 : f32
    %350 = arith.mulf %342, %342 : vector<16x256xf32>
    %351 = vector.shape_cast %350 : vector<16x256xf32> to vector<1x16x256xf32>
    %cst_145 = arith.constant dense<0.000000e+00> : vector<1xf32>
    %352 = vector.multi_reduction <add>, %351, %cst_145 [1, 2] : vector<1x16x256xf32> to vector<1xf32>
    %353 = vector.shape_cast %352 : vector<1xf32> to vector<1x1x1xf32>
    %354 = vector.extract %353[0, 0, 0] : f32 from vector<1x1x1xf32>
    %cst_146 = arith.constant 4.096000e+03 : f32
    %355 = arith.divf %354, %cst_146 : f32
    %356 = arith.mulf %349, %349 : f32
    %357 = arith.subf %355, %356 : f32
    %cst_147 = arith.constant 9.99999974E-6 : f32
    %358 = arith.addf %357, %cst_147 : f32
    %359 = math.rsqrt %358 : f32
    %360 = vector.broadcast %349 : f32 to vector<16x256xf32>
    %361 = arith.subf %342, %360 : vector<16x256xf32>
    %362 = vector.broadcast %359 : f32 to vector<16x256xf32>
    %363 = arith.mulf %361, %362 : vector<16x256xf32>
    %364 = vector.broadcast %343 : vector<16x1xf32> to vector<16x256xf32>
    %365 = arith.mulf %363, %364 : vector<16x256xf32>
    %366 = vector.broadcast %344 : vector<16x1xf32> to vector<16x256xf32>
    %367 = arith.addf %365, %366 : vector<16x256xf32>
    %c0_148 = arith.constant 0 : index
    %c0_149 = arith.constant 0 : index
    %368 = vector.load %arg23[%c0_148, %c0_149] : memref<4x16xbf16, #tpu.memory_space<vmem>>, vector<4x16xbf16>
    %369 = arith.truncf %367 : vector<16x256xf32> to vector<16x256xbf16>
    %cst_150 = arith.constant dense<0.000000e+00> : vector<4x256xf32>
    %370 = tpu.matmul %368, %369, %cst_150 {dimension_numbers = #tpu.dot_dimension_numbers<[1], [0], [0], [1], [0, 0, 1, 1], [], []>} : vector<4x16xbf16>, vector<16x256xbf16>, vector<4x256xf32> -> vector<4x256xf32>
    %c0_151 = arith.constant 0 : index
    %c0_152 = arith.constant 0 : index
    %371 = vector.load %arg24[%c0_151, %c0_152] : memref<4x1xf32, #tpu.memory_space<vmem>>, vector<4x1xf32>
    %372 = vector.broadcast %371 : vector<4x1xf32> to vector<4x256xf32>
    %373 = arith.addf %370, %372 : vector<4x256xf32>
    %c0_153 = arith.constant 0 : index
    %c0_154 = arith.constant 0 : index
    %374 = vector.load %arg25[%c0_153, %c0_154] : memref<4x1xf32, #tpu.memory_space<vmem>>, vector<4x1xf32>
    %375 = vector.broadcast %374 : vector<4x1xf32> to vector<4x256xf32>
    %376 = arith.mulf %373, %375 : vector<4x256xf32>
    %c0_155 = arith.constant 0 : index
    %c0_156 = arith.constant 0 : index
    %377 = vector.load %arg26[%c0_155, %c0_156] : memref<4x1xf32, #tpu.memory_space<vmem>>, vector<4x1xf32>
    %378 = vector.broadcast %377 : vector<4x1xf32> to vector<4x256xf32>
    %379 = arith.addf %376, %378 : vector<4x256xf32>
    %c0_157 = arith.constant 0 : index
    %c0_158 = arith.constant 0 : index
    %c0_159 = arith.constant 0 : index
    %380 = vector.load %arg27[%c0_157, %c0_158, %c0_159] : memref<1x4x256xf32, #tpu.memory_space<vmem>>, vector<1x4x256xf32>
    %381 = vector.shape_cast %380 : vector<1x4x256xf32> to vector<4x256xf32>
    %382 = vector.shape_cast %379 : vector<4x256xf32> to vector<1x4x256xf32>
    tpu.vector_store %arg27[%c0_157, %c0_158, %c0_159], %382 {strides = array<i32>} : memref<1x4x256xf32, #tpu.memory_space<vmem>>, vector<1x4x256xf32>,
    return
  }
  func.func @transform_0(%arg0: i32) -> (i32, i32, i32) {
    %c0_i32 = arith.constant 0 : i32
    %c0_i32_0 = arith.constant 0 : i32
    %c0_i32_1 = arith.constant 0 : i32
    return %arg0, %c0_i32, %c0_i32_0 : i32, i32, i32
  }
  func.func @transform_1(%arg0: i32) -> (i32, i32) {
    %c0_i32 = arith.constant 0 : i32
    %c0_i32_0 = arith.constant 0 : i32
    %c0_i32_1 = arith.constant 0 : i32
    return %c0_i32, %c0_i32_0 : i32, i32
  }
  func.func @transform_2(%arg0: i32) -> (i32, i32) {
    %c0_i32 = arith.constant 0 : i32
    %c0_i32_0 = arith.constant 0 : i32
    %c0_i32_1 = arith.constant 0 : i32
    return %c0_i32, %c0_i32_0 : i32, i32
  }
  func.func @transform_3(%arg0: i32) -> (i32, i32) {
    %c0_i32 = arith.constant 0 : i32
    %c0_i32_0 = arith.constant 0 : i32
    %c0_i32_1 = arith.constant 0 : i32
    return %c0_i32, %c0_i32_0 : i32, i32
  }
  func.func @transform_4(%arg0: i32) -> (i32, i32) {
    %c0_i32 = arith.constant 0 : i32
    %c0_i32_0 = arith.constant 0 : i32
    %c0_i32_1 = arith.constant 0 : i32
    return %c0_i32, %c0_i32_0 : i32, i32
  }
  func.func @transform_5(%arg0: i32) -> (i32, i32) {
    %c0_i32 = arith.constant 0 : i32
    %c0_i32_0 = arith.constant 0 : i32
    %c0_i32_1 = arith.constant 0 : i32
    return %c0_i32, %c0_i32_0 : i32, i32
  }
  func.func @transform_6(%arg0: i32) -> (i32, i32) {
    %c0_i32 = arith.constant 0 : i32
    %c0_i32_0 = arith.constant 0 : i32
    %c0_i32_1 = arith.constant 0 : i32
    return %c0_i32, %c0_i32_0 : i32, i32
  }
  func.func @transform_7(%arg0: i32) -> (i32, i32) {
    %c0_i32 = arith.constant 0 : i32
    %c0_i32_0 = arith.constant 0 : i32
    %c0_i32_1 = arith.constant 0 : i32
    return %c0_i32, %c0_i32_0 : i32, i32
  }
  func.func @transform_8(%arg0: i32) -> (i32, i32, i32) {
    %c0_i32 = arith.constant 0 : i32
    %c0_i32_0 = arith.constant 0 : i32
    %c0_i32_1 = arith.constant 0 : i32
    %c0_i32_2 = arith.constant 0 : i32
    return %c0_i32, %c0_i32_0, %c0_i32_1 : i32, i32, i32
  }
  func.func @transform_9(%arg0: i32) -> (i32, i32, i32) {
    %c0_i32 = arith.constant 0 : i32
    %c0_i32_0 = arith.constant 0 : i32
    %c0_i32_1 = arith.constant 0 : i32
    %c0_i32_2 = arith.constant 0 : i32
    return %c0_i32, %c0_i32_0, %c0_i32_1 : i32, i32, i32
  }
  func.func @transform_10(%arg0: i32) -> (i32, i32, i32) {
    %c0_i32 = arith.constant 0 : i32
    %c0_i32_0 = arith.constant 0 : i32
    %c0_i32_1 = arith.constant 0 : i32
    %c0_i32_2 = arith.constant 0 : i32
    return %c0_i32, %c0_i32_0, %c0_i32_1 : i32, i32, i32
  }
  func.func @transform_11(%arg0: i32) -> (i32, i32, i32) {
    %c0_i32 = arith.constant 0 : i32
    %c0_i32_0 = arith.constant 0 : i32
    %c0_i32_1 = arith.constant 0 : i32
    %c0_i32_2 = arith.constant 0 : i32
    return %c0_i32, %c0_i32_0, %c0_i32_1 : i32, i32, i32
  }
  func.func @transform_12(%arg0: i32) -> (i32, i32, i32) {
    %c0_i32 = arith.constant 0 : i32
    %c0_i32_0 = arith.constant 0 : i32
    %c0_i32_1 = arith.constant 0 : i32
    %c0_i32_2 = arith.constant 0 : i32
    return %c0_i32, %c0_i32_0, %c0_i32_1 : i32, i32, i32
  }
  func.func @transform_13(%arg0: i32) -> (i32, i32, i32) {
    %c0_i32 = arith.constant 0 : i32
    %c0_i32_0 = arith.constant 0 : i32
    %c0_i32_1 = arith.constant 0 : i32
    %c0_i32_2 = arith.constant 0 : i32
    return %c0_i32, %c0_i32_0, %c0_i32_1 : i32, i32, i32
  }
  func.func @transform_14(%arg0: i32) -> (i32, i32, i32) {
    %c0_i32 = arith.constant 0 : i32
    %c0_i32_0 = arith.constant 0 : i32
    %c0_i32_1 = arith.constant 0 : i32
    %c0_i32_2 = arith.constant 0 : i32
    return %c0_i32, %c0_i32_0, %c0_i32_1 : i32, i32, i32
  }
  func.func @transform_15(%arg0: i32) -> (i32, i32, i32) {
    %c0_i32 = arith.constant 0 : i32
    %c0_i32_0 = arith.constant 0 : i32
    %c0_i32_1 = arith.constant 0 : i32
    %c0_i32_2 = arith.constant 0 : i32
    return %c0_i32, %c0_i32_0, %c0_i32_1 : i32, i32, i32
  }
  func.func @transform_16(%arg0: i32) -> (i32, i32, i32) {
    %c0_i32 = arith.constant 0 : i32
    %c0_i32_0 = arith.constant 0 : i32
    %c0_i32_1 = arith.constant 0 : i32
    %c0_i32_2 = arith.constant 0 : i32
    return %c0_i32, %c0_i32_0, %c0_i32_1 : i32, i32, i32
  }
  func.func @transform_17(%arg0: i32) -> (i32, i32, i32) {
    %c0_i32 = arith.constant 0 : i32
    %c0_i32_0 = arith.constant 0 : i32
    %c0_i32_1 = arith.constant 0 : i32
    %c0_i32_2 = arith.constant 0 : i32
    return %c0_i32, %c0_i32_0, %c0_i32_1 : i32, i32, i32
  }
  func.func @transform_18(%arg0: i32) -> (i32, i32, i32) {
    %c0_i32 = arith.constant 0 : i32
    %c0_i32_0 = arith.constant 0 : i32
    %c0_i32_1 = arith.constant 0 : i32
    %c0_i32_2 = arith.constant 0 : i32
    return %c0_i32, %c0_i32_0, %c0_i32_1 : i32, i32, i32
  }
  func.func @transform_19(%arg0: i32) -> (i32, i32, i32) {
    %c0_i32 = arith.constant 0 : i32
    %c0_i32_0 = arith.constant 0 : i32
    %c0_i32_1 = arith.constant 0 : i32
    %c0_i32_2 = arith.constant 0 : i32
    return %c0_i32, %c0_i32_0, %c0_i32_1 : i32, i32, i32
  }
  func.func @transform_20(%arg0: i32) -> (i32, i32) {
    %c0_i32 = arith.constant 0 : i32
    %c0_i32_0 = arith.constant 0 : i32
    %c0_i32_1 = arith.constant 0 : i32
    return %c0_i32, %c0_i32_0 : i32, i32
  }
  func.func @transform_21(%arg0: i32) -> (i32, i32) {
    %c0_i32 = arith.constant 0 : i32
    %c0_i32_0 = arith.constant 0 : i32
    %c0_i32_1 = arith.constant 0 : i32
    return %c0_i32, %c0_i32_0 : i32, i32
  }
  func.func @transform_22(%arg0: i32) -> (i32, i32) {
    %c0_i32 = arith.constant 0 : i32
    %c0_i32_0 = arith.constant 0 : i32
    %c0_i32_1 = arith.constant 0 : i32
    return %c0_i32, %c0_i32_0 : i32, i32
  }
  func.func @transform_23(%arg0: i32) -> (i32, i32) {
    %c0_i32 = arith.constant 0 : i32
    %c0_i32_0 = arith.constant 0 : i32
    %c0_i32_1 = arith.constant 0 : i32
    return %c0_i32, %c0_i32_0 : i32, i32
  }
  func.func @transform_24(%arg0: i32) -> (i32, i32) {
    %c0_i32 = arith.constant 0 : i32
    %c0_i32_0 = arith.constant 0 : i32
    %c0_i32_1 = arith.constant 0 : i32
    return %c0_i32, %c0_i32_0 : i32, i32
  }
  func.func @transform_25(%arg0: i32) -> (i32, i32) {
    %c0_i32 = arith.constant 0 : i32
    %c0_i32_0 = arith.constant 0 : i32
    %c0_i32_1 = arith.constant 0 : i32
    return %c0_i32, %c0_i32_0 : i32, i32
  }
  func.func @transform_26(%arg0: i32) -> (i32, i32, i32) {
    %c0_i32 = arith.constant 0 : i32
    %c0_i32_0 = arith.constant 0 : i32
    %c0_i32_1 = arith.constant 0 : i32
    return %arg0, %c0_i32, %c0_i32_0 : i32, i32, i32
  }
}

</mosaic_0001>

<llo_original>
// kernel: mobilevit_block_v2.1
$region0: #{mobilevit_block_v2.1}
  #allocation0 [shape = 'u32[]', space=smem, size = 0x4, offset = 0x4, fixed_abs, tag = 'smem constant byte address 0x4 - core index']
  #allocation1 [shape = 'u32[144,128]{1,0:T(1,128)}', space=vmem, size = 0x12000, scoped, tag = 'internal scratch']
  %s0 = inlined_call_operand.vmem [shape: f32[2,4,290], index: 0, kind: input, shape index: {}]
  %s1 = inlined_call_operand.vmem [shape: f32[4,9], index: 1, kind: input, shape index: {}]
  %s2 = inlined_call_operand.vmem [shape: f32[4,1], index: 2, kind: input, shape index: {}]
  %s3 = inlined_call_operand.vmem [shape: f32[4,1], index: 3, kind: input, shape index: {}]
  %s4 = inlined_call_operand.vmem [shape: bf16[16,4], index: 4, kind: input, shape index: {}]
  %s5 = inlined_call_operand.vmem [shape: f32[16,1], index: 5, kind: input, shape index: {}]
  %s6 = inlined_call_operand.vmem [shape: f32[256,8], index: 6, kind: input, shape index: {}]
  %s7 = inlined_call_operand.vmem [shape: f32[8,256], index: 7, kind: input, shape index: {}]
  %s8 = inlined_call_operand.vmem [shape: f32[2,16,1], index: 8, kind: input, shape index: {}]
  %s9 = inlined_call_operand.vmem [shape: f32[2,16,1], index: 9, kind: input, shape index: {}]
  %s10 = inlined_call_operand.vmem [shape: bf16[2,40,16], index: 10, kind: input, shape index: {}]
  %s11 = inlined_call_operand.vmem [shape: f32[2,40,1], index: 11, kind: input, shape index: {}]
  %s12 = inlined_call_operand.vmem [shape: bf16[2,16,16], index: 12, kind: input, shape index: {}]
  %s13 = inlined_call_operand.vmem [shape: f32[2,16,1], index: 13, kind: input, shape index: {}]
  %s14 = inlined_call_operand.vmem [shape: f32[2,16,1], index: 14, kind: input, shape index: {}]
  %s15 = inlined_call_operand.vmem [shape: f32[2,16,1], index: 15, kind: input, shape index: {}]
  %s16 = inlined_call_operand.vmem [shape: bf16[2,32,16], index: 16, kind: input, shape index: {}]
  %s17 = inlined_call_operand.vmem [shape: f32[2,32,1], index: 17, kind: input, shape index: {}]
  %s18 = inlined_call_operand.vmem [shape: bf16[2,16,32], index: 18, kind: input, shape index: {}]
  %s19 = inlined_call_operand.vmem [shape: f32[2,16,1], index: 19, kind: input, shape index: {}]
  %s20 = inlined_call_operand.vmem [shape: f32[16,1], index: 20, kind: input, shape index: {}]
  %s21 = inlined_call_operand.vmem [shape: f32[16,1], index: 21, kind: input, shape index: {}]
  %s22 = inlined_call_operand.vmem [shape: bf16[4,16], index: 22, kind: input, shape index: {}]
  %s23 = inlined_call_operand.vmem [shape: f32[4,1], index: 23, kind: input, shape index: {}]
  %s24 = inlined_call_operand.vmem [shape: f32[4,1], index: 24, kind: input, shape index: {}]
  %s25 = inlined_call_operand.vmem [shape: f32[4,1], index: 25, kind: input, shape index: {}]
  %s26 = inlined_call_operand.vmem [shape: f32[2,4,256], index: 26, kind: output, shape index: {}]
  %s27 = sld [smem:[#allocation0]]
  $region137: #{mobilevit_block_v2.1} parent=0
    _
  %s29 = ssub.s32 1, %s27
  %s30 = scalar_select 0, %s29, %s27
  loop: start=0, step=1, limit=4
  $region2: #{mobilevit_block_v2.1} parent=0 // loop_pre_header
    _
  $region3: #{mobilevit_block_v2.1} parent=0 // loop_header
    %s32 = sphi 0, %s36
    %p33 = scmp.ge.s32.totalorder %s32, 4
    %s42 = sphi 0, %s44
    %s45 = sphi 0, %s42
    %s46 = sphi 0, %s45
    %s62 = sphi 0, %s46
    %s66 = sphi 0, %s66
    %s68 = sphi 0, %s66
    %s69 = sphi 0, %s68
    %s83 = sphi 0, %s69
    %s87 = sphi 0, %s87
    %s89 = sphi 0, %s87
    %s90 = sphi 0, %s89
    %s104 = sphi 0, %s90
    %s108 = sphi 0, %s108
    %s110 = sphi 0, %s108
    %s111 = sphi 0, %s110
    %s125 = sphi 0, %s111
    %s129 = sphi 0, %s129
    %s131 = sphi 0, %s129
    %s132 = sphi 0, %s131
    %s146 = sphi 0, %s132
    %s150 = sphi 0, %s150
    %s152 = sphi 0, %s150
    %s153 = sphi 0, %s152
    %s167 = sphi 0, %s153
    %s171 = sphi 0, %s171
    %s173 = sphi 0, %s171
    %s174 = sphi 0, %s173
    %s188 = sphi 0, %s174
    %s192 = sphi 0, %s192
    %s194 = sphi 0, %s192
    %s195 = sphi 0, %s194
    %s209 = sphi 0, %s195
    %s213 = sphi 0, %s213
    %s215 = sphi 0, %s213
    %s216 = sphi 0, %s215
    %s230 = sphi 0, %s216
    %s234 = sphi 0, %s234
    %s236 = sphi 0, %s234
    %s237 = sphi 0, %s236
    %s251 = sphi 0, %s237
    %s255 = sphi 0, %s255
    %s257 = sphi 0, %s255
    %s258 = sphi 0, %s257
    %s272 = sphi 0, %s258
    %s276 = sphi 0, %s276
    %s278 = sphi 0, %s276
    %s279 = sphi 0, %s278
    %s293 = sphi 0, %s279
    %s297 = sphi 0, %s297
    %s299 = sphi 0, %s297
    %s300 = sphi 0, %s299
    %s314 = sphi 0, %s300
    %s318 = sphi 0, %s318
    %s320 = sphi 0, %s318
    %s321 = sphi 0, %s320
    %s335 = sphi 0, %s321
    %s339 = sphi 0, %s339
    %s341 = sphi 0, %s339
    %s342 = sphi 0, %s341
    %s356 = sphi 0, %s342
    %s360 = sphi 0, %s360
    %s362 = sphi 0, %s360
    %s363 = sphi 0, %s362
    %s377 = sphi 0, %s363
    %s381 = sphi 0, %s381
    %s383 = sphi 0, %s381
    %s384 = sphi 0, %s383
    %s398 = sphi 0, %s384
    %s402 = sphi 0, %s402
    %s404 = sphi 0, %s402
    %s405 = sphi 0, %s404
    %s419 = sphi 0, %s405
    %s423 = sphi 0, %s423
    %s425 = sphi 0, %s423
    %s426 = sphi 0, %s425
    %s440 = sphi 0, %s426
    %s444 = sphi 0, %s444
    %s446 = sphi 0, %s444
    %s447 = sphi 0, %s446
    %s461 = sphi 0, %s447
    %s465 = sphi 0, %s465
    %s467 = sphi 0, %s465
    %s468 = sphi 0, %s467
    %s482 = sphi 0, %s468
    %s486 = sphi 0, %s486
    %s488 = sphi 0, %s486
    %s489 = sphi 0, %s488
    %s503 = sphi 0, %s489
    %s507 = sphi 0, %s507
    %s509 = sphi 0, %s507
    %s510 = sphi 0, %s509
    %s524 = sphi 0, %s510
    %s528 = sphi 0, %s528
    %s530 = sphi 0, %s528
    %s531 = sphi 0, %s530
    %s545 = sphi 0, %s531
    %s549 = sphi 0, %s549
    %s551 = sphi 0, %s549
    %s552 = sphi 0, %s551
    %s566 = sphi 0, %s552
    %s570 = sphi 0, %s570
    %s572 = sphi 0, %s570
    %s573 = sphi 0, %s572
    %s587 = sphi 0, %s573
    %s593 = sphi 0, %s595
    %s596 = sphi 0, %s593
    %s597 = sphi 0, %s596
    %s613 = sphi 0, %s597
  $region4: #{mobilevit_block_v2.1} parent=0 // loop_header_branch
    %35 = sbr.rel (%p33) target = $region8
  $region5: #{mobilevit_block_v2.1} parent=0 // loop_body
    %s37 = ssub.s32 %s32, 1
    %s38 = ssub.s32 %s32, 2
    %s39 = sadd.s32 %s32, 1
    %s40 = ssub.s32 %s32, %s39
    %p41 = scmp.eq.s32.totalorder %s40, 0
    %s43 = sadd.s32 %s42, 1
    %s44 = scalar_select %p41, %s42, %s43
    %p47 = pneg %p41
    %p48 = scmp.eq.s32.totalorder %s32, 1
    %p49 = por %p47, %p48
    %p50 = scmp.ne.s32.totalorder %s42, %s45
    %p51 = scmp.eq.s32.totalorder %s32, 0
    %p52 = por %p50, %p51
    %p53 = scmp.ne.s32.totalorder %s42, %s45
    %p54 = scmp.eq.s32.totalorder %s37, 1
    %p55 = por %p53, %p54
    %p56 = scmp.ne.s32.totalorder %s45, %s46
    %p57 = scmp.eq.s32.totalorder %s37, 0
    %p58 = por %p56, %p57
    %p59 = scmp.ne.s32.totalorder %s45, %s46
    %p60 = scmp.eq.s32.totalorder %s38, 1
    %p61 = por %p59, %p60
    %p63 = scmp.ne.s32.totalorder %s46, %s62
    %p64 = scmp.eq.s32.totalorder %s38, 0
    %p65 = por %p63, %p64
    %s67 = sadd.s32 %s66, 1
    %p70 = scmp.eq.s32.totalorder %s32, 1
    %p71 = scmp.ne.s32.totalorder %s66, %s68
    %p72 = scmp.eq.s32.totalorder %s32, 0
    %p73 = por %p71, %p72
    %p74 = scmp.ne.s32.totalorder %s66, %s68
    %p75 = scmp.eq.s32.totalorder %s37, 1
    %p76 = por %p74, %p75
    %p77 = scmp.ne.s32.totalorder %s68, %s69
    %p78 = scmp.eq.s32.totalorder %s37, 0
    %p79 = por %p77, %p78
    %p80 = scmp.ne.s32.totalorder %s68, %s69
    %p81 = scmp.eq.s32.totalorder %s38, 1
    %p82 = por %p80, %p81
    %p84 = scmp.ne.s32.totalorder %s69, %s83
    %p85 = scmp.eq.s32.totalorder %s38, 0
    %p86 = por %p84, %p85
    %s88 = sadd.s32 %s87, 1
    %p91 = scmp.eq.s32.totalorder %s32, 1
    %p92 = scmp.ne.s32.totalorder %s87, %s89
    %p93 = scmp.eq.s32.totalorder %s32, 0
    %p94 = por %p92, %p93
    %p95 = scmp.ne.s32.totalorder %s87, %s89
    %p96 = scmp.eq.s32.totalorder %s37, 1
    %p97 = por %p95, %p96
    %p98 = scmp.ne.s32.totalorder %s89, %s90
    %p99 = scmp.eq.s32.totalorder %s37, 0
    %p100 = por %p98, %p99
    %p101 = scmp.ne.s32.totalorder %s89, %s90
    %p102 = scmp.eq.s32.totalorder %s38, 1
    %p103 = por %p101, %p102
    %p105 = scmp.ne.s32.totalorder %s90, %s104
    %p106 = scmp.eq.s32.totalorder %s38, 0
    %p107 = por %p105, %p106
    %s109 = sadd.s32 %s108, 1
    %p112 = scmp.eq.s32.totalorder %s32, 1
    %p113 = scmp.ne.s32.totalorder %s108, %s110
    %p114 = scmp.eq.s32.totalorder %s32, 0
    %p115 = por %p113, %p114
    %p116 = scmp.ne.s32.totalorder %s108, %s110
    %p117 = scmp.eq.s32.totalorder %s37, 1
    %p118 = por %p116, %p117
    %p119 = scmp.ne.s32.totalorder %s110, %s111
    %p120 = scmp.eq.s32.totalorder %s37, 0
    %p121 = por %p119, %p120
    %p122 = scmp.ne.s32.totalorder %s110, %s111
    %p123 = scmp.eq.s32.totalorder %s38, 1
    %p124 = por %p122, %p123
    %p126 = scmp.ne.s32.totalorder %s111, %s125
    %p127 = scmp.eq.s32.totalorder %s38, 0
    %p128 = por %p126, %p127
    %s130 = sadd.s32 %s129, 1
    %p133 = scmp.eq.s32.totalorder %s32, 1
    %p134 = scmp.ne.s32.totalorder %s129, %s131
    %p135 = scmp.eq.s32.totalorder %s32, 0
    %p136 = por %p134, %p135
    %p137 = scmp.ne.s32.totalorder %s129, %s131
    %p138 = scmp.eq.s32.totalorder %s37, 1
    %p139 = por %p137, %p138
    %p140 = scmp.ne.s32.totalorder %s131, %s132
    %p141 = scmp.eq.s32.totalorder %s37, 0
    %p142 = por %p140, %p141
    %p143 = scmp.ne.s32.totalorder %s131, %s132
    %p144 = scmp.eq.s32.totalorder %s38, 1
    %p145 = por %p143, %p144
    %p147 = scmp.ne.s32.totalorder %s132, %s146
    %p148 = scmp.eq.s32.totalorder %s38, 0
    %p149 = por %p147, %p148
    %s151 = sadd.s32 %s150, 1
    %p154 = scmp.eq.s32.totalorder %s32, 1
    %p155 = scmp.ne.s32.totalorder %s150, %s152
    %p156 = scmp.eq.s32.totalorder %s32, 0
    %p157 = por %p155, %p156
    %p158 = scmp.ne.s32.totalorder %s150, %s152
    %p159 = scmp.eq.s32.totalorder %s37, 1
    %p160 = por %p158, %p159
    %p161 = scmp.ne.s32.totalorder %s152, %s153
    %p162 = scmp.eq.s32.totalorder %s37, 0
    %p163 = por %p161, %p162
    %p164 = scmp.ne.s32.totalorder %s152, %s153
    %p165 = scmp.eq.s32.totalorder %s38, 1
    %p166 = por %p164, %p165
    %p168 = scmp.ne.s32.totalorder %s153, %s167
    %p169 = scmp.eq.s32.totalorder %s38, 0
    %p170 = por %p168, %p169
    %s172 = sadd.s32 %s171, 1
    %p175 = scmp.eq.s32.totalorder %s32, 1
    %p176 = scmp.ne.s32.totalorder %s171, %s173
    %p177 = scmp.eq.s32.totalorder %s32, 0
    %p178 = por %p176, %p177
    %p179 = scmp.ne.s32.totalorder %s171, %s173
    %p180 = scmp.eq.s32.totalorder %s37, 1
    %p181 = por %p179, %p180
    %p182 = scmp.ne.s32.totalorder %s173, %s174
    %p183 = scmp.eq.s32.totalorder %s37, 0
    %p184 = por %p182, %p183
    %p185 = scmp.ne.s32.totalorder %s173, %s174
    %p186 = scmp.eq.s32.totalorder %s38, 1
    %p187 = por %p185, %p186
    %p189 = scmp.ne.s32.totalorder %s174, %s188
    %p190 = scmp.eq.s32.totalorder %s38, 0
    %p191 = por %p189, %p190
    %s193 = sadd.s32 %s192, 1
    %p196 = scmp.eq.s32.totalorder %s32, 1
    %p197 = scmp.ne.s32.totalorder %s192, %s194
    %p198 = scmp.eq.s32.totalorder %s32, 0
    %p199 = por %p197, %p198
    %p200 = scmp.ne.s32.totalorder %s192, %s194
    %p201 = scmp.eq.s32.totalorder %s37, 1
    %p202 = por %p200, %p201
    %p203 = scmp.ne.s32.totalorder %s194, %s195
    %p204 = scmp.eq.s32.totalorder %s37, 0
    %p205 = por %p203, %p204
    %p206 = scmp.ne.s32.totalorder %s194, %s195
    %p207 = scmp.eq.s32.totalorder %s38, 1
    %p208 = por %p206, %p207
    %p210 = scmp.ne.s32.totalorder %s195, %s209
    %p211 = scmp.eq.s32.totalorder %s38, 0
    %p212 = por %p210, %p211
    %s214 = sadd.s32 %s213, 1
    %p217 = scmp.eq.s32.totalorder %s32, 1
    %p218 = scmp.ne.s32.totalorder %s213, %s215
    %p219 = scmp.eq.s32.totalorder %s32, 0
    %p220 = por %p218, %p219
    %p221 = scmp.ne.s32.totalorder %s213, %s215
    %p222 = scmp.eq.s32.totalorder %s37, 1
    %p223 = por %p221, %p222
    %p224 = scmp.ne.s32.totalorder %s215, %s216
    %p225 = scmp.eq.s32.totalorder %s37, 0
    %p226 = por %p224, %p225
    %p227 = scmp.ne.s32.totalorder %s215, %s216
    %p228 = scmp.eq.s32.totalorder %s38, 1
    %p229 = por %p227, %p228
    %p231 = scmp.ne.s32.totalorder %s216, %s230
    %p232 = scmp.eq.s32.totalorder %s38, 0
    %p233 = por %p231, %p232
    %s235 = sadd.s32 %s234, 1
    %p238 = scmp.eq.s32.totalorder %s32, 1
    %p239 = scmp.ne.s32.totalorder %s234, %s236
    %p240 = scmp.eq.s32.totalorder %s32, 0
    %p241 = por %p239, %p240
    %p242 = scmp.ne.s32.totalorder %s234, %s236
    %p243 = scmp.eq.s32.totalorder %s37, 1
    %p244 = por %p242, %p243
    %p245 = scmp.ne.s32.totalorder %s236, %s237
    %p246 = scmp.eq.s32.totalorder %s37, 0
    %p247 = por %p245, %p246
    %p248 = scmp.ne.s32.totalorder %s236, %s237
    %p249 = scmp.eq.s32.totalorder %s38, 1
    %p250 = por %p248, %p249
    %p252 = scmp.ne.s32.totalorder %s237, %s251
    %p253 = scmp.eq.s32.totalorder %s38, 0
    %p254 = por %p252, %p253
    %s256 = sadd.s32 %s255, 1
    %p259 = scmp.eq.s32.totalorder %s32, 1
    %p260 = scmp.ne.s32.totalorder %s255, %s257
    %p261 = scmp.eq.s32.totalorder %s32, 0
    %p262 = por %p260, %p261
    %p263 = scmp.ne.s32.totalorder %s255, %s257
    %p264 = scmp.eq.s32.totalorder %s37, 1
    %p265 = por %p263, %p264
    %p266 = scmp.ne.s32.totalorder %s257, %s258
    %p267 = scmp.eq.s32.totalorder %s37, 0
    %p268 = por %p266, %p267
    %p269 = scmp.ne.s32.totalorder %s257, %s258
    %p270 = scmp.eq.s32.totalorder %s38, 1
    %p271 = por %p269, %p270
    %p273 = scmp.ne.s32.totalorder %s258, %s272
    %p274 = scmp.eq.s32.totalorder %s38, 0
    %p275 = por %p273, %p274
    %s277 = sadd.s32 %s276, 1
    %p280 = scmp.eq.s32.totalorder %s32, 1
    %p281 = scmp.ne.s32.totalorder %s276, %s278
    %p282 = scmp.eq.s32.totalorder %s32, 0
    %p283 = por %p281, %p282
    %p284 = scmp.ne.s32.totalorder %s276, %s278
    %p285 = scmp.eq.s32.totalorder %s37, 1
    %p286 = por %p284, %p285
    %p287 = scmp.ne.s32.totalorder %s278, %s279
    %p288 = scmp.eq.s32.totalorder %s37, 0
    %p289 = por %p287, %p288
    %p290 = scmp.ne.s32.totalorder %s278, %s279
    %p291 = scmp.eq.s32.totalorder %s38, 1
    %p292 = por %p290, %p291
    %p294 = scmp.ne.s32.totalorder %s279, %s293
    %p295 = scmp.eq.s32.totalorder %s38, 0
    %p296 = por %p294, %p295
    %s298 = sadd.s32 %s297, 1
    %p301 = scmp.eq.s32.totalorder %s32, 1
    %p302 = scmp.ne.s32.totalorder %s297, %s299
    %p303 = scmp.eq.s32.totalorder %s32, 0
    %p304 = por %p302, %p303
    %p305 = scmp.ne.s32.totalorder %s297, %s299
    %p306 = scmp.eq.s32.totalorder %s37, 1
    %p307 = por %p305, %p306
    %p308 = scmp.ne.s32.totalorder %s299, %s300
    %p309 = scmp.eq.s32.totalorder %s37, 0
    %p310 = por %p308, %p309
    %p311 = scmp.ne.s32.totalorder %s299, %s300
    %p312 = scmp.eq.s32.totalorder %s38, 1
    %p313 = por %p311, %p312
    %p315 = scmp.ne.s32.totalorder %s300, %s314
    %p316 = scmp.eq.s32.totalorder %s38, 0
    %p317 = por %p315, %p316
    %s319 = sadd.s32 %s318, 1
    %p322 = scmp.eq.s32.totalorder %s32, 1
    %p323 = scmp.ne.s32.totalorder %s318, %s320
    %p324 = scmp.eq.s32.totalorder %s32, 0
    %p325 = por %p323, %p324
    %p326 = scmp.ne.s32.totalorder %s318, %s320
    %p327 = scmp.eq.s32.totalorder %s37, 1
    %p328 = por %p326, %p327
    %p329 = scmp.ne.s32.totalorder %s320, %s321
    %p330 = scmp.eq.s32.totalorder %s37, 0
    %p331 = por %p329, %p330
    %p332 = scmp.ne.s32.totalorder %s320, %s321
    %p333 = scmp.eq.s32.totalorder %s38, 1
    %p334 = por %p332, %p333
    %p336 = scmp.ne.s32.totalorder %s321, %s335
    %p337 = scmp.eq.s32.totalorder %s38, 0
    %p338 = por %p336, %p337
    %s340 = sadd.s32 %s339, 1
    %p343 = scmp.eq.s32.totalorder %s32, 1
    %p344 = scmp.ne.s32.totalorder %s339, %s341
    %p345 = scmp.eq.s32.totalorder %s32, 0
    %p346 = por %p344, %p345
    %p347 = scmp.ne.s32.totalorder %s339, %s341
    %p348 = scmp.eq.s32.totalorder %s37, 1
    %p349 = por %p347, %p348
    %p350 = scmp.ne.s32.totalorder %s341, %s342
    %p351 = scmp.eq.s32.totalorder %s37, 0
    %p352 = por %p350, %p351
    %p353 = scmp.ne.s32.totalorder %s341, %s342
    %p354 = scmp.eq.s32.totalorder %s38, 1
    %p355 = por %p353, %p354
    %p357 = scmp.ne.s32.totalorder %s342, %s356
    %p358 = scmp.eq.s32.totalorder %s38, 0
    %p359 = por %p357, %p358
    %s361 = sadd.s32 %s360, 1
    %p364 = scmp.eq.s32.totalorder %s32, 1
    %p365 = scmp.ne.s32.totalorder %s360, %s362
    %p366 = scmp.eq.s32.totalorder %s32, 0
    %p367 = por %p365, %p366
    %p368 = scmp.ne.s32.totalorder %s360, %s362
    %p369 = scmp.eq.s32.totalorder %s37, 1
    %p370 = por %p368, %p369
    %p371 = scmp.ne.s32.totalorder %s362, %s363
    %p372 = scmp.eq.s32.totalorder %s37, 0
    %p373 = por %p371, %p372
    %p374 = scmp.ne.s32.totalorder %s362, %s363
    %p375 = scmp.eq.s32.totalorder %s38, 1
    %p376 = por %p374, %p375
    %p378 = scmp.ne.s32.totalorder %s363, %s377
    %p379 = scmp.eq.s32.totalorder %s38, 0
    %p380 = por %p378, %p379
    %s382 = sadd.s32 %s381, 1
    %p385 = scmp.eq.s32.totalorder %s32, 1
    %p386 = scmp.ne.s32.totalorder %s381, %s383
    %p387 = scmp.eq.s32.totalorder %s32, 0
    %p388 = por %p386, %p387
    %p389 = scmp.ne.s32.totalorder %s381, %s383
    %p390 = scmp.eq.s32.totalorder %s37, 1
    %p391 = por %p389, %p390
    %p392 = scmp.ne.s32.totalorder %s383, %s384
    %p393 = scmp.eq.s32.totalorder %s37, 0
    %p394 = por %p392, %p393
    %p395 = scmp.ne.s32.totalorder %s383, %s384
    %p396 = scmp.eq.s32.totalorder %s38, 1
    %p397 = por %p395, %p396
    %p399 = scmp.ne.s32.totalorder %s384, %s398
    %p400 = scmp.eq.s32.totalorder %s38, 0
    %p401 = por %p399, %p400
    %s403 = sadd.s32 %s402, 1
    %p406 = scmp.eq.s32.totalorder %s32, 1
    %p407 = scmp.ne.s32.totalorder %s402, %s404
    %p408 = scmp.eq.s32.totalorder %s32, 0
    %p409 = por %p407, %p408
    %p410 = scmp.ne.s32.totalorder %s402, %s404
    %p411 = scmp.eq.s32.totalorder %s37, 1
    %p412 = por %p410, %p411
    %p413 = scmp.ne.s32.totalorder %s404, %s405
    %p414 = scmp.eq.s32.totalorder %s37, 0
    %p415 = por %p413, %p414
    %p416 = scmp.ne.s32.totalorder %s404, %s405
    %p417 = scmp.eq.s32.totalorder %s38, 1
    %p418 = por %p416, %p417
    %p420 = scmp.ne.s32.totalorder %s405, %s419
    %p421 = scmp.eq.s32.totalorder %s38, 0
    %p422 = por %p420, %p421
    %s424 = sadd.s32 %s423, 1
    %p427 = scmp.eq.s32.totalorder %s32, 1
    %p428 = scmp.ne.s32.totalorder %s423, %s425
    %p429 = scmp.eq.s32.totalorder %s32, 0
    %p430 = por %p428, %p429
    %p431 = scmp.ne.s32.totalorder %s423, %s425
    %p432 = scmp.eq.s32.totalorder %s37, 1
    %p433 = por %p431, %p432
    %p434 = scmp.ne.s32.totalorder %s425, %s426
    %p435 = scmp.eq.s32.totalorder %s37, 0
    %p436 = por %p434, %p435
    %p437 = scmp.ne.s32.totalorder %s425, %s426
    %p438 = scmp.eq.s32.totalorder %s38, 1
    %p439 = por %p437, %p438
    %p441 = scmp.ne.s32.totalorder %s426, %s440
    %p442 = scmp.eq.s32.totalorder %s38, 0
    %p443 = por %p441, %p442
    %s445 = sadd.s32 %s444, 1
    %p448 = scmp.eq.s32.totalorder %s32, 1
    %p449 = scmp.ne.s32.totalorder %s444, %s446
    %p450 = scmp.eq.s32.totalorder %s32, 0
    %p451 = por %p449, %p450
    %p452 = scmp.ne.s32.totalorder %s444, %s446
    %p453 = scmp.eq.s32.totalorder %s37, 1
    %p454 = por %p452, %p453
    %p455 = scmp.ne.s32.totalorder %s446, %s447
    %p456 = scmp.eq.s32.totalorder %s37, 0
    %p457 = por %p455, %p456
    %p458 = scmp.ne.s32.totalorder %s446, %s447
    %p459 = scmp.eq.s32.totalorder %s38, 1
    %p460 = por %p458, %p459
    %p462 = scmp.ne.s32.totalorder %s447, %s461
    %p463 = scmp.eq.s32.totalorder %s38, 0
    %p464 = por %p462, %p463
    %s466 = sadd.s32 %s465, 1
    %p469 = scmp.eq.s32.totalorder %s32, 1
    %p470 = scmp.ne.s32.totalorder %s465, %s467
    %p471 = scmp.eq.s32.totalorder %s32, 0
    %p472 = por %p470, %p471
    %p473 = scmp.ne.s32.totalorder %s465, %s467
    %p474 = scmp.eq.s32.totalorder %s37, 1
    %p475 = por %p473, %p474
    %p476 = scmp.ne.s32.totalorder %s467, %s468
    %p477 = scmp.eq.s32.totalorder %s37, 0
    %p478 = por %p476, %p477
    %p479 = scmp.ne.s32.totalorder %s467, %s468
    %p480 = scmp.eq.s32.totalorder %s38, 1
    %p481 = por %p479, %p480
    %p483 = scmp.ne.s32.totalorder %s468, %s482
    %p484 = scmp.eq.s32.totalorder %s38, 0
    %p485 = por %p483, %p484
    %s487 = sadd.s32 %s486, 1
    %p490 = scmp.eq.s32.totalorder %s32, 1
    %p491 = scmp.ne.s32.totalorder %s486, %s488
    %p492 = scmp.eq.s32.totalorder %s32, 0
    %p493 = por %p491, %p492
    %p494 = scmp.ne.s32.totalorder %s486, %s488
    %p495 = scmp.eq.s32.totalorder %s37, 1
    %p496 = por %p494, %p495
    %p497 = scmp.ne.s32.totalorder %s488, %s489
    %p498 = scmp.eq.s32.totalorder %s37, 0
    %p499 = por %p497, %p498
    %p500 = scmp.ne.s32.totalorder %s488, %s489
    %p501 = scmp.eq.s32.totalorder %s38, 1
    %p502 = por %p500, %p501
    %p504 = scmp.ne.s32.totalorder %s489, %s503
    %p505 = scmp.eq.s32.totalorder %s38, 0
    %p506 = por %p504, %p505
    %s508 = sadd.s32 %s507, 1
    %p511 = scmp.eq.s32.totalorder %s32, 1
    %p512 = scmp.ne.s32.totalorder %s507, %s509
    %p513 = scmp.eq.s32.totalorder %s32, 0
    %p514 = por %p512, %p513
    %p515 = scmp.ne.s32.totalorder %s507, %s509
    %p516 = scmp.eq.s32.totalorder %s37, 1
    %p517 = por %p515, %p516
    %p518 = scmp.ne.s32.totalorder %s509, %s510
    %p519 = scmp.eq.s32.totalorder %s37, 0
    %p520 = por %p518, %p519
    %p521 = scmp.ne.s32.totalorder %s509, %s510
    %p522 = scmp.eq.s32.totalorder %s38, 1
    %p523 = por %p521, %p522
    %p525 = scmp.ne.s32.totalorder %s510, %s524
    %p526 = scmp.eq.s32.totalorder %s38, 0
    %p527 = por %p525, %p526
    %s529 = sadd.s32 %s528, 1
    %p532 = scmp.eq.s32.totalorder %s32, 1
    %p533 = scmp.ne.s32.totalorder %s528, %s530
    %p534 = scmp.eq.s32.totalorder %s32, 0
    %p535 = por %p533, %p534
    %p536 = scmp.ne.s32.totalorder %s528, %s530
    %p537 = scmp.eq.s32.totalorder %s37, 1
    %p538 = por %p536, %p537
    %p539 = scmp.ne.s32.totalorder %s530, %s531
    %p540 = scmp.eq.s32.totalorder %s37, 0
    %p541 = por %p539, %p540
    %p542 = scmp.ne.s32.totalorder %s530, %s531
    %p543 = scmp.eq.s32.totalorder %s38, 1
    %p544 = por %p542, %p543
    %p546 = scmp.ne.s32.totalorder %s531, %s545
    %p547 = scmp.eq.s32.totalorder %s38, 0
    %p548 = por %p546, %p547
    %s550 = sadd.s32 %s549, 1
    %p553 = scmp.eq.s32.totalorder %s32, 1
    %p554 = scmp.ne.s32.totalorder %s549, %s551
    %p555 = scmp.eq.s32.totalorder %s32, 0
    %p556 = por %p554, %p555
    %p557 = scmp.ne.s32.totalorder %s549, %s551
    %p558 = scmp.eq.s32.totalorder %s37, 1
    %p559 = por %p557, %p558
    %p560 = scmp.ne.s32.totalorder %s551, %s552
    %p561 = scmp.eq.s32.totalorder %s37, 0
    %p562 = por %p560, %p561
    %p563 = scmp.ne.s32.totalorder %s551, %s552
    %p564 = scmp.eq.s32.totalorder %s38, 1
    %p565 = por %p563, %p564
    %p567 = scmp.ne.s32.totalorder %s552, %s566
    %p568 = scmp.eq.s32.totalorder %s38, 0
    %p569 = por %p567, %p568
    %s571 = sadd.s32 %s570, 1
    %p574 = scmp.eq.s32.totalorder %s32, 1
    %p575 = scmp.ne.s32.totalorder %s570, %s572
    %p576 = scmp.eq.s32.totalorder %s32, 0
    %p577 = por %p575, %p576
    %p578 = scmp.ne.s32.totalorder %s570, %s572
    %p579 = scmp.eq.s32.totalorder %s37, 1
    %p580 = por %p578, %p579
    %p581 = scmp.ne.s32.totalorder %s572, %s573
    %p582 = scmp.eq.s32.totalorder %s37, 0
    %p583 = por %p581, %p582
    %p584 = scmp.ne.s32.totalorder %s572, %s573
    %p585 = scmp.eq.s32.totalorder %s38, 1
    %p586 = por %p584, %p585
    %p588 = scmp.ne.s32.totalorder %s573, %s587
    %p589 = scmp.eq.s32.totalorder %s38, 0
    %p590 = por %p588, %p589
    %s591 = ssub.s32 %s32, %s39
    %p592 = scmp.eq.s32.totalorder %s591, 0
    %s594 = sadd.s32 %s593, 1
    %s595 = scalar_select %p592, %s593, %s594
    %p598 = pneg %p592
    %p599 = scmp.eq.s32.totalorder %s32, 1
    %p600 = por %p598, %p599
    %p601 = scmp.ne.s32.totalorder %s593, %s596
    %p602 = scmp.eq.s32.totalorder %s32, 0
    %p603 = por %p601, %p602
    %p604 = scmp.ne.s32.totalorder %s593, %s596
    %p605 = scmp.eq.s32.totalorder %s37, 1
    %p606 = por %p604, %p605
    %p607 = scmp.ne.s32.totalorder %s596, %s597
    %p608 = scmp.eq.s32.totalorder %s37, 0
    %p609 = por %p607, %p608
    %p610 = scmp.ne.s32.totalorder %s596, %s597
    %p611 = scmp.eq.s32.totalorder %s38, 1
    %p612 = por %p610, %p611
    %p614 = scmp.ne.s32.totalorder %s597, %s613
    %p615 = scmp.eq.s32.totalorder %s38, 0
    %p616 = por %p614, %p615
    %p617 = scmp.le.s32.totalorder 1, %s32
    %p618 = scmp.lt.s32.totalorder %s32, 3
    %p619 = pnand %p617, %p618
    %p620 = pneg %p619
    // Predicated region
    $region9: #{mobilevit_block_v2.1} parent=5 // pred_check
      _
    $region10: #{mobilevit_block_v2.1} parent=5 // pred_check_branch
      %622 = sbr.rel (%p619) target = $region12
    $region11: #{mobilevit_block_v2.1} parent=5 // pred_region
      %s623 = ssub.s32 %s32, 1
      // Predicated region
      $region13: #{mobilevit_block_v2.1} parent=11 // pred_check
        %p624 = pneg %p79
      $region14: #{mobilevit_block_v2.1} parent=11 // pred_check_branch
        %626 = sbr.rel (%p624) target = $region16
      $region15: #{mobilevit_block_v2.1} parent=11 // pred_region
        _
      $region16: #{mobilevit_block_v2.1} parent=11 // pred_fallthru
        _
      // Predicated region
      $region17: #{mobilevit_block_v2.1} parent=11 // pred_check
        %p627 = pneg %p100
      $region18: #{mobilevit_block_v2.1} parent=11 // pred_check_branch
        %629 = sbr.rel (%p627) target = $region20
      $region19: #{mobilevit_block_v2.1} parent=11 // pred_region
        _
      $region20: #{mobilevit_block_v2.1} parent=11 // pred_fallthru
        _
      // Predicated region
      $region21: #{mobilevit_block_v2.1} parent=11 // pred_check
        %p630 = pneg %p121
      $region22: #{mobilevit_block_v2.1} parent=11 // pred_check_branch
        %632 = sbr.rel (%p630) target = $region24
      $region23: #{mobilevit_block_v2.1} parent=11 // pred_region
        _
      $region24: #{mobilevit_block_v2.1} parent=11 // pred_fallthru
        _
      // Predicated region
      $region25: #{mobilevit_block_v2.1} parent=11 // pred_check
        %p633 = pneg %p142
      $region26: #{mobilevit_block_v2.1} parent=11 // pred_check_branch
        %635 = sbr.rel (%p633) target = $region28
      $region27: #{mobilevit_block_v2.1} parent=11 // pred_region
        _
      $region28: #{mobilevit_block_v2.1} parent=11 // pred_fallthru
        _
      // Predicated region
      $region29: #{mobilevit_block_v2.1} parent=11 // pred_check
        %p636 = pneg %p163
      $region30: #{mobilevit_block_v2.1} parent=11 // pred_check_branch
        %638 = sbr.rel (%p636) target = $region32
      $region31: #{mobilevit_block_v2.1} parent=11 // pred_region
        _
      $region32: #{mobilevit_block_v2.1} parent=11 // pred_fallthru
        _
      // Predicated region
      $region33: #{mobilevit_block_v2.1} parent=11 // pred_check
        %p639 = pneg %p184
      $region34: #{mobilevit_block_v2.1} parent=11 // pred_check_branch
        %641 = sbr.rel (%p639) target = $region36
      $region35: #{mobilevit_block_v2.1} parent=11 // pred_region
        _
      $region36: #{mobilevit_block_v2.1} parent=11 // pred_fallthru
        _
      // Predicated region
      $region37: #{mobilevit_block_v2.1} parent=11 // pred_check
        %p642 = pneg %p205
      $region38: #{mobilevit_block_v2.1} parent=11 // pred_check_branch
        %644 = sbr.rel (%p642) target = $region40
      $region39: #{mobilevit_block_v2.1} parent=11 // pred_region
        _
      $region40: #{mobilevit_block_v2.1} parent=11 // pred_fallthru
        _
      // Predicated region
      $region41: #{mobilevit_block_v2.1} parent=11 // pred_check
        %p645 = pneg %p226
      $region42: #{mobilevit_block_v2.1} parent=11 // pred_check_branch
        %647 = sbr.rel (%p645) target = $region44
      $region43: #{mobilevit_block_v2.1} parent=11 // pred_region
        _
      $region44: #{mobilevit_block_v2.1} parent=11 // pred_fallthru
        _
      // Predicated region
      $region45: #{mobilevit_block_v2.1} parent=11 // pred_check
        %p648 = pneg %p247
      $region46: #{mobilevit_block_v2.1} parent=11 // pred_check_branch
        %650 = sbr.rel (%p648) target = $region48
      $region47: #{mobilevit_block_v2.1} parent=11 // pred_region
        _
      $region48: #{mobilevit_block_v2.1} parent=11 // pred_fallthru
        _
      // Predicated region
      $region49: #{mobilevit_block_v2.1} parent=11 // pred_check
        %p651 = pneg %p268
      $region50: #{mobilevit_block_v2.1} parent=11 // pred_check_branch
        %653 = sbr.rel (%p651) target = $region52
      $region51: #{mobilevit_block_v2.1} parent=11 // pred_region
        _
      $region52: #{mobilevit_block_v2.1} parent=11 // pred_fallthru
        _
      // Predicated region
      $region53: #{mobilevit_block_v2.1} parent=11 // pred_check
        %p654 = pneg %p289
      $region54: #{mobilevit_block_v2.1} parent=11 // pred_check_branch
        %656 = sbr.rel (%p654) target = $region56
      $region55: #{mobilevit_block_v2.1} parent=11 // pred_region
        _
      $region56: #{mobilevit_block_v2.1} parent=11 // pred_fallthru
        _
      // Predicated region
      $region57: #{mobilevit_block_v2.1} parent=11 // pred_check
        %p657 = pneg %p310
      $region58: #{mobilevit_block_v2.1} parent=11 // pred_check_branch
        %659 = sbr.rel (%p657) target = $region60
      $region59: #{mobilevit_block_v2.1} parent=11 // pred_region
        _
      $region60: #{mobilevit_block_v2.1} parent=11 // pred_fallthru
        _
      // Predicated region
      $region61: #{mobilevit_block_v2.1} parent=11 // pred_check
        %p660 = pneg %p331
      $region62: #{mobilevit_block_v2.1} parent=11 // pred_check_branch
        %662 = sbr.rel (%p660) target = $region64
      $region63: #{mobilevit_block_v2.1} parent=11 // pred_region
        _
      $region64: #{mobilevit_block_v2.1} parent=11 // pred_fallthru
        _
      // Predicated region
      $region65: #{mobilevit_block_v2.1} parent=11 // pred_check
        %p663 = pneg %p352
      $region66: #{mobilevit_block_v2.1} parent=11 // pred_check_branch
        %665 = sbr.rel (%p663) target = $region68
      $region67: #{mobilevit_block_v2.1} parent=11 // pred_region
        _
      $region68: #{mobilevit_block_v2.1} parent=11 // pred_fallthru
        _
      // Predicated region
      $region69: #{mobilevit_block_v2.1} parent=11 // pred_check
        %p666 = pneg %p373
      $region70: #{mobilevit_block_v2.1} parent=11 // pred_check_branch
        %668 = sbr.rel (%p666) target = $region72
      $region71: #{mobilevit_block_v2.1} parent=11 // pred_region
        _
      $region72: #{mobilevit_block_v2.1} parent=11 // pred_fallthru
        _
      // Predicated region
      $region73: #{mobilevit_block_v2.1} parent=11 // pred_check
        %p669 = pneg %p394
      $region74: #{mobilevit_block_v2.1} parent=11 // pred_check_branch
        %671 = sbr.rel (%p669) target = $region76
      $region75: #{mobilevit_block_v2.1} parent=11 // pred_region
        _
      $region76: #{mobilevit_block_v2.1} parent=11 // pred_fallthru
        _
      // Predicated region
      $region77: #{mobilevit_block_v2.1} parent=11 // pred_check
        %p672 = pneg %p415
      $region78: #{mobilevit_block_v2.1} parent=11 // pred_check_branch
        %674 = sbr.rel (%p672) target = $region80
      $region79: #{mobilevit_block_v2.1} parent=11 // pred_region
        _
      $region80: #{mobilevit_block_v2.1} parent=11 // pred_fallthru
        _
      // Predicated region
      $region81: #{mobilevit_block_v2.1} parent=11 // pred_check
        %p675 = pneg %p436
      $region82: #{mobilevit_block_v2.1} parent=11 // pred_check_branch
        %677 = sbr.rel (%p675) target = $region84
      $region83: #{mobilevit_block_v2.1} parent=11 // pred_region
        _
      $region84: #{mobilevit_block_v2.1} parent=11 // pred_fallthru
        _
      // Predicated region
      $region85: #{mobilevit_block_v2.1} parent=11 // pred_check
        %p678 = pneg %p457
      $region86: #{mobilevit_block_v2.1} parent=11 // pred_check_branch
        %680 = sbr.rel (%p678) target = $region88
      $region87: #{mobilevit_block_v2.1} parent=11 // pred_region
        _
      $region88: #{mobilevit_block_v2.1} parent=11 // pred_fallthru
        _
      // Predicated region
      $region89: #{mobilevit_block_v2.1} parent=11 // pred_check
        %p681 = pneg %p478
      $region90: #{mobilevit_block_v2.1} parent=11 // pred_check_branch
        %683 = sbr.rel (%p681) target = $region92
      $region91: #{mobilevit_block_v2.1} parent=11 // pred_region
        _
      $region92: #{mobilevit_block_v2.1} parent=11 // pred_fallthru
        _
      // Predicated region
      $region93: #{mobilevit_block_v2.1} parent=11 // pred_check
        %p684 = pneg %p499
      $region94: #{mobilevit_block_v2.1} parent=11 // pred_check_branch
        %686 = sbr.rel (%p684) target = $region96
      $region95: #{mobilevit_block_v2.1} parent=11 // pred_region
        _
      $region96: #{mobilevit_block_v2.1} parent=11 // pred_fallthru
        _
      // Predicated region
      $region97: #{mobilevit_block_v2.1} parent=11 // pred_check
        %p687 = pneg %p520
      $region98: #{mobilevit_block_v2.1} parent=11 // pred_check_branch
        %689 = sbr.rel (%p687) target = $region100
      $region99: #{mobilevit_block_v2.1} parent=11 // pred_region
        _
      $region100: #{mobilevit_block_v2.1} parent=11 // pred_fallthru
        _
      // Predicated region
      $region101: #{mobilevit_block_v2.1} parent=11 // pred_check
        %p690 = pneg %p541
      $region102: #{mobilevit_block_v2.1} parent=11 // pred_check_branch
        %692 = sbr.rel (%p690) target = $region104
      $region103: #{mobilevit_block_v2.1} parent=11 // pred_region
        _
      $region104: #{mobilevit_block_v2.1} parent=11 // pred_fallthru
        _
      // Predicated region
      $region105: #{mobilevit_block_v2.1} parent=11 // pred_check
        %p693 = pneg %p562
      $region106: #{mobilevit_block_v2.1} parent=11 // pred_check_branch
        %695 = sbr.rel (%p693) target = $region108
      $region107: #{mobilevit_block_v2.1} parent=11 // pred_region
        _
      $region108: #{mobilevit_block_v2.1} parent=11 // pred_fallthru
        _
      // Predicated region
      $region109: #{mobilevit_block_v2.1} parent=11 // pred_check
        %p696 = pneg %p583
      $region110: #{mobilevit_block_v2.1} parent=11 // pred_check_branch
        %698 = sbr.rel (%p696) target = $region112
      $region111: #{mobilevit_block_v2.1} parent=11 // pred_region
        _
      $region112: #{mobilevit_block_v2.1} parent=11 // pred_fallthru
        _
    $region12: #{mobilevit_block_v2.1} parent=5 // pred_fallthru
      _
    %p699 = scmp.lt.s32.totalorder %s32, 2
    // Predicated region
    $region113: #{mobilevit_block_v2.1} parent=5 // pred_check
      %p700 = pneg %p699
    $region114: #{mobilevit_block_v2.1} parent=5 // pred_check_branch
      %702 = sbr.rel (%p700) target = $region116
    $region115: #{mobilevit_block_v2.1} parent=5 // pred_region
      // Predicated region
      $region117: #{mobilevit_block_v2.1} parent=115 // pred_check
        %p703 = pneg %p52
      $region118: #{mobilevit_block_v2.1} parent=115 // pred_check_branch
        %705 = sbr.rel (%p703) target = $region120
      $region119: #{mobilevit_block_v2.1} parent=115 // pred_region
        %p706 = scmp.lt.s32.totalorder %s32, 1
        %s707 = scalar_select %p706, %s32, 1
        %s708 = smul.addr %s707, 3
        %s709 = smul.addr %s708, 4
        %s710 = scalar_lea.vmem %s0, %s709
      $region120: #{mobilevit_block_v2.1} parent=115 // pred_fallthru
        _
    $region116: #{mobilevit_block_v2.1} parent=5 // pred_fallthru
      _
    %p711 = scmp.le.s32.totalorder 1, %s32
    %p712 = scmp.lt.s32.totalorder %s32, 3
    %p713 = pnand %p711, %p712
    %p714 = pneg %p713
    // Predicated region
    $region121: #{mobilevit_block_v2.1} parent=5 // pred_check
      _
    $region122: #{mobilevit_block_v2.1} parent=5 // pred_check_branch
      %716 = sbr.rel (%p713) target = $region124
    $region123: #{mobilevit_block_v2.1} parent=5 // pred_region
      %s717 = ssub.s32 %s32, 1
      %p718 = scmp.lt.s32.totalorder %s37, 1
      %s719 = scalar_select %p718, %s37, 1
      %s720 = smul.addr %s719, 3
      %s721 = smul.addr %s720, 4
      %s722 = scalar_lea.vmem %s0, %s721
      %p723 = pneg %p58
      %p724 = pneg %p55
      %p725 = pneg %p79
      %p726 = pneg %p76
      %p727 = pneg %p100
      %p728 = pneg %p97
      %p729 = pneg %p121
      %p730 = pneg %p118
      %p731 = pneg %p142
      %p732 = pneg %p139
      %p733 = pneg %p163
      %p734 = pneg %p160
      %p735 = pneg %p184
      %p736 = pneg %p181
      %p737 = pneg %p205
      %p738 = pneg %p202
      %p739 = pneg %p226
      %p740 = pneg %p223
      %p741 = pneg %p247
      %p742 = pneg %p244
      %p743 = pneg %p268
      %p744 = pneg %p265
      %p745 = pneg %p289
      %p746 = pneg %p286
      %p747 = pneg %p310
      %p748 = pneg %p307
      %p749 = pneg %p331
      %p750 = pneg %p328
      %p751 = pneg %p352
      %p752 = pneg %p349
      %p753 = pneg %p373
      %p754 = pneg %p370
      %p755 = pneg %p394
      %p756 = pneg %p391
      %p757 = pneg %p415
      %p758 = pneg %p412
      %p759 = pneg %p436
      %p760 = pneg %p433
      %p761 = pneg %p457
      %p762 = pneg %p454
      %p763 = pneg %p478
      %p764 = pneg %p475
      %p765 = pneg %p499
      %p766 = pneg %p496
      %p767 = pneg %p520
      %p768 = pneg %p517
      %p769 = pneg %p541
      %p770 = pneg %p538
      %p771 = pneg %p562
      %p772 = pneg %p559
      %p773 = pneg %p583
      %p774 = pneg %p580
      %p775 = pneg %p609
      %p776 = pneg %p606
      %p777 = scmp.lt.s32.totalorder %s37, 1
      %s778 = scalar_select %p777, %s37, 1
      %s779 = smul.addr %s778, 2
      %s780 = smul.addr %s779, 4
      %s781 = scalar_lea.vmem %s26, %s780
      %p782 = scmp.lt.s32.totalorder %s37, 1
      %s783 = scalar_select %p782, %s37, 1
      %s784 = smul.addr %s783, 3
      %s785 = smul.addr %s784, 4
      %s786 = scalar_lea.vmem %s0, %s785
      %p787 = scmp.lt.s32.totalorder %s37, 1
      %s788 = scalar_select %p787, %s37, 1
      %s789 = smul.addr %s788, 2
      %s790 = smul.addr %s789, 4
      %s791 = scalar_lea.vmem %s26, %s790
      %v793 = vlaneseq
      %v794 = vand.u32 %v793, 127
      %v795 = vadd.s32 %v794, 128
      %vm796 = vcmp.lt.s32.totalorder %v794, 0
      %v797 = vsub.s32 0, %v794
      %v798 = vsel %vm796, %v797, %v794
      %v799 = vshrl.u32 %v798, 4
      %v800 = vand.u32 %v798, 15
      %v801 = vsub.s32 0, %v800
      %v802 = vsel %vm796, %v801, %v800
      %vm803 = vcmp.lt.s32.totalorder %v795, 0
      %v804 = vsub.s32 0, %v795
      %v805 = vsel %vm803, %v804, %v795
      %v806 = vshrl.u32 %v805, 4
      %v807 = vand.u32 %v805, 15
      %v808 = vsub.s32 0, %v807
      %v809 = vsel %vm803, %v808, %v807
      %vm810 = vcmp.ne.s32.totalorder %v802, 0
      %vm811 = vcmp.ne.s32.totalorder %v809, 0
      %vm812 = vcmp.lt.s32.totalorder %v802, 0
      %vm813 = vcmp.lt.s32.totalorder %v809, 0
      %vm814 = vmand %vm812, %vm810
      %vm815 = vmand %vm813, %vm811
      %v816 = vadd.s32 %v802, 16
      %v817 = vadd.s32 %v809, 16
      %v818 = vsel %vm814, %v816, %v802
      %v819 = vsel %vm815, %v817, %v809
      %vm820 = vcmp.ge.s32.totalorder %v818, 1
      %vm821 = vcmp.ge.s32.totalorder %v819, 1
      %v822 = vsel %vm820, 1, 0
      %v823 = vsel %vm821, 1, 0
      %v824 = vcvt.s32.f32 %v822
      %v825 = vcvt.s32.f32 %v823
      %vm826 = vcmp.lt.s32.totalorder %v818, 15
      %vm827 = vcmp.lt.s32.totalorder %v819, 15
      %v828 = vsel %vm826, 1, 0
      %v829 = vsel %vm827, 1, 0
      %v830 = vcvt.s32.f32 %v828
      %v831 = vcvt.s32.f32 %v829
      %v832 = vld [vmem:[%s786] sm:$0xff]
      %v833 = vld [vmem:[%s786 + $0x8] sm:$0xf]
      %v834 = vld [vmem:[%s1] sm:$0xf]
      %v837 = vcombine.low %v824, %v825
      %v839 = vmul.f32 %v832, %v837
      %841 = vset.pattern.permute.xlu0 0
      %842 = vperm.xlu0 %841, %v834
      %v843 = vpop.permute.xlu0 %842
      %v845 = vunpack.c.l.s4 839922192
      %v846 = vunpack.c.0.s8 %v845
      %v847 = vlaneseq
      %v848 = vshrl.u32 %v847, 7
      %v849 = vsub.s32 %v846, %v848
      %v850 = vrot.slane %v843, %v849
      %v852 = vmul.f32 %v839, %v850
      %v853 = vadd.f32 %v852, 0.0
      %854 = vset.pattern.permute.xlu0 1
      %855 = vperm.xlu0 %854, %v834
      %v856 = vpop.permute.xlu0 %855
      %v858 = vunpack.c.l.s4 839922192
      %v859 = vunpack.c.0.s8 %v858
      %v860 = vlaneseq
      %v861 = vshrl.u32 %v860, 7
      %v862 = vsub.s32 %v859, %v861
      %v863 = vrot.slane %v856, %v862
      %v865 = vmul.f32 %v832, %v863
      %v866 = vmul.f32 %v833, %v863
      %869 = vrot.lane.b32.xlu0 %v865, 127
      %v870 = vpop.permute.xlu0 %869
      %871 = vrot.lane.b32.xlu0 %v866, 127
      %v872 = vpop.permute.xlu0 %871
      %v873 = vrot.slane %v870, 4
      %v874 = vrot.slane %v872, 4
      %vm875 = vcmask 1043456
      %v876 = vsel %vm875, %v873, %v874
      %vm877 = vcmask 1039360
      %v878 = vsel %vm877, %v870, %v876
      %v880 = vadd.f32 %v853, %v878
      %v883 = vcombine.low %v830, %v831
      %884 = vrot.lane.b32.xlu0 %v883, 2
      %v885 = vpop.permute.xlu0 %884
      %v886 = vrot.slane %v885, 4
      %vm887 = vcmask 15360
      %v888 = vsel %vm887, %v886, %v885
      %v891 = vmul.f32 %v832, %v888
      %v892 = vmul.f32 %v833, %v886
      %893 = vset.pattern.permute.xlu0 2
      %894 = vperm.xlu0 %893, %v834
      %v895 = vpop.permute.xlu0 %894
      %v897 = vunpack.c.l.s4 839922192
      %v898 = vunpack.c.0.s8 %v897
      %v899 = vlaneseq
      %v900 = vshrl.u32 %v899, 7
      %v901 = vsub.s32 %v898, %v900
      %v902 = vrot.slane %v895, %v901
      %v904 = vmul.f32 %v891, %v902
      %v905 = vmul.f32 %v892, %v902
      %908 = vrot.lane.b32.xlu0 %v904, 126
      %v909 = vpop.permute.xlu0 %908
      %910 = vrot.lane.b32.xlu0 %v905, 126
      %v911 = vpop.permute.xlu0 %910
      %v912 = vrot.slane %v909, 4
      %v913 = vrot.slane %v911, 4
      %v914 = vsel %vm875, %v912, %v913
      %vm915 = vcmask 1031168
      %v916 = vsel %vm915, %v909, %v914
      %v918 = vadd.f32 %v880, %v916
      %919 = vrot.lane.b32.xlu0 %v837, 16
      %v920 = vpop.permute.xlu0 %919
      %v921 = vrot.slane %v920, 4
      %vm922 = vcmask 130048
      %v923 = vsel %vm922, %v921, %v920
      %v926 = vmul.f32 %v832, %v923
      %v927 = vmul.f32 %v833, %v921
      %928 = vset.pattern.permute.xlu0 3
      %929 = vperm.xlu0 %928, %v834
      %v930 = vpop.permute.xlu0 %929
      %v932 = vunpack.c.l.s4 839922192
      %v933 = vunpack.c.0.s8 %v932
      %v934 = vlaneseq
      %v935 = vshrl.u32 %v934, 7
      %v936 = vsub.s32 %v933, %v935
      %v937 = vrot.slane %v930, %v936
      %v939 = vmul.f32 %v926, %v937
      %v940 = vmul.f32 %v927, %v937
      %943 = vrot.lane.b32.xlu0 %v939, 112
      %v944 = vpop.permute.xlu0 %943
      %945 = vrot.lane.b32.xlu0 %v940, 112
      %v946 = vpop.permute.xlu0 %945
      %v947 = vrot.slane %v944, 4
      %v948 = vrot.slane %v946, 4
      %v949 = vsel %vm875, %v947, %v948
      %vm950 = vcmask 916480
      %v951 = vsel %vm950, %v944, %v949
      %v953 = vadd.f32 %v918, %v951
      %954 = vset.pattern.permute.xlu0 4
      %955 = vperm.xlu0 %954, %v834
      %v956 = vpop.permute.xlu0 %955
      %v958 = vunpack.c.l.s4 839922192
      %v959 = vunpack.c.0.s8 %v958
      %v960 = vlaneseq
      %v961 = vshrl.u32 %v960, 7
      %v962 = vsub.s32 %v959, %v961
      %v963 = vrot.slane %v956, %v962
      %v965 = vmul.f32 %v832, %v963
      %v966 = vmul.f32 %v833, %v963
      %969 = vrot.lane.b32.xlu0 %v965, 111
      %v970 = vpop.permute.xlu0 %969
      %971 = vrot.lane.b32.xlu0 %v966, 111
      %v972 = vpop.permute.xlu0 %971
      %v973 = vrot.slane %v970, 4
      %v974 = vrot.slane %v972, 4
      %v975 = vsel %vm875, %v973, %v974
      %vm976 = vcmask 908288
      %v977 = vsel %vm976, %v970, %v975
      %v979 = vadd.f32 %v953, %v977
      %980 = vrot.lane.b32.xlu0 %v883, 18
      %v981 = vpop.permute.xlu0 %980
      %v982 = vrot.slane %v981, 4
      %vm983 = vcmask 146432
      %v984 = vsel %vm983, %v982, %v981
      %v987 = vmul.f32 %v832, %v984
      %v988 = vmul.f32 %v833, %v982
      %989 = vset.pattern.permute.xlu0 5
      %990 = vperm.xlu0 %989, %v834
      %v991 = vpop.permute.xlu0 %990
      %v993 = vunpack.c.l.s4 839922192
      %v994 = vunpack.c.0.s8 %v993
      %v995 = vlaneseq
      %v996 = vshrl.u32 %v995, 7
      %v997 = vsub.s32 %v994, %v996
      %v998 = vrot.slane %v991, %v997
      %v1000 = vmul.f32 %v987, %v998
      %v1001 = vmul.f32 %v988, %v998
      %1004 = vrot.lane.b32.xlu0 %v1000, 110
      %v1005 = vpop.permute.xlu0 %1004
      %1006 = vrot.lane.b32.xlu0 %v1001, 110
      %v1007 = vpop.permute.xlu0 %1006
      %v1008 = vrot.slane %v1005, 4
      %v1009 = vrot.slane %v1007, 4
      %v1010 = vsel %vm875, %v1008, %v1009
      %vm1011 = vcmask 900096
      %v1012 = vsel %vm1011, %v1005, %v1010
      %v1014 = vadd.f32 %v979, %v1012
      %1015 = vrot.lane.b32.xlu0 %v837, 32
      %v1016 = vpop.permute.xlu0 %1015
      %v1017 = vrot.slane %v1016, 4
      %vm1018 = vcmask 261120
      %v1019 = vsel %vm1018, %v1017, %v1016
      %v1022 = vmul.f32 %v832, %v1019
      %v1023 = vmul.f32 %v833, %v1017
      %1024 = vset.pattern.permute.xlu0 6
      %1025 = vperm.xlu0 %1024, %v834
      %v1026 = vpop.permute.xlu0 %1025
      %v1028 = vunpack.c.l.s4 839922192
      %v1029 = vunpack.c.0.s8 %v1028
      %v1030 = vlaneseq
      %v1031 = vshrl.u32 %v1030, 7
      %v1032 = vsub.s32 %v1029, %v1031
      %v1033 = vrot.slane %v1026, %v1032
      %v1035 = vmul.f32 %v1022, %v1033
      %v1036 = vmul.f32 %v1023, %v1033
      %1039 = vrot.lane.b32.xlu0 %v1035, 96
      %v1040 = vpop.permute.xlu0 %1039
      %1041 = vrot.lane.b32.xlu0 %v1036, 96
      %v1042 = vpop.permute.xlu0 %1041
      %v1043 = vrot.slane %v1040, 4
      %v1044 = vrot.slane %v1042, 4
      %v1045 = vsel %vm875, %v1043, %v1044
      %vm1046 = vcmask 785408
      %v1047 = vsel %vm1046, %v1040, %v1045
      %v1049 = vadd.f32 %v1014, %v1047
      %1050 = vset.pattern.permute.xlu0 7
      %1051 = vperm.xlu0 %1050, %v834
      %v1052 = vpop.permute.xlu0 %1051
      %v1054 = vunpack.c.l.s4 839922192
      %v1055 = vunpack.c.0.s8 %v1054
      %v1056 = vlaneseq
      %v1057 = vshrl.u32 %v1056, 7
      %v1058 = vsub.s32 %v1055, %v1057
      %v1059 = vrot.slane %v1052, %v1058
      %v1061 = vmul.f32 %v832, %v1059
      %v1062 = vmul.f32 %v833, %v1059
      %1065 = vrot.lane.b32.xlu0 %v1061, 95
      %v1066 = vpop.permute.xlu0 %1065
      %1067 = vrot.lane.b32.xlu0 %v1062, 95
      %v1068 = vpop.permute.xlu0 %1067
      %v1069 = vrot.slane %v1066, 4
      %v1070 = vrot.slane %v1068, 4
      %v1071 = vsel %vm875, %v1069, %v1070
      %vm1072 = vcmask 777216
      %v1073 = vsel %vm1072, %v1066, %v1071
      %v1075 = vadd.f32 %v1049, %v1073
      %1076 = vrot.lane.b32.xlu0 %v883, 34
      %v1077 = vpop.permute.xlu0 %1076
      %v1078 = vrot.slane %v1077, 4
      %vm1079 = vcmask 277504
      %v1080 = vsel %vm1079, %v1078, %v1077
      %v1083 = vmul.f32 %v832, %v1080
      %v1084 = vmul.f32 %v833, %v1078
      %1085 = vset.pattern.permute.xlu0 8
      %1086 = vperm.xlu0 %1085, %v834
      %v1087 = vpop.permute.xlu0 %1086
      %v1089 = vunpack.c.l.s4 839922192
      %v1090 = vunpack.c.0.s8 %v1089
      %v1091 = vlaneseq
      %v1092 = vshrl.u32 %v1091, 7
      %v1093 = vsub.s32 %v1090, %v1092
      %v1094 = vrot.slane %v1087, %v1093
      %v1096 = vmul.f32 %v1083, %v1094
      %v1097 = vmul.f32 %v1084, %v1094
      %1100 = vrot.lane.b32.xlu0 %v1096, 94
      %v1101 = vpop.permute.xlu0 %1100
      %1102 = vrot.lane.b32.xlu0 %v1097, 94
      %v1103 = vpop.permute.xlu0 %1102
      %v1104 = vrot.slane %v1101, 4
      %v1105 = vrot.slane %v1103, 4
      %v1106 = vsel %vm875, %v1104, %v1105
      %vm1107 = vcmask 769024
      %v1108 = vsel %vm1107, %v1101, %v1106
      %v1110 = vadd.f32 %v1075, %v1108
      %v1111 = vld [vmem:[%s2] sm:$0xf]
      %1113 = vset.pattern.permute.xlu0 0
      %1114 = vperm.xlu0 %1113, %v1111
      %v1115 = vpop.permute.xlu0 %1114
      %v1117 = vunpack.c.l.s4 839922192
      %v1118 = vunpack.c.0.s8 %v1117
      %v1119 = vlaneseq
      %v1120 = vshrl.u32 %v1119, 7
      %v1121 = vsub.s32 %v1118, %v1120
      %v1122 = vrot.slane %v1115, %v1121
      %v1124 = vmul.f32 %v1110, %v1122
      %v1125 = vld [vmem:[%s3] sm:$0xf]
      %1127 = vset.pattern.permute.xlu0 0
      %1128 = vperm.xlu0 %1127, %v1125
      %v1129 = vpop.permute.xlu0 %1128
      %v1131 = vunpack.c.l.s4 839922192
      %v1132 = vunpack.c.0.s8 %v1131
      %v1133 = vlaneseq
      %v1134 = vshrl.u32 %v1133, 7
      %v1135 = vsub.s32 %v1132, %v1134
      %v1136 = vrot.slane %v1129, %v1135
      %v1138 = vadd.f32 %v1124, %v1136
      %v1139 = vxor.u32 %v1138, 2147483648
      %v1140 = vmul.f32 %v1139, 1.442695
      %v1141 = vpow.pop %v1140
      %v1142 = vadd.f32 %v1141, 1.0
      %v1143 = vrcp.pop %v1142
      %v1144 = vmul.f32 1.0, %v1143
      %v1145 = vmul.f32 %v1138, %v1144
      %v1146 = vld [vmem:[%s4] sm:$0xf]
      %v1147 = vld [vmem:[%s4 + $0x4] sm:$0xf]
      %v1149 = vcombine.high %v1145, %v1145
      %v1151 = vpack.c.bf16 %v1145, %v1145
      %v1152 = vpack.c.bf16 %v1149, %v1149
      %v1153 = vld [vmem:[%s5] sm:$0xff]
      %v1154 = vld [vmem:[%s5 + $0x8] sm:$0xff]
      %1156 = vset.pattern.permute.xlu0 0
      %1157 = vperm.xlu0 %1156, %v1153
      %v1158 = vpop.permute.xlu0 %1157
      %1161 = vset.pattern.permute.xlu0 0
      %1162 = vperm.xlu0 %1161, %v1154
      %v1163 = vpop.permute.xlu0 %1162
      %v1167 = vunpack.c.l.b16 %v1146
      %v1168 = vunpack.c.l.b16 %v1147
      %v1169 = vpack.c.b16 %v1168, %v1167
      %vm1170 = vcmask 31744
      %v1172 = vsel %vm1170, %v1169, 0
      %vm1174 = vcmask 1041408
      %v1176 = vsel %vm1174, %v1151, 0
      %v1179 = vsel %vm1174, %v1152, 0
      %1181 = vmatprep.subr.bf16.mxu0 %v1179
      %1182 = vmatpush1.bf16.msra.mxu0 %v1176
      %1183 = vmatprep.subr.bf16.mxu0 0
      %1184 = vmatpush1.bf16.msra.mxu0 0
      %1185 = vmatprep.subr.bf16.mxu0 0
      %1186 = vmatpush1.bf16.msra.mxu0 0
      %1187 = vmatprep.subr.bf16.mxu0 0
      %1188 = vmatpush1.bf16.msra.mxu0 0
      %1189 = vmatprep.subr.bf16.mxu0 0
      %1190 = vmatpush1.bf16.msra.mxu0 0
      %1191 = vmatprep.subr.bf16.mxu0 0
      %1192 = vmatpush1.bf16.msra.mxu0 0
      %1193 = vmatprep.subr.bf16.mxu0 0
      %1194 = vmatpush1.bf16.msra.mxu0 0
      %1195 = vmatprep.subr.bf16.mxu0 0
      %1196 = vmatpush1.bf16.msra.mxu0 0
      %1197 = vmatprep.subr.bf16.mxu0 0
      %1198 = vmatpush1.bf16.msra.mxu0 0
      %1199 = vmatprep.subr.bf16.mxu0 0
      %1200 = vmatpush1.bf16.msra.mxu0 0
      %1201 = vmatprep.subr.bf16.mxu0 0
      %1202 = vmatpush1.bf16.msra.mxu0 0
      %1203 = vmatprep.subr.bf16.mxu0 0
      %1204 = vmatpush1.bf16.msra.mxu0 0
      %1205 = vmatprep.subr.bf16.mxu0 0
      %1206 = vmatpush1.bf16.msra.mxu0 0
      %1207 = vmatprep.subr.bf16.mxu0 0
      %1208 = vmatpush1.bf16.msra.mxu0 0
      %1209 = vmatprep.subr.bf16.mxu0 0
      %1210 = vmatpush1.bf16.msra.mxu0 0
      %1211 = vmatprep.subr.bf16.mxu0 0
      %1212 = vmatpush1.bf16.msra.mxu0 0
      %1213 = vmatprep.mubr.bf16.mxu0 0
      %1214 = vmatmul.mubr.bf16.gmra.mrb[0].mxu0 %v1172
      %v1215 = vpop.f32.mrb[0].mxu0
      %v1216 = vadd.f32 %v1158, %v1215
      %v1217 = vpop.f32.mrb[0].mxu0
      %v1218 = vadd.f32 %v1158, %v1217
      %v1219 = vpop.f32.mrb[0].mxu0
      %v1220 = vadd.f32 %v1163, %v1219
      %v1221 = vpop.f32.mrb[0].mxu0
      %v1222 = vadd.f32 %v1163, %v1221
      %1223 = vdwg.mxu0
      %v1224 = vld [vmem:[%s6] sm:$0xff]
      %v1225 = vld [vmem:[%s6 + $0x8] sm:$0xff]
      %v1226 = vld [vmem:[%s6 + $0x10] sm:$0xff]
      %v1227 = vld [vmem:[%s6 + $0x18] sm:$0xff]
      %v1228 = vld [vmem:[%s6 + $0x20] sm:$0xff]
      %v1229 = vld [vmem:[%s6 + $0x28] sm:$0xff]
      %v1230 = vld [vmem:[%s6 + $0x30] sm:$0xff]
      %v1231 = vld [vmem:[%s6 + $0x38] sm:$0xff]
      %v1232 = vld [vmem:[%s6 + $0x40] sm:$0xff]
      %v1233 = vld [vmem:[%s6 + $0x48] sm:$0xff]
      %v1234 = vld [vmem:[%s6 + $0x50] sm:$0xff]
      %v1235 = vld [vmem:[%s6 + $0x58] sm:$0xff]
      %v1236 = vld [vmem:[%s6 + $0x60] sm:$0xff]
      %v1237 = vld [vmem:[%s6 + $0x68] sm:$0xff]
      %v1238 = vld [vmem:[%s6 + $0x70] sm:$0xff]
      %v1239 = vld [vmem:[%s6 + $0x78] sm:$0xff]
      %v1240 = vld [vmem:[%s6 + $0x80] sm:$0xff]
      %v1241 = vld [vmem:[%s6 + $0x88] sm:$0xff]
      %v1242 = vld [vmem:[%s6 + $0x90] sm:$0xff]
      %v1243 = vld [vmem:[%s6 + $0x98] sm:$0xff]
      %v1244 = vld [vmem:[%s6 + $0xa0] sm:$0xff]
      %v1245 = vld [vmem:[%s6 + $0xa8] sm:$0xff]
      %v1246 = vld [vmem:[%s6 + $0xb0] sm:$0xff]
      %v1247 = vld [vmem:[%s6 + $0xb8] sm:$0xff]
      %v1248 = vld [vmem:[%s6 + $0xc0] sm:$0xff]
      %v1249 = vld [vmem:[%s6 + $0xc8] sm:$0xff]
      %v1250 = vld [vmem:[%s6 + $0xd0] sm:$0xff]
      %v1251 = vld [vmem:[%s6 + $0xd8] sm:$0xff]
      %v1252 = vld [vmem:[%s6 + $0xe0] sm:$0xff]
      %v1253 = vld [vmem:[%s6 + $0xe8] sm:$0xff]
      %v1254 = vld [vmem:[%s6 + $0xf0] sm:$0xff]
      %v1255 = vld [vmem:[%s6 + $0xf8] sm:$0xff]
      %v1256 = vld [vmem:[%s7] sm:$0xff]
      %v1257 = vld [vmem:[%s7 + $0x8] sm:$0xff]
      %v1258 = vld [vmem:[%s8] sm:$0xff]
      %v1259 = vld [vmem:[%s8 + $0x8] sm:$0xff]
      %v1260 = vld [vmem:[%s9] sm:$0xff]
      %v1261 = vld [vmem:[%s9 + $0x8] sm:$0xff]
      %v1262 = vadd.f32 %v1216, %v1218
      %v1263 = vadd.f32 %v1262, %v1220
      %v1264 = vadd.f32 %v1263, %v1222
      %1265 = vadd.xlane.f32.xlu0 %v1264
      %v1266 = vpop.xlane.xlu0 %1265
      %v1267 = vrot.slane %v1266, 4
      %v1268 = vadd.f32 %v1266, %v1267
      %v1269 = vrot.slane %v1268, 2
      %v1270 = vadd.f32 %v1268, %v1269
      %v1271 = vrot.slane %v1270, 1
      %v1272 = vadd.f32 %v1270, %v1271
      %s1273 = vtos %v1272
      %v1274 = vrcp.pop 4096.0
      %s1275 = vtos %v1274
      %s1276 = smul.f32 %s1273, %s1275
      %v1277 = vmul.f32 %v1216, %v1216
      %v1278 = vmul.f32 %v1218, %v1218
      %v1279 = vmul.f32 %v1220, %v1220
      %v1280 = vmul.f32 %v1222, %v1222
      %v1281 = vadd.f32 %v1277, %v1278
      %v1282 = vadd.f32 %v1281, %v1279
      %v1283 = vadd.f32 %v1282, %v1280
      %1284 = vadd.xlane.f32.xlu0 %v1283
      %v1285 = vpop.xlane.xlu0 %1284
      %v1286 = vrot.slane %v1285, 4
      %v1287 = vadd.f32 %v1285, %v1286
      %v1288 = vrot.slane %v1287, 2
      %v1289 = vadd.f32 %v1287, %v1288
      %v1290 = vrot.slane %v1289, 1
      %v1291 = vadd.f32 %v1289, %v1290
      %s1292 = vtos %v1291
      %v1293 = vrcp.pop 4096.0
      %s1294 = vtos %v1293
      %s1295 = smul.f32 %s1292, %s1294
      %s1296 = smul.f32 %s1276, %s1276
      %s1297 = ssub.f32 %s1295, %s1296
      %s1298 = sadd.f32 %s1297, 1e-05
      %v1299 = vstv %s1298
      %v1300 = vrsqrt.pop %v1299
      %s1301 = vtos %v1300
      %v1302 = vstv %s1276
      %v1303 = vsub.f32 %v1216, %v1302
      %v1304 = vsub.f32 %v1218, %v1302
      %v1305 = vsub.f32 %v1220, %v1302
      %v1306 = vsub.f32 %v1222, %v1302
      %v1307 = vstv %s1301
      %v1308 = vmul.f32 %v1303, %v1307
      %v1309 = vmul.f32 %v1304, %v1307
      %v1310 = vmul.f32 %v1305, %v1307
      %v1311 = vmul.f32 %v1306, %v1307
      %1313 = vset.pattern.permute.xlu0 0
      %1314 = vperm.xlu0 %1313, %v1258
      %v1315 = vpop.permute.xlu0 %1314
      %1318 = vset.pattern.permute.xlu0 0
      %1319 = vperm.xlu0 %1318, %v1259
      %v1320 = vpop.permute.xlu0 %1319
      %v1322 = vmul.f32 %v1308, %v1315
      %v1323 = vmul.f32 %v1309, %v1315
      %v1324 = vmul.f32 %v1310, %v1320
      %v1325 = vmul.f32 %v1311, %v1320
      %1327 = vset.pattern.permute.xlu0 0
      %1328 = vperm.xlu0 %1327, %v1260
      %v1329 = vpop.permute.xlu0 %1328
      %1332 = vset.pattern.permute.xlu0 0
      %1333 = vperm.xlu0 %1332, %v1261
      %v1334 = vpop.permute.xlu0 %1333
      %v1336 = vadd.f32 %v1322, %v1329
      %v1337 = vadd.f32 %v1323, %v1329
      %v1338 = vadd.f32 %v1324, %v1334
      %v1339 = vadd.f32 %v1325, %v1334
      %v1340 = vpack.c.bf16 %v1338, %v1336
      %v1341 = vpack.c.bf16 %v1339, %v1337
      %v1342 = vld [vmem:[%s10] sm:$0xf]
      %v1343 = vld [vmem:[%s10 + $0x4] sm:$0xf]
      %v1344 = vld [vmem:[%s10 + $0x8] sm:$0xf]
      %v1345 = vld [vmem:[%s10 + $0xc] sm:$0xf]
      %v1346 = vld [vmem:[%s10 + $0x10] sm:$0xf]
      %v1347 = vld [vmem:[%s11] sm:$0xff]
      %v1348 = vld [vmem:[%s11 + $0x8] sm:$0xff]
      %v1349 = vld [vmem:[%s11 + $0x10] sm:$0xff]
      %v1350 = vld [vmem:[%s11 + $0x18] sm:$0xff]
      %v1351 = vld [vmem:[%s11 + $0x20] sm:$0xff]
      %1353 = vset.pattern.permute.xlu0 0
      %1354 = vperm.xlu0 %1353, %v1347
      %v1355 = vpop.permute.xlu0 %1354
      %1358 = vset.pattern.permute.xlu0 0
      %1359 = vperm.xlu0 %1358, %v1348
      %v1360 = vpop.permute.xlu0 %1359
      %1363 = vset.pattern.permute.xlu0 0
      %1364 = vperm.xlu0 %1363, %v1349
      %v1365 = vpop.permute.xlu0 %1364
      %1368 = vset.pattern.permute.xlu0 0
      %1369 = vperm.xlu0 %1368, %v1350
      %v1370 = vpop.permute.xlu0 %1369
      %1373 = vset.pattern.permute.xlu0 0
      %1374 = vperm.xlu0 %1373, %v1351
      %v1375 = vpop.permute.xlu0 %1374
      %v1382 = vunpack.c.l.b16 %v1342
      %v1383 = vunpack.c.l.b16 %v1343
      %v1384 = vunpack.c.l.b16 %v1344
      %v1385 = vunpack.c.l.b16 %v1345
      %v1386 = vunpack.c.l.b16 %v1346
      %v1387 = vpack.c.b16 %v1383, %v1382
      %v1388 = vpack.c.b16 %v1385, %v1384
      %v1389 = vpack.c.b16 %v1386, %v1386
      %v1391 = vsel %vm922, %v1387, 0
      %v1394 = vsel %vm922, %v1388, 0
      %v1397 = vsel %vm922, %v1389, 0
      %1399 = vmatprep.subr.bf16.mxu0 %v1341
      %1400 = vmatpush1.bf16.msra.mxu0 %v1340
      %1401 = vmatprep.subr.bf16.mxu0 0
      %1402 = vmatpush1.bf16.msra.mxu0 0
      %1403 = vmatprep.subr.bf16.mxu0 0
      %1404 = vmatpush1.bf16.msra.mxu0 0
      %1405 = vmatprep.subr.bf16.mxu0 0
      %1406 = vmatpush1.bf16.msra.mxu0 0
      %1407 = vmatprep.subr.bf16.mxu0 0
      %1408 = vmatpush1.bf16.msra.mxu0 0
      %1409 = vmatprep.subr.bf16.mxu0 0
      %1410 = vmatpush1.bf16.msra.mxu0 0
      %1411 = vmatprep.subr.bf16.mxu0 0
      %1412 = vmatpush1.bf16.msra.mxu0 0
      %1413 = vmatprep.subr.bf16.mxu0 0
      %1414 = vmatpush1.bf16.msra.mxu0 0
      %1415 = vmatprep.subr.bf16.mxu0 0
      %1416 = vmatpush1.bf16.msra.mxu0 0
      %1417 = vmatprep.subr.bf16.mxu0 0
      %1418 = vmatpush1.bf16.msra.mxu0 0
      %1419 = vmatprep.subr.bf16.mxu0 0
      %1420 = vmatpush1.bf16.msra.mxu0 0
      %1421 = vmatprep.subr.bf16.mxu0 0
      %1422 = vmatpush1.bf16.msra.mxu0 0
      %1423 = vmatprep.subr.bf16.mxu0 0
      %1424 = vmatpush1.bf16.msra.mxu0 0
      %1425 = vmatprep.subr.bf16.mxu0 0
      %1426 = vmatpush1.bf16.msra.mxu0 0
      %1427 = vmatprep.subr.bf16.mxu0 0
      %1428 = vmatpush1.bf16.msra.mxu0 0
      %1429 = vmatprep.subr.bf16.mxu0 0
      %1430 = vmatpush1.bf16.msra.mxu0 0
      %1431 = vmatprep.mubr.bf16.mxu0 0
      %1432 = vmatmul.mubr.bf16.gmra.mrb[0].mxu0 %v1391
      %v1433 = vpop.f32.mrb[0].mxu0
      %v1434 = vadd.f32 %v1355, %v1433
      %v1435 = vpop.f32.mrb[0].mxu0
      %v1436 = vadd.f32 %v1355, %v1435
      %v1437 = vpop.f32.mrb[0].mxu0
      %v1438 = vadd.f32 %v1360, %v1437
      %v1439 = vpop.f32.mrb[0].mxu0
      %v1440 = vadd.f32 %v1360, %v1439
      %1441 = vmatprep.mubr.bf16.mxu0 0
      %1442 = vmatmul.mubr.bf16.gmra.mrb[0].mxu0 %v1394
      %v1443 = vpop.f32.mrb[0].mxu0
      %v1444 = vadd.f32 %v1365, %v1443
      %v1445 = vpop.f32.mrb[0].mxu0
      %v1446 = vadd.f32 %v1365, %v1445
      %v1447 = vpop.f32.mrb[0].mxu0
      %v1448 = vadd.f32 %v1370, %v1447
      %v1449 = vpop.f32.mrb[0].mxu0
      %v1450 = vadd.f32 %v1370, %v1449
      %1451 = vmatprep.mubr.bf16.mxu0 0
      %1452 = vmatmul.mubr.bf16.gmra.mrb[0].mxu0 %v1397
      %v1453 = vpop.f32.mrb[0].mxu0
      %v1454 = vadd.f32 %v1375, %v1453
      %v1455 = vpop.f32.mrb[0].mxu0
      %v1456 = vadd.f32 %v1375, %v1455
      %v1457 = vpop.f32.mrb[0].mxu0
      %v1458 = vpop.f32.mrb[0].mxu0
      %1459 = vdwg.mxu0
      %v1460 = vmax.f32 %v1434, %v1436
      %1461 = vmax.xlane.f32.xlu0 %v1460
      %v1462 = vpop.xlane.xlu0 %1461
      %v1463 = vrot.slane %v1462, 4
      %v1464 = vmax.f32 %v1462, %v1463
      %v1465 = vrot.slane %v1464, 2
      %v1466 = vmax.f32 %v1464, %v1465
      %v1467 = vrot.slane %v1466, 1
      %v1468 = vmax.f32 %v1466, %v1467
      %s1469 = vtos %v1468
      %v1470 = vstv %s1469
      %v1471 = vsub.f32 %v1434, %v1470
      %v1472 = vsub.f32 %v1436, %v1470
      %v1473 = vmul.f32 %v1471, 1.442695
      %v1474 = vpow.pop %v1473
      %v1475 = vmul.f32 %v1472, 1.442695
      %v1476 = vpow.pop %v1475
      %1477 = vmatprep.subr.mxu0 0.0
      %1478 = vmatpush1.msra.mxu0 %v1224
      %1479 = vmatprep.subr.mxu0 0.0
      %1480 = vmatpush1.msra.mxu0 %v1225
      %1481 = vmatprep.subr.mxu0 0.0
      %1482 = vmatpush1.msra.mxu0 %v1226
      %1483 = vmatprep.subr.mxu0 0.0
      %1484 = vmatpush1.msra.mxu0 %v1227
      %1485 = vmatprep.subr.mxu0 0.0
      %1486 = vmatpush1.msra.mxu0 %v1228
      %1487 = vmatprep.subr.mxu0 0.0
      %1488 = vmatpush1.msra.mxu0 %v1229
      %1489 = vmatprep.subr.mxu0 0.0
      %1490 = vmatpush1.msra.mxu0 %v1230
      %1491 = vmatprep.subr.mxu0 0.0
      %1492 = vmatpush1.msra.mxu0 %v1231
      %1493 = vmatprep.subr.mxu0 0.0
      %1494 = vmatpush1.msra.mxu0 %v1232
      %1495 = vmatprep.subr.mxu0 0.0
      %1496 = vmatpush1.msra.mxu0 %v1233
      %1497 = vmatprep.subr.mxu0 0.0
      %1498 = vmatpush1.msra.mxu0 %v1234
      %1499 = vmatprep.subr.mxu0 0.0
      %1500 = vmatpush1.msra.mxu0 %v1235
      %1501 = vmatprep.subr.mxu0 0.0
      %1502 = vmatpush1.msra.mxu0 %v1236
      %1503 = vmatprep.subr.mxu0 0.0
      %1504 = vmatpush1.msra.mxu0 %v1237
      %1505 = vmatprep.subr.mxu0 0.0
      %1506 = vmatpush1.msra.mxu0 %v1238
      %1507 = vmatprep.subr.mxu0 0.0
      %1508 = vmatpush1.msra.mxu0 %v1239
      %1509 = vmatprep.subr.mxu0 0.0
      %1510 = vmatpush1.msra.mxu0 %v1240
      %1511 = vmatprep.subr.mxu0 0.0
      %1512 = vmatpush1.msra.mxu0 %v1241
      %1513 = vmatprep.subr.mxu0 0.0
      %1514 = vmatpush1.msra.mxu0 %v1242
      %1515 = vmatprep.subr.mxu0 0.0
      %1516 = vmatpush1.msra.mxu0 %v1243
      %1517 = vmatprep.subr.mxu0 0.0
      %1518 = vmatpush1.msra.mxu0 %v1244
      %1519 = vmatprep.subr.mxu0 0.0
      %1520 = vmatpush1.msra.mxu0 %v1245
      %1521 = vmatprep.subr.mxu0 0.0
      %1522 = vmatpush1.msra.mxu0 %v1246
      %1523 = vmatprep.subr.mxu0 0.0
      %1524 = vmatpush1.msra.mxu0 %v1247
      %1525 = vmatprep.subr.mxu0 0.0
      %1526 = vmatpush1.msra.mxu0 %v1248
      %1527 = vmatprep.subr.mxu0 0.0
      %1528 = vmatpush1.msra.mxu0 %v1249
      %1529 = vmatprep.subr.mxu0 0.0
      %1530 = vmatpush1.msra.mxu0 %v1250
      %1531 = vmatprep.subr.mxu0 0.0
      %1532 = vmatpush1.msra.mxu0 %v1251
      %1533 = vmatprep.subr.mxu0 0.0
      %1534 = vmatpush1.msra.mxu0 %v1252
      %1535 = vmatprep.subr.mxu0 0.0
      %1536 = vmatpush1.msra.mxu0 %v1253
      %1537 = vmatprep.subr.mxu0 0.0
      %1538 = vmatpush1.msra.mxu0 %v1254
      %1539 = vmatprep.subr.mxu0 0.0
      %1540 = vmatpush1.msra.mxu0 %v1255
      %1541 = vmatprep.mubr.f32.mxu0 %v1476
      %1542 = vmatmul.mubr.f32.gmra.mrb[0].mxu0 %v1474
      %v1543 = vpop.f32.mrb[0].mxu0
      %v1544 = vadd.f32 0.0, %v1543
      %v1545 = vpop.f32.mrb[0].mxu0
      %1546 = vdwg.mxu0
      %vm1547 = vcmask 64512
      %v1549 = vsel %vm1547, %v1544, 0
      %1551 = vmatprep.subr.mxu0 %v1257
      %1552 = vmatpush1.msra.mxu0 %v1256
      %1553 = vmatprep.subr.mxu0 0.0
      %1554 = vmatpush1.msra.mxu0 0.0
      %1555 = vmatprep.subr.mxu0 0.0
      %1556 = vmatpush1.msra.mxu0 0.0
      %1557 = vmatprep.subr.mxu0 0.0
      %1558 = vmatpush1.msra.mxu0 0.0
      %1559 = vmatprep.subr.mxu0 0.0
      %1560 = vmatpush1.msra.mxu0 0.0
      %1561 = vmatprep.subr.mxu0 0.0
      %1562 = vmatpush1.msra.mxu0 0.0
      %1563 = vmatprep.subr.mxu0 0.0
      %1564 = vmatpush1.msra.mxu0 0.0
      %1565 = vmatprep.subr.mxu0 0.0
      %1566 = vmatpush1.msra.mxu0 0.0
      %1567 = vmatprep.subr.mxu0 0.0
      %1568 = vmatpush1.msra.mxu0 0.0
      %1569 = vmatprep.subr.mxu0 0.0
      %1570 = vmatpush1.msra.mxu0 0.0
      %1571 = vmatprep.subr.mxu0 0.0
      %1572 = vmatpush1.msra.mxu0 0.0
      %1573 = vmatprep.subr.mxu0 0.0
      %1574 = vmatpush1.msra.mxu0 0.0
      %1575 = vmatprep.subr.mxu0 0.0
      %1576 = vmatpush1.msra.mxu0 0.0
      %1577 = vmatprep.subr.mxu0 0.0
      %1578 = vmatpush1.msra.mxu0 0.0
      %1579 = vmatprep.subr.mxu0 0.0
      %1580 = vmatpush1.msra.mxu0 0.0
      %1581 = vmatprep.subr.mxu0 0.0
      %1582 = vmatpush1.msra.mxu0 0.0
      %1583 = vmatprep.subr.mxu0 0.0
      %1584 = vmatpush1.msra.mxu0 0.0
      %1585 = vmatprep.subr.mxu0 0.0
      %1586 = vmatpush1.msra.mxu0 0.0
      %1587 = vmatprep.subr.mxu0 0.0
      %1588 = vmatpush1.msra.mxu0 0.0
      %1589 = vmatprep.subr.mxu0 0.0
      %1590 = vmatpush1.msra.mxu0 0.0
      %1591 = vmatprep.subr.mxu0 0.0
      %1592 = vmatpush1.msra.mxu0 0.0
      %1593 = vmatprep.subr.mxu0 0.0
      %1594 = vmatpush1.msra.mxu0 0.0
      %1595 = vmatprep.subr.mxu0 0.0
      %1596 = vmatpush1.msra.mxu0 0.0
      %1597 = vmatprep.subr.mxu0 0.0
      %1598 = vmatpush1.msra.mxu0 0.0
      %1599 = vmatprep.subr.mxu0 0.0
      %1600 = vmatpush1.msra.mxu0 0.0
      %1601 = vmatprep.subr.mxu0 0.0
      %1602 = vmatpush1.msra.mxu0 0.0
      %1603 = vmatprep.subr.mxu0 0.0
      %1604 = vmatpush1.msra.mxu0 0.0
      %1605 = vmatprep.subr.mxu0 0.0
      %1606 = vmatpush1.msra.mxu0 0.0
      %1607 = vmatprep.subr.mxu0 0.0
      %1608 = vmatpush1.msra.mxu0 0.0
      %1609 = vmatprep.subr.mxu0 0.0
      %1610 = vmatpush1.msra.mxu0 0.0
      %1611 = vmatprep.subr.mxu0 0.0
      %1612 = vmatpush1.msra.mxu0 0.0
      %1613 = vmatprep.subr.mxu0 0.0
      %1614 = vmatpush1.msra.mxu0 0.0
      %1615 = vmatprep.mubr.f32.mxu0 0.0
      %1616 = vmatmul.mubr.f32.gmra.mrb[0].mxu0 %v1549
      %v1617 = vpop.f32.mrb[0].mxu0
      %v1618 = vadd.f32 0.0, %v1617
      %v1619 = vpop.f32.mrb[0].mxu0
      %v1620 = vadd.f32 0.0, %v1619
      %1621 = vdwg.mxu0
      %v1622 = vrcp.pop %v1618
      %v1623 = vrcp.pop %v1620
      %v1624 = vmul.f32 %v1474, %v1622
      %v1625 = vmul.f32 %v1476, %v1623
      %v1626 = vlaneseq
      %v1627 = vshrl.u32 %v1626, 7
      %v1628 = vsub.s32 0, %v1627
      %v1629 = vrot.slane %v1624, %v1628
      %v1630 = vlaneseq
      %v1631 = vshrl.u32 %v1630, 7
      %v1632 = vsub.s32 0, %v1631
      %v1633 = vrot.slane %v1625, %v1632
      %v1634 = vmul.f32 %v1438, %v1629
      %v1635 = vmul.f32 %v1440, %v1633
      %v1636 = vmul.f32 %v1444, %v1629
      %v1637 = vmul.f32 %v1446, %v1633
      %1638 = vmatprep.subr.mxu0 0.0
      %1639 = vmatpush1.msra.mxu0 %v1224
      %1640 = vmatprep.subr.mxu0 0.0
      %1641 = vmatpush1.msra.mxu0 %v1225
      %1642 = vmatprep.subr.mxu0 0.0
      %1643 = vmatpush1.msra.mxu0 %v1226
      %1644 = vmatprep.subr.mxu0 0.0
      %1645 = vmatpush1.msra.mxu0 %v1227
      %1646 = vmatprep.subr.mxu0 0.0
      %1647 = vmatpush1.msra.mxu0 %v1228
      %1648 = vmatprep.subr.mxu0 0.0
      %1649 = vmatpush1.msra.mxu0 %v1229
      %1650 = vmatprep.subr.mxu0 0.0
      %1651 = vmatpush1.msra.mxu0 %v1230
      %1652 = vmatprep.subr.mxu0 0.0
      %1653 = vmatpush1.msra.mxu0 %v1231
      %1654 = vmatprep.subr.mxu0 0.0
      %1655 = vmatpush1.msra.mxu0 %v1232
      %1656 = vmatprep.subr.mxu0 0.0
      %1657 = vmatpush1.msra.mxu0 %v1233
      %1658 = vmatprep.subr.mxu0 0.0
      %1659 = vmatpush1.msra.mxu0 %v1234
      %1660 = vmatprep.subr.mxu0 0.0
      %1661 = vmatpush1.msra.mxu0 %v1235
      %1662 = vmatprep.subr.mxu0 0.0
      %1663 = vmatpush1.msra.mxu0 %v1236
      %1664 = vmatprep.subr.mxu0 0.0
      %1665 = vmatpush1.msra.mxu0 %v1237
      %1666 = vmatprep.subr.mxu0 0.0
      %1667 = vmatpush1.msra.mxu0 %v1238
      %1668 = vmatprep.subr.mxu0 0.0
      %1669 = vmatpush1.msra.mxu0 %v1239
      %1670 = vmatprep.subr.mxu0 0.0
      %1671 = vmatpush1.msra.mxu0 %v1240
      %1672 = vmatprep.subr.mxu0 0.0
      %1673 = vmatpush1.msra.mxu0 %v1241
      %1674 = vmatprep.subr.mxu0 0.0
      %1675 = vmatpush1.msra.mxu0 %v1242
      %1676 = vmatprep.subr.mxu0 0.0
      %1677 = vmatpush1.msra.mxu0 %v1243
      %1678 = vmatprep.subr.mxu0 0.0
      %1679 = vmatpush1.msra.mxu0 %v1244
      %1680 = vmatprep.subr.mxu0 0.0
      %1681 = vmatpush1.msra.mxu0 %v1245
      %1682 = vmatprep.subr.mxu0 0.0
      %1683 = vmatpush1.msra.mxu0 %v1246
      %1684 = vmatprep.subr.mxu0 0.0
      %1685 = vmatpush1.msra.mxu0 %v1247
      %1686 = vmatprep.subr.mxu0 0.0
      %1687 = vmatpush1.msra.mxu0 %v1248
      %1688 = vmatprep.subr.mxu0 0.0
      %1689 = vmatpush1.msra.mxu0 %v1249
      %1690 = vmatprep.subr.mxu0 0.0
      %1691 = vmatpush1.msra.mxu0 %v1250
      %1692 = vmatprep.subr.mxu0 0.0
      %1693 = vmatpush1.msra.mxu0 %v1251
      %1694 = vmatprep.subr.mxu0 0.0
      %1695 = vmatpush1.msra.mxu0 %v1252
      %1696 = vmatprep.subr.mxu0 0.0
      %1697 = vmatpush1.msra.mxu0 %v1253
      %1698 = vmatprep.subr.mxu0 0.0
      %1699 = vmatpush1.msra.mxu0 %v1254
      %1700 = vmatprep.subr.mxu0 0.0
      %1701 = vmatpush1.msra.mxu0 %v1255
      %1702 = vmatprep.mubr.f32.mxu0 %v1635
      %1703 = vmatmul.mubr.f32.gmra.mrb[0].mxu0 %v1634
      %v1704 = vpop.f32.mrb[0].mxu0
      %v1705 = vadd.f32 0.0, %v1704
      %v1706 = vpop.f32.mrb[0].mxu0
      %1707 = vmatprep.mubr.f32.mxu0 %v1637
      %1708 = vmatmul.mubr.f32.gmra.mrb[0].mxu0 %v1636
      %v1709 = vpop.f32.mrb[0].mxu0
      %v1710 = vadd.f32 0.0, %v1709
      %v1711 = vpop.f32.mrb[0].mxu0
      %1712 = vdwg.mxu0
      %v1714 = vsel %vm1547, %v1705, 0
      %v1717 = vsel %vm1547, %v1710, 0
      %1719 = vmatprep.subr.mxu0 %v1257
      %1720 = vmatpush1.msra.mxu0 %v1256
      %1721 = vmatprep.subr.mxu0 0.0
      %1722 = vmatpush1.msra.mxu0 0.0
      %1723 = vmatprep.subr.mxu0 0.0
      %1724 = vmatpush1.msra.mxu0 0.0
      %1725 = vmatprep.subr.mxu0 0.0
      %1726 = vmatpush1.msra.mxu0 0.0
      %1727 = vmatprep.subr.mxu0 0.0
      %1728 = vmatpush1.msra.mxu0 0.0
      %1729 = vmatprep.subr.mxu0 0.0
      %1730 = vmatpush1.msra.mxu0 0.0
      %1731 = vmatprep.subr.mxu0 0.0
      %1732 = vmatpush1.msra.mxu0 0.0
      %1733 = vmatprep.subr.mxu0 0.0
      %1734 = vmatpush1.msra.mxu0 0.0
      %1735 = vmatprep.subr.mxu0 0.0
      %1736 = vmatpush1.msra.mxu0 0.0
      %1737 = vmatprep.subr.mxu0 0.0
      %1738 = vmatpush1.msra.mxu0 0.0
      %1739 = vmatprep.subr.mxu0 0.0
      %1740 = vmatpush1.msra.mxu0 0.0
      %1741 = vmatprep.subr.mxu0 0.0
      %1742 = vmatpush1.msra.mxu0 0.0
      %1743 = vmatprep.subr.mxu0 0.0
      %1744 = vmatpush1.msra.mxu0 0.0
      %1745 = vmatprep.subr.mxu0 0.0
      %1746 = vmatpush1.msra.mxu0 0.0
      %1747 = vmatprep.subr.mxu0 0.0
      %1748 = vmatpush1.msra.mxu0 0.0
      %1749 = vmatprep.subr.mxu0 0.0
      %1750 = vmatpush1.msra.mxu0 0.0
      %1751 = vmatprep.subr.mxu0 0.0
      %1752 = vmatpush1.msra.mxu0 0.0
      %1753 = vmatprep.subr.mxu0 0.0
      %1754 = vmatpush1.msra.mxu0 0.0
      %1755 = vmatprep.subr.mxu0 0.0
      %1756 = vmatpush1.msra.mxu0 0.0
      %1757 = vmatprep.subr.mxu0 0.0
      %1758 = vmatpush1.msra.mxu0 0.0
      %1759 = vmatprep.subr.mxu0 0.0
      %1760 = vmatpush1.msra.mxu0 0.0
      %1761 = vmatprep.subr.mxu0 0.0
      %1762 = vmatpush1.msra.mxu0 0.0
      %1763 = vmatprep.subr.mxu0 0.0
      %1764 = vmatpush1.msra.mxu0 0.0
      %1765 = vmatprep.subr.mxu0 0.0
      %1766 = vmatpush1.msra.mxu0 0.0
      %1767 = vmatprep.subr.mxu0 0.0
      %1768 = vmatpush1.msra.mxu0 0.0
      %1769 = vmatprep.subr.mxu0 0.0
      %1770 = vmatpush1.msra.mxu0 0.0
      %1771 = vmatprep.subr.mxu0 0.0
      %1772 = vmatpush1.msra.mxu0 0.0
      %1773 = vmatprep.subr.mxu0 0.0
      %1774 = vmatpush1.msra.mxu0 0.0
      %1775 = vmatprep.subr.mxu0 0.0
      %1776 = vmatpush1.msra.mxu0 0.0
      %1777 = vmatprep.subr.mxu0 0.0
      %1778 = vmatpush1.msra.mxu0 0.0
      %1779 = vmatprep.subr.mxu0 0.0
      %1780 = vmatpush1.msra.mxu0 0.0
      %1781 = vmatprep.subr.mxu0 0.0
      %1782 = vmatpush1.msra.mxu0 0.0
      %1783 = vmatprep.mubr.f32.mxu0 0.0
      %1784 = vmatmul.mubr.f32.gmra.mrb[0].mxu0 %v1714
      %v1785 = vpop.f32.mrb[0].mxu0
      %v1786 = vadd.f32 0.0, %v1785
      %v1787 = vpop.f32.mrb[0].mxu0
      %v1788 = vadd.f32 0.0, %v1787
      %1789 = vmatprep.mubr.f32.mxu0 0.0
      %1790 = vmatmul.mubr.f32.gmra.mrb[0].mxu0 %v1717
      %v1791 = vpop.f32.mrb[0].mxu0
      %v1792 = vadd.f32 0.0, %v1791
      %v1793 = vpop.f32.mrb[0].mxu0
      %v1794 = vadd.f32 0.0, %v1793
      %1795 = vdwg.mxu0
      %v1796 = vmax.f32 %v1448, 0.0
      %v1797 = vmax.f32 %v1450, 0.0
      %v1798 = vmax.f32 %v1454, 0.0
      %v1799 = vmax.f32 %v1456, 0.0
      %v1800 = vmul.f32 %v1796, %v1786
      %v1801 = vmul.f32 %v1797, %v1788
      %v1802 = vmul.f32 %v1798, %v1792
      %v1803 = vmul.f32 %v1799, %v1794
      %v1804 = vld [vmem:[%s12] sm:$0xf]
      %v1805 = vld [vmem:[%s12 + $0x4] sm:$0xf]
      %v1806 = vpack.c.bf16 %v1802, %v1800
      %v1807 = vpack.c.bf16 %v1803, %v1801
      %v1808 = vld [vmem:[%s13] sm:$0xff]
      %v1809 = vld [vmem:[%s13 + $0x8] sm:$0xff]
      %1811 = vset.pattern.permute.xlu0 0
      %1812 = vperm.xlu0 %1811, %v1808
      %v1813 = vpop.permute.xlu0 %1812
      %1816 = vset.pattern.permute.xlu0 0
      %1817 = vperm.xlu0 %1816, %v1809
      %v1818 = vpop.permute.xlu0 %1817
      %v1822 = vunpack.c.l.b16 %v1804
      %v1823 = vunpack.c.l.b16 %v1805
      %v1824 = vpack.c.b16 %v1823, %v1822
      %v1826 = vsel %vm922, %v1824, 0
      %1828 = vmatprep.subr.bf16.mxu0 %v1807
      %1829 = vmatpush1.bf16.msra.mxu0 %v1806
      %1830 = vmatprep.subr.bf16.mxu0 0
      %1831 = vmatpush1.bf16.msra.mxu0 0
      %1832 = vmatprep.subr.bf16.mxu0 0
      %1833 = vmatpush1.bf16.msra.mxu0 0
      %1834 = vmatprep.subr.bf16.mxu0 0
      %1835 = vmatpush1.bf16.msra.mxu0 0
      %1836 = vmatprep.subr.bf16.mxu0 0
      %1837 = vmatpush1.bf16.msra.mxu0 0
      %1838 = vmatprep.subr.bf16.mxu0 0
      %1839 = vmatpush1.bf16.msra.mxu0 0
      %1840 = vmatprep.subr.bf16.mxu0 0
      %1841 = vmatpush1.bf16.msra.mxu0 0
      %1842 = vmatprep.subr.bf16.mxu0 0
      %1843 = vmatpush1.bf16.msra.mxu0 0
      %1844 = vmatprep.subr.bf16.mxu0 0
      %1845 = vmatpush1.bf16.msra.mxu0 0
      %1846 = vmatprep.subr.bf16.mxu0 0
      %1847 = vmatpush1.bf16.msra.mxu0 0
      %1848 = vmatprep.subr.bf16.mxu0 0
      %1849 = vmatpush1.bf16.msra.mxu0 0
      %1850 = vmatprep.subr.bf16.mxu0 0
      %1851 = vmatpush1.bf16.msra.mxu0 0
      %1852 = vmatprep.subr.bf16.mxu0 0
      %1853 = vmatpush1.bf16.msra.mxu0 0
      %1854 = vmatprep.subr.bf16.mxu0 0
      %1855 = vmatpush1.bf16.msra.mxu0 0
      %1856 = vmatprep.subr.bf16.mxu0 0
      %1857 = vmatpush1.bf16.msra.mxu0 0
      %1858 = vmatprep.subr.bf16.mxu0 0
      %1859 = vmatpush1.bf16.msra.mxu0 0
      %1860 = vmatprep.mubr.bf16.mxu0 0
      %1861 = vmatmul.mubr.bf16.gmra.mrb[0].mxu0 %v1826
      %v1862 = vpop.f32.mrb[0].mxu0
      %v1863 = vadd.f32 %v1813, %v1862
      %v1864 = vpop.f32.mrb[0].mxu0
      %v1865 = vadd.f32 %v1813, %v1864
      %v1866 = vpop.f32.mrb[0].mxu0
      %v1867 = vadd.f32 %v1818, %v1866
      %v1868 = vpop.f32.mrb[0].mxu0
      %v1869 = vadd.f32 %v1818, %v1868
      %1870 = vdwg.mxu0
      %v1871 = vadd.f32 %v1216, %v1863
      %v1872 = vadd.f32 %v1218, %v1865
      %v1873 = vadd.f32 %v1220, %v1867
      %v1874 = vadd.f32 %v1222, %v1869
      %v1875 = vld [vmem:[%s14] sm:$0xff]
      %v1876 = vld [vmem:[%s14 + $0x8] sm:$0xff]
      %v1877 = vld [vmem:[%s15] sm:$0xff]
      %v1878 = vld [vmem:[%s15 + $0x8] sm:$0xff]
      %v1879 = vadd.f32 %v1871, %v1872
      %v1880 = vadd.f32 %v1879, %v1873
      %v1881 = vadd.f32 %v1880, %v1874
      %1882 = vadd.xlane.f32.xlu0 %v1881
      %v1883 = vpop.xlane.xlu0 %1882
      %v1884 = vrot.slane %v1883, 4
      %v1885 = vadd.f32 %v1883, %v1884
      %v1886 = vrot.slane %v1885, 2
      %v1887 = vadd.f32 %v1885, %v1886
      %v1888 = vrot.slane %v1887, 1
      %v1889 = vadd.f32 %v1887, %v1888
      %s1890 = vtos %v1889
      %v1891 = vrcp.pop 4096.0
      %s1892 = vtos %v1891
      %s1893 = smul.f32 %s1890, %s1892
      %v1894 = vmul.f32 %v1871, %v1871
      %v1895 = vmul.f32 %v1872, %v1872
      %v1896 = vmul.f32 %v1873, %v1873
      %v1897 = vmul.f32 %v1874, %v1874
      %v1898 = vadd.f32 %v1894, %v1895
      %v1899 = vadd.f32 %v1898, %v1896
      %v1900 = vadd.f32 %v1899, %v1897
      %1901 = vadd.xlane.f32.xlu0 %v1900
      %v1902 = vpop.xlane.xlu0 %1901
      %v1903 = vrot.slane %v1902, 4
      %v1904 = vadd.f32 %v1902, %v1903
      %v1905 = vrot.slane %v1904, 2
      %v1906 = vadd.f32 %v1904, %v1905
      %v1907 = vrot.slane %v1906, 1
      %v1908 = vadd.f32 %v1906, %v1907
      %s1909 = vtos %v1908
      %v1910 = vrcp.pop 4096.0
      %s1911 = vtos %v1910
      %s1912 = smul.f32 %s1909, %s1911
      %s1913 = smul.f32 %s1893, %s1893
      %s1914 = ssub.f32 %s1912, %s1913
      %s1915 = sadd.f32 %s1914, 1e-05
      %v1916 = vstv %s1915
      %v1917 = vrsqrt.pop %v1916
      %s1918 = vtos %v1917
      %v1919 = vstv %s1893
      %v1920 = vsub.f32 %v1871, %v1919
      %v1921 = vsub.f32 %v1872, %v1919
      %v1922 = vsub.f32 %v1873, %v1919
      %v1923 = vsub.f32 %v1874, %v1919
      %v1924 = vstv %s1918
      %v1925 = vmul.f32 %v1920, %v1924
      %v1926 = vmul.f32 %v1921, %v1924
      %v1927 = vmul.f32 %v1922, %v1924
      %v1928 = vmul.f32 %v1923, %v1924
      %1930 = vset.pattern.permute.xlu0 0
      %1931 = vperm.xlu0 %1930, %v1875
      %v1932 = vpop.permute.xlu0 %1931
      %1935 = vset.pattern.permute.xlu0 0
      %1936 = vperm.xlu0 %1935, %v1876
      %v1937 = vpop.permute.xlu0 %1936
      %v1939 = vmul.f32 %v1925, %v1932
      %v1940 = vmul.f32 %v1926, %v1932
      %v1941 = vmul.f32 %v1927, %v1937
      %v1942 = vmul.f32 %v1928, %v1937
      %1944 = vset.pattern.permute.xlu0 0
      %1945 = vperm.xlu0 %1944, %v1877
      %v1946 = vpop.permute.xlu0 %1945
      %1949 = vset.pattern.permute.xlu0 0
      %1950 = vperm.xlu0 %1949, %v1878
      %v1951 = vpop.permute.xlu0 %1950
      %v1953 = vadd.f32 %v1939, %v1946
      %v1954 = vadd.f32 %v1940, %v1946
      %v1955 = vadd.f32 %v1941, %v1951
      %v1956 = vadd.f32 %v1942, %v1951
      %v1957 = vld [vmem:[%s16] sm:$0xf]
      %v1958 = vld [vmem:[%s16 + $0x4] sm:$0xf]
      %v1959 = vld [vmem:[%s16 + $0x8] sm:$0xf]
      %v1960 = vld [vmem:[%s16 + $0xc] sm:$0xf]
      %v1961 = vpack.c.bf16 %v1955, %v1953
      %v1962 = vpack.c.bf16 %v1956, %v1954
      %v1963 = vld [vmem:[%s17] sm:$0xff]
      %v1964 = vld [vmem:[%s17 + $0x8] sm:$0xff]
      %v1965 = vld [vmem:[%s17 + $0x10] sm:$0xff]
      %v1966 = vld [vmem:[%s17 + $0x18] sm:$0xff]
      %1968 = vset.pattern.permute.xlu0 0
      %1969 = vperm.xlu0 %1968, %v1963
      %v1970 = vpop.permute.xlu0 %1969
      %1973 = vset.pattern.permute.xlu0 0
      %1974 = vperm.xlu0 %1973, %v1964
      %v1975 = vpop.permute.xlu0 %1974
      %1978 = vset.pattern.permute.xlu0 0
      %1979 = vperm.xlu0 %1978, %v1965
      %v1980 = vpop.permute.xlu0 %1979
      %1983 = vset.pattern.permute.xlu0 0
      %1984 = vperm.xlu0 %1983, %v1966
      %v1985 = vpop.permute.xlu0 %1984
      %v1991 = vunpack.c.l.b16 %v1957
      %v1992 = vunpack.c.l.b16 %v1958
      %v1993 = vunpack.c.l.b16 %v1959
      %v1994 = vunpack.c.l.b16 %v1960
      %v1995 = vpack.c.b16 %v1992, %v1991
      %v1996 = vpack.c.b16 %v1994, %v1993
      %v1998 = vsel %vm922, %v1995, 0
      %v2001 = vsel %vm922, %v1996, 0
      %2003 = vmatprep.subr.bf16.mxu0 %v1962
      %2004 = vmatpush1.bf16.msra.mxu0 %v1961
      %2005 = vmatprep.subr.bf16.mxu0 0
      %2006 = vmatpush1.bf16.msra.mxu0 0
      %2007 = vmatprep.subr.bf16.mxu0 0
      %2008 = vmatpush1.bf16.msra.mxu0 0
      %2009 = vmatprep.subr.bf16.mxu0 0
      %2010 = vmatpush1.bf16.msra.mxu0 0
      %2011 = vmatprep.subr.bf16.mxu0 0
      %2012 = vmatpush1.bf16.msra.mxu0 0
      %2013 = vmatprep.subr.bf16.mxu0 0
      %2014 = vmatpush1.bf16.msra.mxu0 0
      %2015 = vmatprep.subr.bf16.mxu0 0
      %2016 = vmatpush1.bf16.msra.mxu0 0
      %2017 = vmatprep.subr.bf16.mxu0 0
      %2018 = vmatpush1.bf16.msra.mxu0 0
      %2019 = vmatprep.subr.bf16.mxu0 0
      %2020 = vmatpush1.bf16.msra.mxu0 0
      %2021 = vmatprep.subr.bf16.mxu0 0
      %2022 = vmatpush1.bf16.msra.mxu0 0
      %2023 = vmatprep.subr.bf16.mxu0 0
      %2024 = vmatpush1.bf16.msra.mxu0 0
      %2025 = vmatprep.subr.bf16.mxu0 0
      %2026 = vmatpush1.bf16.msra.mxu0 0
      %2027 = vmatprep.subr.bf16.mxu0 0
      %2028 = vmatpush1.bf16.msra.mxu0 0
      %2029 = vmatprep.subr.bf16.mxu0 0
      %2030 = vmatpush1.bf16.msra.mxu0 0
      %2031 = vmatprep.subr.bf16.mxu0 0
      %2032 = vmatpush1.bf16.msra.mxu0 0
      %2033 = vmatprep.subr.bf16.mxu0 0
      %2034 = vmatpush1.bf16.msra.mxu0 0
      %2035 = vmatprep.mubr.bf16.mxu0 0
      %2036 = vmatmul.mubr.bf16.gmra.mrb[0].mxu0 %v1998
      %v2037 = vpop.f32.mrb[0].mxu0
      %v2038 = vadd.f32 %v1970, %v2037
      %v2039 = vpop.f32.mrb[0].mxu0
      %v2040 = vadd.f32 %v1970, %v2039
      %v2041 = vpop.f32.mrb[0].mxu0
      %v2042 = vadd.f32 %v1975, %v2041
      %v2043 = vpop.f32.mrb[0].mxu0
      %v2044 = vadd.f32 %v1975, %v2043
      %2045 = vmatprep.mubr.bf16.mxu0 0
      %2046 = vmatmul.mubr.bf16.gmra.mrb[0].mxu0 %v2001
      %v2047 = vpop.f32.mrb[0].mxu0
      %v2048 = vadd.f32 %v1980, %v2047
      %v2049 = vpop.f32.mrb[0].mxu0
      %v2050 = vadd.f32 %v1980, %v2049
      %v2051 = vpop.f32.mrb[0].mxu0
      %v2052 = vadd.f32 %v1985, %v2051
      %v2053 = vpop.f32.mrb[0].mxu0
      %v2054 = vadd.f32 %v1985, %v2053
      %2055 = vdwg.mxu0
      %v2056 = vxor.u32 %v2038, 2147483648
      %v2057 = vxor.u32 %v2040, 2147483648
      %v2058 = vxor.u32 %v2042, 2147483648
      %v2059 = vxor.u32 %v2044, 2147483648
      %v2060 = vxor.u32 %v2048, 2147483648
      %v2061 = vxor.u32 %v2050, 2147483648
      %v2062 = vxor.u32 %v2052, 2147483648
      %v2063 = vxor.u32 %v2054, 2147483648
      %v2064 = vmul.f32 %v2056, 1.442695
      %v2065 = vpow.pop %v2064
      %v2066 = vmul.f32 %v2057, 1.442695
      %v2067 = vpow.pop %v2066
      %v2068 = vmul.f32 %v2058, 1.442695
      %v2069 = vpow.pop %v2068
      %v2070 = vmul.f32 %v2059, 1.442695
      %v2071 = vpow.pop %v2070
      %v2072 = vmul.f32 %v2060, 1.442695
      %v2073 = vpow.pop %v2072
      %v2074 = vmul.f32 %v2061, 1.442695
      %v2075 = vpow.pop %v2074
      %v2076 = vmul.f32 %v2062, 1.442695
      %v2077 = vpow.pop %v2076
      %v2078 = vmul.f32 %v2063, 1.442695
      %v2079 = vpow.pop %v2078
      %v2080 = vadd.f32 %v2065, 1.0
      %v2081 = vadd.f32 %v2067, 1.0
      %v2082 = vadd.f32 %v2069, 1.0
      %v2083 = vadd.f32 %v2071, 1.0
      %v2084 = vadd.f32 %v2073, 1.0
      %v2085 = vadd.f32 %v2075, 1.0
      %v2086 = vadd.f32 %v2077, 1.0
      %v2087 = vadd.f32 %v2079, 1.0
      %v2088 = vrcp.pop %v2080
      %v2089 = vmul.f32 1.0, %v2088
      %v2090 = vrcp.pop %v2081
      %v2091 = vmul.f32 1.0, %v2090
      %v2092 = vrcp.pop %v2082
      %v2093 = vmul.f32 1.0, %v2092
      %v2094 = vrcp.pop %v2083
      %v2095 = vmul.f32 1.0, %v2094
      %v2096 = vrcp.pop %v2084
      %v2097 = vmul.f32 1.0, %v2096
      %v2098 = vrcp.pop %v2085
      %v2099 = vmul.f32 1.0, %v2098
      %v2100 = vrcp.pop %v2086
      %v2101 = vmul.f32 1.0, %v2100
      %v2102 = vrcp.pop %v2087
      %v2103 = vmul.f32 1.0, %v2102
      %v2104 = vmul.f32 %v2038, %v2089
      %v2105 = vmul.f32 %v2040, %v2091
      %v2106 = vmul.f32 %v2042, %v2093
      %v2107 = vmul.f32 %v2044, %v2095
      %v2108 = vmul.f32 %v2048, %v2097
      %v2109 = vmul.f32 %v2050, %v2099
      %v2110 = vmul.f32 %v2052, %v2101
      %v2111 = vmul.f32 %v2054, %v2103
      %v2112 = vld [vmem:[%s18] sm:$0xf]
      %v2113 = vld [vmem:[%s18 + $0x4] sm:$0xf]
      %v2114 = vpack.c.bf16 %v2106, %v2104
      %v2115 = vpack.c.bf16 %v2107, %v2105
      %v2116 = vpack.c.bf16 %v2110, %v2108
      %v2117 = vpack.c.bf16 %v2111, %v2109
      %v2118 = vld [vmem:[%s19] sm:$0xff]
      %v2119 = vld [vmem:[%s19 + $0x8] sm:$0xff]
      %2121 = vset.pattern.permute.xlu0 0
      %2122 = vperm.xlu0 %2121, %v2118
      %v2123 = vpop.permute.xlu0 %2122
      %2126 = vset.pattern.permute.xlu0 0
      %2127 = vperm.xlu0 %2126, %v2119
      %v2128 = vpop.permute.xlu0 %2127
      %v2132 = vunpack.c.l.b16 %v2112
      %v2133 = vunpack.c.l.b16 %v2113
      %v2134 = vpack.c.b16 %v2133, %v2132
      %v2136 = vsel %vm1018, %v2134, 0
      %2138 = vmatprep.subr.bf16.mxu0 %v2115
      %2139 = vmatpush1.bf16.msra.mxu0 %v2114
      %2140 = vmatprep.subr.bf16.mxu0 %v2117
      %2141 = vmatpush1.bf16.msra.mxu0 %v2116
      %2142 = vmatprep.subr.bf16.mxu0 0
      %2143 = vmatpush1.bf16.msra.mxu0 0
      %2144 = vmatprep.subr.bf16.mxu0 0
      %2145 = vmatpush1.bf16.msra.mxu0 0
      %2146 = vmatprep.subr.bf16.mxu0 0
      %2147 = vmatpush1.bf16.msra.mxu0 0
      %2148 = vmatprep.subr.bf16.mxu0 0
      %2149 = vmatpush1.bf16.msra.mxu0 0
      %2150 = vmatprep.subr.bf16.mxu0 0
      %2151 = vmatpush1.bf16.msra.mxu0 0
      %2152 = vmatprep.subr.bf16.mxu0 0
      %2153 = vmatpush1.bf16.msra.mxu0 0
      %2154 = vmatprep.subr.bf16.mxu0 0
      %2155 = vmatpush1.bf16.msra.mxu0 0
      %2156 = vmatprep.subr.bf16.mxu0 0
      %2157 = vmatpush1.bf16.msra.mxu0 0
      %2158 = vmatprep.subr.bf16.mxu0 0
      %2159 = vmatpush1.bf16.msra.mxu0 0
      %2160 = vmatprep.subr.bf16.mxu0 0
      %2161 = vmatpush1.bf16.msra.mxu0 0
      %2162 = vmatprep.subr.bf16.mxu0 0
      %2163 = vmatpush1.bf16.msra.mxu0 0
      %2164 = vmatprep.subr.bf16.mxu0 0
      %2165 = vmatpush1.bf16.msra.mxu0 0
      %2166 = vmatprep.subr.bf16.mxu0 0
      %2167 = vmatpush1.bf16.msra.mxu0 0
      %2168 = vmatprep.subr.bf16.mxu0 0
      %2169 = vmatpush1.bf16.msra.mxu0 0
      %2170 = vmatprep.mubr.bf16.mxu0 0
      %2171 = vmatmul.mubr.bf16.gmra.mrb[0].mxu0 %v2136
      %v2172 = vpop.f32.mrb[0].mxu0
      %v2173 = vadd.f32 %v2123, %v2172
      %v2174 = vpop.f32.mrb[0].mxu0
      %v2175 = vadd.f32 %v2123, %v2174
      %v2176 = vpop.f32.mrb[0].mxu0
      %v2177 = vadd.f32 %v2128, %v2176
      %v2178 = vpop.f32.mrb[0].mxu0
      %v2179 = vadd.f32 %v2128, %v2178
      %2180 = vdwg.mxu0
      %v2181 = vadd.f32 %v1871, %v2173
      %v2182 = vadd.f32 %v1872, %v2175
      %v2183 = vadd.f32 %v1873, %v2177
      %v2184 = vadd.f32 %v1874, %v2179
      %s2185 = scalar_lea.vmem %s8, 16
      %v2186 = vld [vmem:[%s2185] sm:$0xff]
      %v2187 = vld [vmem:[%s2185 + $0x8] sm:$0xff]
      %s2188 = scalar_lea.vmem %s9, 16
      %v2189 = vld [vmem:[%s2188] sm:$0xff]
      %v2190 = vld [vmem:[%s2188 + $0x8] sm:$0xff]
      %v2191 = vadd.f32 %v2181, %v2182
      %v2192 = vadd.f32 %v2191, %v2183
      %v2193 = vadd.f32 %v2192, %v2184
      %2194 = vadd.xlane.f32.xlu0 %v2193
      %v2195 = vpop.xlane.xlu0 %2194
      %v2196 = vrot.slane %v2195, 4
      %v2197 = vadd.f32 %v2195, %v2196
      %v2198 = vrot.slane %v2197, 2
      %v2199 = vadd.f32 %v2197, %v2198
      %v2200 = vrot.slane %v2199, 1
      %v2201 = vadd.f32 %v2199, %v2200
      %s2202 = vtos %v2201
      %v2203 = vrcp.pop 4096.0
      %s2204 = vtos %v2203
      %s2205 = smul.f32 %s2202, %s2204
      %v2206 = vmul.f32 %v2181, %v2181
      %v2207 = vmul.f32 %v2182, %v2182
      %v2208 = vmul.f32 %v2183, %v2183
      %v2209 = vmul.f32 %v2184, %v2184
      %v2210 = vadd.f32 %v2206, %v2207
      %v2211 = vadd.f32 %v2210, %v2208
      %v2212 = vadd.f32 %v2211, %v2209
      %2213 = vadd.xlane.f32.xlu0 %v2212
      %v2214 = vpop.xlane.xlu0 %2213
      %v2215 = vrot.slane %v2214, 4
      %v2216 = vadd.f32 %v2214, %v2215
      %v2217 = vrot.slane %v2216, 2
      %v2218 = vadd.f32 %v2216, %v2217
      %v2219 = vrot.slane %v2218, 1
      %v2220 = vadd.f32 %v2218, %v2219
      %s2221 = vtos %v2220
      %v2222 = vrcp.pop 4096.0
      %s2223 = vtos %v2222
      %s2224 = smul.f32 %s2221, %s2223
      %s2225 = smul.f32 %s2205, %s2205
      %s2226 = ssub.f32 %s2224, %s2225
      %s2227 = sadd.f32 %s2226, 1e-05
      %v2228 = vstv %s2227
      %v2229 = vrsqrt.pop %v2228
      %s2230 = vtos %v2229
      %v2231 = vstv %s2205
      %v2232 = vsub.f32 %v2181, %v2231
      %v2233 = vsub.f32 %v2182, %v2231
      %v2234 = vsub.f32 %v2183, %v2231
      %v2235 = vsub.f32 %v2184, %v2231
      %v2236 = vstv %s2230
      %v2237 = vmul.f32 %v2232, %v2236
      %v2238 = vmul.f32 %v2233, %v2236
      %v2239 = vmul.f32 %v2234, %v2236
      %v2240 = vmul.f32 %v2235, %v2236
      %2242 = vset.pattern.permute.xlu0 0
      %2243 = vperm.xlu0 %2242, %v2186
      %v2244 = vpop.permute.xlu0 %2243
      %2247 = vset.pattern.permute.xlu0 0
      %2248 = vperm.xlu0 %2247, %v2187
      %v2249 = vpop.permute.xlu0 %2248
      %v2251 = vmul.f32 %v2237, %v2244
      %v2252 = vmul.f32 %v2238, %v2244
      %v2253 = vmul.f32 %v2239, %v2249
      %v2254 = vmul.f32 %v2240, %v2249
      %2256 = vset.pattern.permute.xlu0 0
      %2257 = vperm.xlu0 %2256, %v2189
      %v2258 = vpop.permute.xlu0 %2257
      %2261 = vset.pattern.permute.xlu0 0
      %2262 = vperm.xlu0 %2261, %v2190
      %v2263 = vpop.permute.xlu0 %2262
      %v2265 = vadd.f32 %v2251, %v2258
      %v2266 = vadd.f32 %v2252, %v2258
      %v2267 = vadd.f32 %v2253, %v2263
      %v2268 = vadd.f32 %v2254, %v2263
      %v2269 = vpack.c.bf16 %v2267, %v2265
      %v2270 = vpack.c.bf16 %v2268, %v2266
      %s2271 = scalar_lea.vmem %s10, 20
      %v2272 = vld [vmem:[%s2271] sm:$0xf]
      %v2273 = vld [vmem:[%s2271 + $0x4] sm:$0xf]
      %v2274 = vld [vmem:[%s2271 + $0x8] sm:$0xf]
      %v2275 = vld [vmem:[%s2271 + $0xc] sm:$0xf]
      %v2276 = vld [vmem:[%s2271 + $0x10] sm:$0xf]
      %s2277 = scalar_lea.vmem %s11, 40
      %v2278 = vld [vmem:[%s2277] sm:$0xff]
      %v2279 = vld [vmem:[%s2277 + $0x8] sm:$0xff]
      %v2280 = vld [vmem:[%s2277 + $0x10] sm:$0xff]
      %v2281 = vld [vmem:[%s2277 + $0x18] sm:$0xff]
      %v2282 = vld [vmem:[%s2277 + $0x20] sm:$0xff]
      %2284 = vset.pattern.permute.xlu0 0
      %2285 = vperm.xlu0 %2284, %v2278
      %v2286 = vpop.permute.xlu0 %2285
      %2289 = vset.pattern.permute.xlu0 0
      %2290 = vperm.xlu0 %2289, %v2279
      %v2291 = vpop.permute.xlu0 %2290
      %2294 = vset.pattern.permute.xlu0 0
      %2295 = vperm.xlu0 %2294, %v2280
      %v2296 = vpop.permute.xlu0 %2295
      %2299 = vset.pattern.permute.xlu0 0
      %2300 = vperm.xlu0 %2299, %v2281
      %v2301 = vpop.permute.xlu0 %2300
      %2304 = vset.pattern.permute.xlu0 0
      %2305 = vperm.xlu0 %2304, %v2282
      %v2306 = vpop.permute.xlu0 %2305
      %v2313 = vunpack.c.l.b16 %v2272
      %v2314 = vunpack.c.l.b16 %v2273
      %v2315 = vunpack.c.l.b16 %v2274
      %v2316 = vunpack.c.l.b16 %v2275
      %v2317 = vunpack.c.l.b16 %v2276
      %v2318 = vpack.c.b16 %v2314, %v2313
      %v2319 = vpack.c.b16 %v2316, %v2315
      %v2320 = vpack.c.b16 %v2317, %v2317
      %v2322 = vsel %vm922, %v2318, 0
      %v2325 = vsel %vm922, %v2319, 0
      %v2328 = vsel %vm922, %v2320, 0
      %2330 = vmatprep.subr.bf16.mxu0 %v2270
      %2331 = vmatpush1.bf16.msra.mxu0 %v2269
      %2332 = vmatprep.subr.bf16.mxu0 0
      %2333 = vmatpush1.bf16.msra.mxu0 0
      %2334 = vmatprep.subr.bf16.mxu0 0
      %2335 = vmatpush1.bf16.msra.mxu0 0
      %2336 = vmatprep.subr.bf16.mxu0 0
      %2337 = vmatpush1.bf16.msra.mxu0 0
      %2338 = vmatprep.subr.bf16.mxu0 0
      %2339 = vmatpush1.bf16.msra.mxu0 0
      %2340 = vmatprep.subr.bf16.mxu0 0
      %2341 = vmatpush1.bf16.msra.mxu0 0
      %2342 = vmatprep.subr.bf16.mxu0 0
      %2343 = vmatpush1.bf16.msra.mxu0 0
      %2344 = vmatprep.subr.bf16.mxu0 0
      %2345 = vmatpush1.bf16.msra.mxu0 0
      %2346 = vmatprep.subr.bf16.mxu0 0
      %2347 = vmatpush1.bf16.msra.mxu0 0
      %2348 = vmatprep.subr.bf16.mxu0 0
      %2349 = vmatpush1.bf16.msra.mxu0 0
      %2350 = vmatprep.subr.bf16.mxu0 0
      %2351 = vmatpush1.bf16.msra.mxu0 0
      %2352 = vmatprep.subr.bf16.mxu0 0
      %2353 = vmatpush1.bf16.msra.mxu0 0
      %2354 = vmatprep.subr.bf16.mxu0 0
      %2355 = vmatpush1.bf16.msra.mxu0 0
      %2356 = vmatprep.subr.bf16.mxu0 0
      %2357 = vmatpush1.bf16.msra.mxu0 0
      %2358 = vmatprep.subr.bf16.mxu0 0
      %2359 = vmatpush1.bf16.msra.mxu0 0
      %2360 = vmatprep.subr.bf16.mxu0 0
      %2361 = vmatpush1.bf16.msra.mxu0 0
      %2362 = vmatprep.mubr.bf16.mxu0 0
      %2363 = vmatmul.mubr.bf16.gmra.mrb[0].mxu0 %v2322
      %v2364 = vpop.f32.mrb[0].mxu0
      %v2365 = vadd.f32 %v2286, %v2364
      %v2366 = vpop.f32.mrb[0].mxu0
      %v2367 = vadd.f32 %v2286, %v2366
      %v2368 = vpop.f32.mrb[0].mxu0
      %v2369 = vadd.f32 %v2291, %v2368
      %v2370 = vpop.f32.mrb[0].mxu0
      %v2371 = vadd.f32 %v2291, %v2370
      %2372 = vmatprep.mubr.bf16.mxu0 0
      %2373 = vmatmul.mubr.bf16.gmra.mrb[0].mxu0 %v2325
      %v2374 = vpop.f32.mrb[0].mxu0
      %v2375 = vadd.f32 %v2296, %v2374
      %v2376 = vpop.f32.mrb[0].mxu0
      %v2377 = vadd.f32 %v2296, %v2376
      %v2378 = vpop.f32.mrb[0].mxu0
      %v2379 = vadd.f32 %v2301, %v2378
      %v2380 = vpop.f32.mrb[0].mxu0
      %v2381 = vadd.f32 %v2301, %v2380
      %2382 = vmatprep.mubr.bf16.mxu0 0
      %2383 = vmatmul.mubr.bf16.gmra.mrb[0].mxu0 %v2328
      %v2384 = vpop.f32.mrb[0].mxu0
      %v2385 = vadd.f32 %v2306, %v2384
      %v2386 = vpop.f32.mrb[0].mxu0
      %v2387 = vadd.f32 %v2306, %v2386
      %v2388 = vpop.f32.mrb[0].mxu0
      %v2389 = vpop.f32.mrb[0].mxu0
      %2390 = vdwg.mxu0
      %v2391 = vmax.f32 %v2365, %v2367
      %2392 = vmax.xlane.f32.xlu0 %v2391
      %v2393 = vpop.xlane.xlu0 %2392
      %v2394 = vrot.slane %v2393, 4
      %v2395 = vmax.f32 %v2393, %v2394
      %v2396 = vrot.slane %v2395, 2
      %v2397 = vmax.f32 %v2395, %v2396
      %v2398 = vrot.slane %v2397, 1
      %v2399 = vmax.f32 %v2397, %v2398
      %s2400 = vtos %v2399
      %v2401 = vstv %s2400
      %v2402 = vsub.f32 %v2365, %v2401
      %v2403 = vsub.f32 %v2367, %v2401
      %v2404 = vmul.f32 %v2402, 1.442695
      %v2405 = vpow.pop %v2404
      %v2406 = vmul.f32 %v2403, 1.442695
      %v2407 = vpow.pop %v2406
      %2408 = vmatprep.subr.mxu0 0.0
      %2409 = vmatpush1.msra.mxu0 %v1224
      %2410 = vmatprep.subr.mxu0 0.0
      %2411 = vmatpush1.msra.mxu0 %v1225
      %2412 = vmatprep.subr.mxu0 0.0
      %2413 = vmatpush1.msra.mxu0 %v1226
      %2414 = vmatprep.subr.mxu0 0.0
      %2415 = vmatpush1.msra.mxu0 %v1227
      %2416 = vmatprep.subr.mxu0 0.0
      %2417 = vmatpush1.msra.mxu0 %v1228
      %2418 = vmatprep.subr.mxu0 0.0
      %2419 = vmatpush1.msra.mxu0 %v1229
      %2420 = vmatprep.subr.mxu0 0.0
      %2421 = vmatpush1.msra.mxu0 %v1230
      %2422 = vmatprep.subr.mxu0 0.0
      %2423 = vmatpush1.msra.mxu0 %v1231
      %2424 = vmatprep.subr.mxu0 0.0
      %2425 = vmatpush1.msra.mxu0 %v1232
      %2426 = vmatprep.subr.mxu0 0.0
      %2427 = vmatpush1.msra.mxu0 %v1233
      %2428 = vmatprep.subr.mxu0 0.0
      %2429 = vmatpush1.msra.mxu0 %v1234
      %2430 = vmatprep.subr.mxu0 0.0
      %2431 = vmatpush1.msra.mxu0 %v1235
      %2432 = vmatprep.subr.mxu0 0.0
      %2433 = vmatpush1.msra.mxu0 %v1236
      %2434 = vmatprep.subr.mxu0 0.0
      %2435 = vmatpush1.msra.mxu0 %v1237
      %2436 = vmatprep.subr.mxu0 0.0
      %2437 = vmatpush1.msra.mxu0 %v1238
      %2438 = vmatprep.subr.mxu0 0.0
      %2439 = vmatpush1.msra.mxu0 %v1239
      %2440 = vmatprep.subr.mxu0 0.0
      %2441 = vmatpush1.msra.mxu0 %v1240
      %2442 = vmatprep.subr.mxu0 0.0
      %2443 = vmatpush1.msra.mxu0 %v1241
      %2444 = vmatprep.subr.mxu0 0.0
      %2445 = vmatpush1.msra.mxu0 %v1242
      %2446 = vmatprep.subr.mxu0 0.0
      %2447 = vmatpush1.msra.mxu0 %v1243
      %2448 = vmatprep.subr.mxu0 0.0
      %2449 = vmatpush1.msra.mxu0 %v1244
      %2450 = vmatprep.subr.mxu0 0.0
      %2451 = vmatpush1.msra.mxu0 %v1245
      %2452 = vmatprep.subr.mxu0 0.0
      %2453 = vmatpush1.msra.mxu0 %v1246
      %2454 = vmatprep.subr.mxu0 0.0
      %2455 = vmatpush1.msra.mxu0 %v1247
      %2456 = vmatprep.subr.mxu0 0.0
      %2457 = vmatpush1.msra.mxu0 %v1248
      %2458 = vmatprep.subr.mxu0 0.0
      %2459 = vmatpush1.msra.mxu0 %v1249
      %2460 = vmatprep.subr.mxu0 0.0
      %2461 = vmatpush1.msra.mxu0 %v1250
      %2462 = vmatprep.subr.mxu0 0.0
      %2463 = vmatpush1.msra.mxu0 %v1251
      %2464 = vmatprep.subr.mxu0 0.0
      %2465 = vmatpush1.msra.mxu0 %v1252
      %2466 = vmatprep.subr.mxu0 0.0
      %2467 = vmatpush1.msra.mxu0 %v1253
      %2468 = vmatprep.subr.mxu0 0.0
      %2469 = vmatpush1.msra.mxu0 %v1254
      %2470 = vmatprep.subr.mxu0 0.0
      %2471 = vmatpush1.msra.mxu0 %v1255
      %2472 = vmatprep.mubr.f32.mxu0 %v2407
      %2473 = vmatmul.mubr.f32.gmra.mrb[0].mxu0 %v2405
      %v2474 = vpop.f32.mrb[0].mxu0
      %v2475 = vadd.f32 0.0, %v2474
      %v2476 = vpop.f32.mrb[0].mxu0
      %2477 = vdwg.mxu0
      %v2479 = vsel %vm1547, %v2475, 0
      %2481 = vmatprep.subr.mxu0 %v1257
      %2482 = vmatpush1.msra.mxu0 %v1256
      %2483 = vmatprep.subr.mxu0 0.0
      %2484 = vmatpush1.msra.mxu0 0.0
      %2485 = vmatprep.subr.mxu0 0.0
      %2486 = vmatpush1.msra.mxu0 0.0
      %2487 = vmatprep.subr.mxu0 0.0
      %2488 = vmatpush1.msra.mxu0 0.0
      %2489 = vmatprep.subr.mxu0 0.0
      %2490 = vmatpush1.msra.mxu0 0.0
      %2491 = vmatprep.subr.mxu0 0.0
      %2492 = vmatpush1.msra.mxu0 0.0
      %2493 = vmatprep.subr.mxu0 0.0
      %2494 = vmatpush1.msra.mxu0 0.0
      %2495 = vmatprep.subr.mxu0 0.0
      %2496 = vmatpush1.msra.mxu0 0.0
      %2497 = vmatprep.subr.mxu0 0.0
      %2498 = vmatpush1.msra.mxu0 0.0
      %2499 = vmatprep.subr.mxu0 0.0
      %2500 = vmatpush1.msra.mxu0 0.0
      %2501 = vmatprep.subr.mxu0 0.0
      %2502 = vmatpush1.msra.mxu0 0.0
      %2503 = vmatprep.subr.mxu0 0.0
      %2504 = vmatpush1.msra.mxu0 0.0
      %2505 = vmatprep.subr.mxu0 0.0
      %2506 = vmatpush1.msra.mxu0 0.0
      %2507 = vmatprep.subr.mxu0 0.0
      %2508 = vmatpush1.msra.mxu0 0.0
      %2509 = vmatprep.subr.mxu0 0.0
      %2510 = vmatpush1.msra.mxu0 0.0
      %2511 = vmatprep.subr.mxu0 0.0
      %2512 = vmatpush1.msra.mxu0 0.0
      %2513 = vmatprep.subr.mxu0 0.0
      %2514 = vmatpush1.msra.mxu0 0.0
      %2515 = vmatprep.subr.mxu0 0.0
      %2516 = vmatpush1.msra.mxu0 0.0
      %2517 = vmatprep.subr.mxu0 0.0
      %2518 = vmatpush1.msra.mxu0 0.0
      %2519 = vmatprep.subr.mxu0 0.0
      %2520 = vmatpush1.msra.mxu0 0.0
      %2521 = vmatprep.subr.mxu0 0.0
      %2522 = vmatpush1.msra.mxu0 0.0
      %2523 = vmatprep.subr.mxu0 0.0
      %2524 = vmatpush1.msra.mxu0 0.0
      %2525 = vmatprep.subr.mxu0 0.0
      %2526 = vmatpush1.msra.mxu0 0.0
      %2527 = vmatprep.subr.mxu0 0.0
      %2528 = vmatpush1.msra.mxu0 0.0
      %2529 = vmatprep.subr.mxu0 0.0
      %2530 = vmatpush1.msra.mxu0 0.0
      %2531 = vmatprep.subr.mxu0 0.0
      %2532 = vmatpush1.msra.mxu0 0.0
      %2533 = vmatprep.subr.mxu0 0.0
      %2534 = vmatpush1.msra.mxu0 0.0
      %2535 = vmatprep.subr.mxu0 0.0
      %2536 = vmatpush1.msra.mxu0 0.0
      %2537 = vmatprep.subr.mxu0 0.0
      %2538 = vmatpush1.msra.mxu0 0.0
      %2539 = vmatprep.subr.mxu0 0.0
      %2540 = vmatpush1.msra.mxu0 0.0
      %2541 = vmatprep.subr.mxu0 0.0
      %2542 = vmatpush1.msra.mxu0 0.0
      %2543 = vmatprep.subr.mxu0 0.0
      %2544 = vmatpush1.msra.mxu0 0.0
      %2545 = vmatprep.mubr.f32.mxu0 0.0
      %2546 = vmatmul.mubr.f32.gmra.mrb[0].mxu0 %v2479
      %v2547 = vpop.f32.mrb[0].mxu0
      %v2548 = vadd.f32 0.0, %v2547
      %v2549 = vpop.f32.mrb[0].mxu0
      %v2550 = vadd.f32 0.0, %v2549
      %2551 = vdwg.mxu0
      %v2552 = vrcp.pop %v2548
      %v2553 = vrcp.pop %v2550
      %v2554 = vmul.f32 %v2405, %v2552
      %v2555 = vmul.f32 %v2407, %v2553
      %v2556 = vlaneseq
      %v2557 = vshrl.u32 %v2556, 7
      %v2558 = vsub.s32 0, %v2557
      %v2559 = vrot.slane %v2554, %v2558
      %v2560 = vlaneseq
      %v2561 = vshrl.u32 %v2560, 7
      %v2562 = vsub.s32 0, %v2561
      %v2563 = vrot.slane %v2555, %v2562
      %v2564 = vmul.f32 %v2369, %v2559
      %v2565 = vmul.f32 %v2371, %v2563
      %v2566 = vmul.f32 %v2375, %v2559
      %v2567 = vmul.f32 %v2377, %v2563
      %2568 = vmatprep.subr.mxu0 0.0
      %2569 = vmatpush1.msra.mxu0 %v1224
      %2570 = vmatprep.subr.mxu0 0.0
      %2571 = vmatpush1.msra.mxu0 %v1225
      %2572 = vmatprep.subr.mxu0 0.0
      %2573 = vmatpush1.msra.mxu0 %v1226
      %2574 = vmatprep.subr.mxu0 0.0
      %2575 = vmatpush1.msra.mxu0 %v1227
      %2576 = vmatprep.subr.mxu0 0.0
      %2577 = vmatpush1.msra.mxu0 %v1228
      %2578 = vmatprep.subr.mxu0 0.0
      %2579 = vmatpush1.msra.mxu0 %v1229
      %2580 = vmatprep.subr.mxu0 0.0
      %2581 = vmatpush1.msra.mxu0 %v1230
      %2582 = vmatprep.subr.mxu0 0.0
      %2583 = vmatpush1.msra.mxu0 %v1231
      %2584 = vmatprep.subr.mxu0 0.0
      %2585 = vmatpush1.msra.mxu0 %v1232
      %2586 = vmatprep.subr.mxu0 0.0
      %2587 = vmatpush1.msra.mxu0 %v1233
      %2588 = vmatprep.subr.mxu0 0.0
      %2589 = vmatpush1.msra.mxu0 %v1234
      %2590 = vmatprep.subr.mxu0 0.0
      %2591 = vmatpush1.msra.mxu0 %v1235
      %2592 = vmatprep.subr.mxu0 0.0
      %2593 = vmatpush1.msra.mxu0 %v1236
      %2594 = vmatprep.subr.mxu0 0.0
      %2595 = vmatpush1.msra.mxu0 %v1237
      %2596 = vmatprep.subr.mxu0 0.0
      %2597 = vmatpush1.msra.mxu0 %v1238
      %2598 = vmatprep.subr.mxu0 0.0
      %2599 = vmatpush1.msra.mxu0 %v1239
      %2600 = vmatprep.subr.mxu0 0.0
      %2601 = vmatpush1.msra.mxu0 %v1240
      %2602 = vmatprep.subr.mxu0 0.0
      %2603 = vmatpush1.msra.mxu0 %v1241
      %2604 = vmatprep.subr.mxu0 0.0
      %2605 = vmatpush1.msra.mxu0 %v1242
      %2606 = vmatprep.subr.mxu0 0.0
      %2607 = vmatpush1.msra.mxu0 %v1243
      %2608 = vmatprep.subr.mxu0 0.0
      %2609 = vmatpush1.msra.mxu0 %v1244
      %2610 = vmatprep.subr.mxu0 0.0
      %2611 = vmatpush1.msra.mxu0 %v1245
      %2612 = vmatprep.subr.mxu0 0.0
      %2613 = vmatpush1.msra.mxu0 %v1246
      %2614 = vmatprep.subr.mxu0 0.0
      %2615 = vmatpush1.msra.mxu0 %v1247
      %2616 = vmatprep.subr.mxu0 0.0
      %2617 = vmatpush1.msra.mxu0 %v1248
      %2618 = vmatprep.subr.mxu0 0.0
      %2619 = vmatpush1.msra.mxu0 %v1249
      %2620 = vmatprep.subr.mxu0 0.0
      %2621 = vmatpush1.msra.mxu0 %v1250
      %2622 = vmatprep.subr.mxu0 0.0
      %2623 = vmatpush1.msra.mxu0 %v1251
      %2624 = vmatprep.subr.mxu0 0.0
      %2625 = vmatpush1.msra.mxu0 %v1252
      %2626 = vmatprep.subr.mxu0 0.0
      %2627 = vmatpush1.msra.mxu0 %v1253
      %2628 = vmatprep.subr.mxu0 0.0
      %2629 = vmatpush1.msra.mxu0 %v1254
      %2630 = vmatprep.subr.mxu0 0.0
      %2631 = vmatpush1.msra.mxu0 %v1255
      %2632 = vmatprep.mubr.f32.mxu0 %v2565
      %2633 = vmatmul.mubr.f32.gmra.mrb[0].mxu0 %v2564
      %v2634 = vpop.f32.mrb[0].mxu0
      %v2635 = vadd.f32 0.0, %v2634
      %v2636 = vpop.f32.mrb[0].mxu0
      %2637 = vmatprep.mubr.f32.mxu0 %v2567
      %2638 = vmatmul.mubr.f32.gmra.mrb[0].mxu0 %v2566
      %v2639 = vpop.f32.mrb[0].mxu0
      %v2640 = vadd.f32 0.0, %v2639
      %v2641 = vpop.f32.mrb[0].mxu0
      %2642 = vdwg.mxu0
      %v2644 = vsel %vm1547, %v2635, 0
      %v2647 = vsel %vm1547, %v2640, 0
      %2649 = vmatprep.subr.mxu0 %v1257
      %2650 = vmatpush1.msra.mxu0 %v1256
      %2651 = vmatprep.subr.mxu0 0.0
      %2652 = vmatpush1.msra.mxu0 0.0
      %2653 = vmatprep.subr.mxu0 0.0
      %2654 = vmatpush1.msra.mxu0 0.0
      %2655 = vmatprep.subr.mxu0 0.0
      %2656 = vmatpush1.msra.mxu0 0.0
      %2657 = vmatprep.subr.mxu0 0.0
      %2658 = vmatpush1.msra.mxu0 0.0
      %2659 = vmatprep.subr.mxu0 0.0
      %2660 = vmatpush1.msra.mxu0 0.0
      %2661 = vmatprep.subr.mxu0 0.0
      %2662 = vmatpush1.msra.mxu0 0.0
      %2663 = vmatprep.subr.mxu0 0.0
      %2664 = vmatpush1.msra.mxu0 0.0
      %2665 = vmatprep.subr.mxu0 0.0
      %2666 = vmatpush1.msra.mxu0 0.0
      %2667 = vmatprep.subr.mxu0 0.0
      %2668 = vmatpush1.msra.mxu0 0.0
      %2669 = vmatprep.subr.mxu0 0.0
      %2670 = vmatpush1.msra.mxu0 0.0
      %2671 = vmatprep.subr.mxu0 0.0
      %2672 = vmatpush1.msra.mxu0 0.0
      %2673 = vmatprep.subr.mxu0 0.0
      %2674 = vmatpush1.msra.mxu0 0.0
      %2675 = vmatprep.subr.mxu0 0.0
      %2676 = vmatpush1.msra.mxu0 0.0
      %2677 = vmatprep.subr.mxu0 0.0
      %2678 = vmatpush1.msra.mxu0 0.0
      %2679 = vmatprep.subr.mxu0 0.0
      %2680 = vmatpush1.msra.mxu0 0.0
      %2681 = vmatprep.subr.mxu0 0.0
      %2682 = vmatpush1.msra.mxu0 0.0
      %2683 = vmatprep.subr.mxu0 0.0
      %2684 = vmatpush1.msra.mxu0 0.0
      %2685 = vmatprep.subr.mxu0 0.0
      %2686 = vmatpush1.msra.mxu0 0.0
      %2687 = vmatprep.subr.mxu0 0.0
      %2688 = vmatpush1.msra.mxu0 0.0
      %2689 = vmatprep.subr.mxu0 0.0
      %2690 = vmatpush1.msra.mxu0 0.0
      %2691 = vmatprep.subr.mxu0 0.0
      %2692 = vmatpush1.msra.mxu0 0.0
      %2693 = vmatprep.subr.mxu0 0.0
      %2694 = vmatpush1.msra.mxu0 0.0
      %2695 = vmatprep.subr.mxu0 0.0
      %2696 = vmatpush1.msra.mxu0 0.0
      %2697 = vmatprep.subr.mxu0 0.0
      %2698 = vmatpush1.msra.mxu0 0.0
      %2699 = vmatprep.subr.mxu0 0.0
      %2700 = vmatpush1.msra.mxu0 0.0
      %2701 = vmatprep.subr.mxu0 0.0
      %2702 = vmatpush1.msra.mxu0 0.0
      %2703 = vmatprep.subr.mxu0 0.0
      %2704 = vmatpush1.msra.mxu0 0.0
      %2705 = vmatprep.subr.mxu0 0.0
      %2706 = vmatpush1.msra.mxu0 0.0
      %2707 = vmatprep.subr.mxu0 0.0
      %2708 = vmatpush1.msra.mxu0 0.0
      %2709 = vmatprep.subr.mxu0 0.0
      %2710 = vmatpush1.msra.mxu0 0.0
      %2711 = vmatprep.subr.mxu0 0.0
      %2712 = vmatpush1.msra.mxu0 0.0
      %2713 = vmatprep.mubr.f32.mxu0 0.0
      %2714 = vmatmul.mubr.f32.gmra.mrb[0].mxu0 %v2644
      %v2715 = vpop.f32.mrb[0].mxu0
      %v2716 = vadd.f32 0.0, %v2715
      %v2717 = vpop.f32.mrb[0].mxu0
      %v2718 = vadd.f32 0.0, %v2717
      %2719 = vmatprep.mubr.f32.mxu0 0.0
      %2720 = vmatmul.mubr.f32.gmra.mrb[0].mxu0 %v2647
      %v2721 = vpop.f32.mrb[0].mxu0
      %v2722 = vadd.f32 0.0, %v2721
      %v2723 = vpop.f32.mrb[0].mxu0
      %v2724 = vadd.f32 0.0, %v2723
      %2725 = vdwg.mxu0
      %v2726 = vmax.f32 %v2379, 0.0
      %v2727 = vmax.f32 %v2381, 0.0
      %v2728 = vmax.f32 %v2385, 0.0
      %v2729 = vmax.f32 %v2387, 0.0
      %v2730 = vmul.f32 %v2726, %v2716
      %v2731 = vmul.f32 %v2727, %v2718
      %v2732 = vmul.f32 %v2728, %v2722
      %v2733 = vmul.f32 %v2729, %v2724
      %s2734 = scalar_lea.vmem %s12, 8
      %v2735 = vld [vmem:[%s2734] sm:$0xf]
      %v2736 = vld [vmem:[%s2734 + $0x4] sm:$0xf]
      %v2737 = vpack.c.bf16 %v2732, %v2730
      %v2738 = vpack.c.bf16 %v2733, %v2731
      %s2739 = scalar_lea.vmem %s13, 16
      %v2740 = vld [vmem:[%s2739] sm:$0xff]
      %v2741 = vld [vmem:[%s2739 + $0x8] sm:$0xff]
      %2743 = vset.pattern.permute.xlu0 0
      %2744 = vperm.xlu0 %2743, %v2740
      %v2745 = vpop.permute.xlu0 %2744
      %2748 = vset.pattern.permute.xlu0 0
      %2749 = vperm.xlu0 %2748, %v2741
      %v2750 = vpop.permute.xlu0 %2749
      %v2754 = vunpack.c.l.b16 %v2735
      %v2755 = vunpack.c.l.b16 %v2736
      %v2756 = vpack.c.b16 %v2755, %v2754
      %v2758 = vsel %vm922, %v2756, 0
      %2760 = vmatprep.subr.bf16.mxu0 %v2738
      %2761 = vmatpush1.bf16.msra.mxu0 %v2737
      %2762 = vmatprep.subr.bf16.mxu0 0
      %2763 = vmatpush1.bf16.msra.mxu0 0
      %2764 = vmatprep.subr.bf16.mxu0 0
      %2765 = vmatpush1.bf16.msra.mxu0 0
      %2766 = vmatprep.subr.bf16.mxu0 0
      %2767 = vmatpush1.bf16.msra.mxu0 0
      %2768 = vmatprep.subr.bf16.mxu0 0
      %2769 = vmatpush1.bf16.msra.mxu0 0
      %2770 = vmatprep.subr.bf16.mxu0 0
      %2771 = vmatpush1.bf16.msra.mxu0 0
      %2772 = vmatprep.subr.bf16.mxu0 0
      %2773 = vmatpush1.bf16.msra.mxu0 0
      %2774 = vmatprep.subr.bf16.mxu0 0
      %2775 = vmatpush1.bf16.msra.mxu0 0
      %2776 = vmatprep.subr.bf16.mxu0 0
      %2777 = vmatpush1.bf16.msra.mxu0 0
      %2778 = vmatprep.subr.bf16.mxu0 0
      %2779 = vmatpush1.bf16.msra.mxu0 0
      %2780 = vmatprep.subr.bf16.mxu0 0
      %2781 = vmatpush1.bf16.msra.mxu0 0
      %2782 = vmatprep.subr.bf16.mxu0 0
      %2783 = vmatpush1.bf16.msra.mxu0 0
      %2784 = vmatprep.subr.bf16.mxu0 0
      %2785 = vmatpush1.bf16.msra.mxu0 0
      %2786 = vmatprep.subr.bf16.mxu0 0
      %2787 = vmatpush1.bf16.msra.mxu0 0
      %2788 = vmatprep.subr.bf16.mxu0 0
      %2789 = vmatpush1.bf16.msra.mxu0 0
      %2790 = vmatprep.subr.bf16.mxu0 0
      %2791 = vmatpush1.bf16.msra.mxu0 0
      %2792 = vmatprep.mubr.bf16.mxu0 0
      %2793 = vmatmul.mubr.bf16.gmra.mrb[0].mxu0 %v2758
      %v2794 = vpop.f32.mrb[0].mxu0
      %v2795 = vadd.f32 %v2745, %v2794
      %v2796 = vpop.f32.mrb[0].mxu0
      %v2797 = vadd.f32 %v2745, %v2796
      %v2798 = vpop.f32.mrb[0].mxu0
      %v2799 = vadd.f32 %v2750, %v2798
      %v2800 = vpop.f32.mrb[0].mxu0
      %v2801 = vadd.f32 %v2750, %v2800
      %2802 = vdwg.mxu0
      %v2803 = vadd.f32 %v2181, %v2795
      %v2804 = vadd.f32 %v2182, %v2797
      %v2805 = vadd.f32 %v2183, %v2799
      %v2806 = vadd.f32 %v2184, %v2801
      %s2807 = scalar_lea.vmem %s14, 16
      %v2808 = vld [vmem:[%s2807] sm:$0xff]
      %v2809 = vld [vmem:[%s2807 + $0x8] sm:$0xff]
      %s2810 = scalar_lea.vmem %s15, 16
      %v2811 = vld [vmem:[%s2810] sm:$0xff]
      %v2812 = vld [vmem:[%s2810 + $0x8] sm:$0xff]
      %v2813 = vadd.f32 %v2803, %v2804
      %v2814 = vadd.f32 %v2813, %v2805
      %v2815 = vadd.f32 %v2814, %v2806
      %2816 = vadd.xlane.f32.xlu0 %v2815
      %v2817 = vpop.xlane.xlu0 %2816
      %v2818 = vrot.slane %v2817, 4
      %v2819 = vadd.f32 %v2817, %v2818
      %v2820 = vrot.slane %v2819, 2
      %v2821 = vadd.f32 %v2819, %v2820
      %v2822 = vrot.slane %v2821, 1
      %v2823 = vadd.f32 %v2821, %v2822
      %s2824 = vtos %v2823
      %v2825 = vrcp.pop 4096.0
      %s2826 = vtos %v2825
      %s2827 = smul.f32 %s2824, %s2826
      %v2828 = vmul.f32 %v2803, %v2803
      %v2829 = vmul.f32 %v2804, %v2804
      %v2830 = vmul.f32 %v2805, %v2805
      %v2831 = vmul.f32 %v2806, %v2806
      %v2832 = vadd.f32 %v2828, %v2829
      %v2833 = vadd.f32 %v2832, %v2830
      %v2834 = vadd.f32 %v2833, %v2831
      %2835 = vadd.xlane.f32.xlu0 %v2834
      %v2836 = vpop.xlane.xlu0 %2835
      %v2837 = vrot.slane %v2836, 4
      %v2838 = vadd.f32 %v2836, %v2837
      %v2839 = vrot.slane %v2838, 2
      %v2840 = vadd.f32 %v2838, %v2839
      %v2841 = vrot.slane %v2840, 1
      %v2842 = vadd.f32 %v2840, %v2841
      %s2843 = vtos %v2842
      %v2844 = vrcp.pop 4096.0
      %s2845 = vtos %v2844
      %s2846 = smul.f32 %s2843, %s2845
      %s2847 = smul.f32 %s2827, %s2827
      %s2848 = ssub.f32 %s2846, %s2847
      %s2849 = sadd.f32 %s2848, 1e-05
      %v2850 = vstv %s2849
      %v2851 = vrsqrt.pop %v2850
      %s2852 = vtos %v2851
      %v2853 = vstv %s2827
      %v2854 = vsub.f32 %v2803, %v2853
      %v2855 = vsub.f32 %v2804, %v2853
      %v2856 = vsub.f32 %v2805, %v2853
      %v2857 = vsub.f32 %v2806, %v2853
      %v2858 = vstv %s2852
      %v2859 = vmul.f32 %v2854, %v2858
      %v2860 = vmul.f32 %v2855, %v2858
      %v2861 = vmul.f32 %v2856, %v2858
      %v2862 = vmul.f32 %v2857, %v2858
      %2864 = vset.pattern.permute.xlu0 0
      %2865 = vperm.xlu0 %2864, %v2808
      %v2866 = vpop.permute.xlu0 %2865
      %2869 = vset.pattern.permute.xlu0 0
      %2870 = vperm.xlu0 %2869, %v2809
      %v2871 = vpop.permute.xlu0 %2870
      %v2873 = vmul.f32 %v2859, %v2866
      %v2874 = vmul.f32 %v2860, %v2866
      %v2875 = vmul.f32 %v2861, %v2871
      %v2876 = vmul.f32 %v2862, %v2871
      %2878 = vset.pattern.permute.xlu0 0
      %2879 = vperm.xlu0 %2878, %v2811
      %v2880 = vpop.permute.xlu0 %2879
      %2883 = vset.pattern.permute.xlu0 0
      %2884 = vperm.xlu0 %2883, %v2812
      %v2885 = vpop.permute.xlu0 %2884
      %v2887 = vadd.f32 %v2873, %v2880
      %v2888 = vadd.f32 %v2874, %v2880
      %v2889 = vadd.f32 %v2875, %v2885
      %v2890 = vadd.f32 %v2876, %v2885
      %s2891 = scalar_lea.vmem %s16, 16
      %v2892 = vld [vmem:[%s2891] sm:$0xf]
      %v2893 = vld [vmem:[%s2891 + $0x4] sm:$0xf]
      %v2894 = vld [vmem:[%s2891 + $0x8] sm:$0xf]
      %v2895 = vld [vmem:[%s2891 + $0xc] sm:$0xf]
      %v2896 = vpack.c.bf16 %v2889, %v2887
      %v2897 = vpack.c.bf16 %v2890, %v2888
      %s2898 = scalar_lea.vmem %s17, 32
      %v2899 = vld [vmem:[%s2898] sm:$0xff]
      %v2900 = vld [vmem:[%s2898 + $0x8] sm:$0xff]
      %v2901 = vld [vmem:[%s2898 + $0x10] sm:$0xff]
      %v2902 = vld [vmem:[%s2898 + $0x18] sm:$0xff]
      %2904 = vset.pattern.permute.xlu0 0
      %2905 = vperm.xlu0 %2904, %v2899
      %v2906 = vpop.permute.xlu0 %2905
      %2909 = vset.pattern.permute.xlu0 0
      %2910 = vperm.xlu0 %2909, %v2900
      %v2911 = vpop.permute.xlu0 %2910
      %2914 = vset.pattern.permute.xlu0 0
      %2915 = vperm.xlu0 %2914, %v2901
      %v2916 = vpop.permute.xlu0 %2915
      %2919 = vset.pattern.permute.xlu0 0
      %2920 = vperm.xlu0 %2919, %v2902
      %v2921 = vpop.permute.xlu0 %2920
      %v2927 = vunpack.c.l.b16 %v2892
      %v2928 = vunpack.c.l.b16 %v2893
      %v2929 = vunpack.c.l.b16 %v2894
      %v2930 = vunpack.c.l.b16 %v2895
      %v2931 = vpack.c.b16 %v2928, %v2927
      %v2932 = vpack.c.b16 %v2930, %v2929
      %v2934 = vsel %vm922, %v2931, 0
      %v2937 = vsel %vm922, %v2932, 0
      %2939 = vmatprep.subr.bf16.mxu0 %v2897
      %2940 = vmatpush1.bf16.msra.mxu0 %v2896
      %2941 = vmatprep.subr.bf16.mxu0 0
      %2942 = vmatpush1.bf16.msra.mxu0 0
      %2943 = vmatprep.subr.bf16.mxu0 0
      %2944 = vmatpush1.bf16.msra.mxu0 0
      %2945 = vmatprep.subr.bf16.mxu0 0
      %2946 = vmatpush1.bf16.msra.mxu0 0
      %2947 = vmatprep.subr.bf16.mxu0 0
      %2948 = vmatpush1.bf16.msra.mxu0 0
      %2949 = vmatprep.subr.bf16.mxu0 0
      %2950 = vmatpush1.bf16.msra.mxu0 0
      %2951 = vmatprep.subr.bf16.mxu0 0
      %2952 = vmatpush1.bf16.msra.mxu0 0
      %2953 = vmatprep.subr.bf16.mxu0 0
      %2954 = vmatpush1.bf16.msra.mxu0 0
      %2955 = vmatprep.subr.bf16.mxu0 0
      %2956 = vmatpush1.bf16.msra.mxu0 0
      %2957 = vmatprep.subr.bf16.mxu0 0
      %2958 = vmatpush1.bf16.msra.mxu0 0
      %2959 = vmatprep.subr.bf16.mxu0 0
      %2960 = vmatpush1.bf16.msra.mxu0 0
      %2961 = vmatprep.subr.bf16.mxu0 0
      %2962 = vmatpush1.bf16.msra.mxu0 0
      %2963 = vmatprep.subr.bf16.mxu0 0
      %2964 = vmatpush1.bf16.msra.mxu0 0
      %2965 = vmatprep.subr.bf16.mxu0 0
      %2966 = vmatpush1.bf16.msra.mxu0 0
      %2967 = vmatprep.subr.bf16.mxu0 0
      %2968 = vmatpush1.bf16.msra.mxu0 0
      %2969 = vmatprep.subr.bf16.mxu0 0
      %2970 = vmatpush1.bf16.msra.mxu0 0
      %2971 = vmatprep.mubr.bf16.mxu0 0
      %2972 = vmatmul.mubr.bf16.gmra.mrb[0].mxu0 %v2934
      %v2973 = vpop.f32.mrb[0].mxu0
      %v2974 = vadd.f32 %v2906, %v2973
      %v2975 = vpop.f32.mrb[0].mxu0
      %v2976 = vadd.f32 %v2906, %v2975
      %v2977 = vpop.f32.mrb[0].mxu0
      %v2978 = vadd.f32 %v2911, %v2977
      %v2979 = vpop.f32.mrb[0].mxu0
      %v2980 = vadd.f32 %v2911, %v2979
      %2981 = vmatprep.mubr.bf16.mxu0 0
      %2982 = vmatmul.mubr.bf16.gmra.mrb[0].mxu0 %v2937
      %v2983 = vpop.f32.mrb[0].mxu0
      %v2984 = vadd.f32 %v2916, %v2983
      %v2985 = vpop.f32.mrb[0].mxu0
      %v2986 = vadd.f32 %v2916, %v2985
      %v2987 = vpop.f32.mrb[0].mxu0
      %v2988 = vadd.f32 %v2921, %v2987
      %v2989 = vpop.f32.mrb[0].mxu0
      %v2990 = vadd.f32 %v2921, %v2989
      %2991 = vdwg.mxu0
      %v2992 = vxor.u32 %v2974, 2147483648
      %v2993 = vxor.u32 %v2976, 2147483648
      %v2994 = vxor.u32 %v2978, 2147483648
      %v2995 = vxor.u32 %v2980, 2147483648
      %v2996 = vxor.u32 %v2984, 2147483648
      %v2997 = vxor.u32 %v2986, 2147483648
      %v2998 = vxor.u32 %v2988, 2147483648
      %v2999 = vxor.u32 %v2990, 2147483648
      %v3000 = vmul.f32 %v2992, 1.442695
      %v3001 = vpow.pop %v3000
      %v3002 = vmul.f32 %v2993, 1.442695
      %v3003 = vpow.pop %v3002
      %v3004 = vmul.f32 %v2994, 1.442695
      %v3005 = vpow.pop %v3004
      %v3006 = vmul.f32 %v2995, 1.442695
      %v3007 = vpow.pop %v3006
      %v3008 = vmul.f32 %v2996, 1.442695
      %v3009 = vpow.pop %v3008
      %v3010 = vmul.f32 %v2997, 1.442695
      %v3011 = vpow.pop %v3010
      %v3012 = vmul.f32 %v2998, 1.442695
      %v3013 = vpow.pop %v3012
      %v3014 = vmul.f32 %v2999, 1.442695
      %v3015 = vpow.pop %v3014
      %v3016 = vadd.f32 %v3001, 1.0
      %v3017 = vadd.f32 %v3003, 1.0
      %v3018 = vadd.f32 %v3005, 1.0
      %v3019 = vadd.f32 %v3007, 1.0
      %v3020 = vadd.f32 %v3009, 1.0
      %v3021 = vadd.f32 %v3011, 1.0
      %v3022 = vadd.f32 %v3013, 1.0
      %v3023 = vadd.f32 %v3015, 1.0
      %v3024 = vrcp.pop %v3016
      %v3025 = vmul.f32 1.0, %v3024
      %v3026 = vrcp.pop %v3017
      %v3027 = vmul.f32 1.0, %v3026
      %v3028 = vrcp.pop %v3018
      %v3029 = vmul.f32 1.0, %v3028
      %v3030 = vrcp.pop %v3019
      %v3031 = vmul.f32 1.0, %v3030
      %v3032 = vrcp.pop %v3020
      %v3033 = vmul.f32 1.0, %v3032
      %v3034 = vrcp.pop %v3021
      %v3035 = vmul.f32 1.0, %v3034
      %v3036 = vrcp.pop %v3022
      %v3037 = vmul.f32 1.0, %v3036
      %v3038 = vrcp.pop %v3023
      %v3039 = vmul.f32 1.0, %v3038
      %v3040 = vmul.f32 %v2974, %v3025
      %v3041 = vmul.f32 %v2976, %v3027
      %v3042 = vmul.f32 %v2978, %v3029
      %v3043 = vmul.f32 %v2980, %v3031
      %v3044 = vmul.f32 %v2984, %v3033
      %v3045 = vmul.f32 %v2986, %v3035
      %v3046 = vmul.f32 %v2988, %v3037
      %v3047 = vmul.f32 %v2990, %v3039
      %s3048 = scalar_lea.vmem %s18, 8
      %v3049 = vld [vmem:[%s3048] sm:$0xf]
      %v3050 = vld [vmem:[%s3048 + $0x4] sm:$0xf]
      %v3051 = vpack.c.bf16 %v3042, %v3040
      %v3052 = vpack.c.bf16 %v3043, %v3041
      %v3053 = vpack.c.bf16 %v3046, %v3044
      %v3054 = vpack.c.bf16 %v3047, %v3045
      %s3055 = scalar_lea.vmem %s19, 16
      %v3056 = vld [vmem:[%s3055] sm:$0xff]
      %v3057 = vld [vmem:[%s3055 + $0x8] sm:$0xff]
      %3059 = vset.pattern.permute.xlu0 0
      %3060 = vperm.xlu0 %3059, %v3056
      %v3061 = vpop.permute.xlu0 %3060
      %3064 = vset.pattern.permute.xlu0 0
      %3065 = vperm.xlu0 %3064, %v3057
      %v3066 = vpop.permute.xlu0 %3065
      %v3070 = vunpack.c.l.b16 %v3049
      %v3071 = vunpack.c.l.b16 %v3050
      %v3072 = vpack.c.b16 %v3071, %v3070
      %v3074 = vsel %vm1018, %v3072, 0
      %3076 = vmatprep.subr.bf16.mxu0 %v3052
      %3077 = vmatpush1.bf16.msra.mxu0 %v3051
      %3078 = vmatprep.subr.bf16.mxu0 %v3054
      %3079 = vmatpush1.bf16.msra.mxu0 %v3053
      %3080 = vmatprep.subr.bf16.mxu0 0
      %3081 = vmatpush1.bf16.msra.mxu0 0
      %3082 = vmatprep.subr.bf16.mxu0 0
      %3083 = vmatpush1.bf16.msra.mxu0 0
      %3084 = vmatprep.subr.bf16.mxu0 0
      %3085 = vmatpush1.bf16.msra.mxu0 0
      %3086 = vmatprep.subr.bf16.mxu0 0
      %3087 = vmatpush1.bf16.msra.mxu0 0
      %3088 = vmatprep.subr.bf16.mxu0 0
      %3089 = vmatpush1.bf16.msra.mxu0 0
      %3090 = vmatprep.subr.bf16.mxu0 0
      %3091 = vmatpush1.bf16.msra.mxu0 0
      %3092 = vmatprep.subr.bf16.mxu0 0
      %3093 = vmatpush1.bf16.msra.mxu0 0
      %3094 = vmatprep.subr.bf16.mxu0 0
      %3095 = vmatpush1.bf16.msra.mxu0 0
      %3096 = vmatprep.subr.bf16.mxu0 0
      %3097 = vmatpush1.bf16.msra.mxu0 0
      %3098 = vmatprep.subr.bf16.mxu0 0
      %3099 = vmatpush1.bf16.msra.mxu0 0
      %3100 = vmatprep.subr.bf16.mxu0 0
      %3101 = vmatpush1.bf16.msra.mxu0 0
      %3102 = vmatprep.subr.bf16.mxu0 0
      %3103 = vmatpush1.bf16.msra.mxu0 0
      %3104 = vmatprep.subr.bf16.mxu0 0
      %3105 = vmatpush1.bf16.msra.mxu0 0
      %3106 = vmatprep.subr.bf16.mxu0 0
      %3107 = vmatpush1.bf16.msra.mxu0 0
      %3108 = vmatprep.mubr.bf16.mxu0 0
      %3109 = vmatmul.mubr.bf16.gmra.mrb[0].mxu0 %v3074
      %v3110 = vpop.f32.mrb[0].mxu0
      %v3111 = vadd.f32 %v3061, %v3110
      %v3112 = vpop.f32.mrb[0].mxu0
      %v3113 = vadd.f32 %v3061, %v3112
      %v3114 = vpop.f32.mrb[0].mxu0
      %v3115 = vadd.f32 %v3066, %v3114
      %v3116 = vpop.f32.mrb[0].mxu0
      %v3117 = vadd.f32 %v3066, %v3116
      %3118 = vdwg.mxu0
      %v3119 = vadd.f32 %v2803, %v3111
      %v3120 = vadd.f32 %v2804, %v3113
      %v3121 = vadd.f32 %v2805, %v3115
      %v3122 = vadd.f32 %v2806, %v3117
      %v3123 = vld [vmem:[%s20] sm:$0xff]
      %v3124 = vld [vmem:[%s20 + $0x8] sm:$0xff]
      %v3125 = vld [vmem:[%s21] sm:$0xff]
      %v3126 = vld [vmem:[%s21 + $0x8] sm:$0xff]
      %v3127 = vadd.f32 %v3119, %v3120
      %v3128 = vadd.f32 %v3127, %v3121
      %v3129 = vadd.f32 %v3128, %v3122
      %3130 = vadd.xlane.f32.xlu0 %v3129
      %v3131 = vpop.xlane.xlu0 %3130
      %v3132 = vrot.slane %v3131, 4
      %v3133 = vadd.f32 %v3131, %v3132
      %v3134 = vrot.slane %v3133, 2
      %v3135 = vadd.f32 %v3133, %v3134
      %v3136 = vrot.slane %v3135, 1
      %v3137 = vadd.f32 %v3135, %v3136
      %s3138 = vtos %v3137
      %v3139 = vrcp.pop 4096.0
      %s3140 = vtos %v3139
      %s3141 = smul.f32 %s3138, %s3140
      %v3142 = vmul.f32 %v3119, %v3119
      %v3143 = vmul.f32 %v3120, %v3120
      %v3144 = vmul.f32 %v3121, %v3121
      %v3145 = vmul.f32 %v3122, %v3122
      %v3146 = vadd.f32 %v3142, %v3143
      %v3147 = vadd.f32 %v3146, %v3144
      %v3148 = vadd.f32 %v3147, %v3145
      %3149 = vadd.xlane.f32.xlu0 %v3148
      %v3150 = vpop.xlane.xlu0 %3149
      %v3151 = vrot.slane %v3150, 4
      %v3152 = vadd.f32 %v3150, %v3151
      %v3153 = vrot.slane %v3152, 2
      %v3154 = vadd.f32 %v3152, %v3153
      %v3155 = vrot.slane %v3154, 1
      %v3156 = vadd.f32 %v3154, %v3155
      %s3157 = vtos %v3156
      %v3158 = vrcp.pop 4096.0
      %s3159 = vtos %v3158
      %s3160 = smul.f32 %s3157, %s3159
      %s3161 = smul.f32 %s3141, %s3141
      %s3162 = ssub.f32 %s3160, %s3161
      %s3163 = sadd.f32 %s3162, 1e-05
      %v3164 = vstv %s3163
      %v3165 = vrsqrt.pop %v3164
      %s3166 = vtos %v3165
      %v3167 = vstv %s3141
      %v3168 = vsub.f32 %v3119, %v3167
      %v3169 = vsub.f32 %v3120, %v3167
      %v3170 = vsub.f32 %v3121, %v3167
      %v3171 = vsub.f32 %v3122, %v3167
      %v3172 = vstv %s3166
      %v3173 = vmul.f32 %v3168, %v3172
      %v3174 = vmul.f32 %v3169, %v3172
      %v3175 = vmul.f32 %v3170, %v3172
      %v3176 = vmul.f32 %v3171, %v3172
      %3178 = vset.pattern.permute.xlu0 0
      %3179 = vperm.xlu0 %3178, %v3123
      %v3180 = vpop.permute.xlu0 %3179
      %3183 = vset.pattern.permute.xlu0 0
      %3184 = vperm.xlu0 %3183, %v3124
      %v3185 = vpop.permute.xlu0 %3184
      %v3187 = vmul.f32 %v3173, %v3180
      %v3188 = vmul.f32 %v3174, %v3180
      %v3189 = vmul.f32 %v3175, %v3185
      %v3190 = vmul.f32 %v3176, %v3185
      %3192 = vset.pattern.permute.xlu0 0
      %3193 = vperm.xlu0 %3192, %v3125
      %v3194 = vpop.permute.xlu0 %3193
      %3197 = vset.pattern.permute.xlu0 0
      %3198 = vperm.xlu0 %3197, %v3126
      %v3199 = vpop.permute.xlu0 %3198
      %v3201 = vadd.f32 %v3187, %v3194
      %v3202 = vadd.f32 %v3188, %v3194
      %v3203 = vadd.f32 %v3189, %v3199
      %v3204 = vadd.f32 %v3190, %v3199
      %v3205 = vld [vmem:[%s22] sm:$0x3]
      %v3206 = vpack.c.bf16 %v3203, %v3201
      %v3207 = vpack.c.bf16 %v3204, %v3202
      %v3208 = vld [vmem:[%s23] sm:$0xf]
      %3210 = vset.pattern.permute.xlu0 0
      %3211 = vperm.xlu0 %3210, %v3208
      %v3212 = vpop.permute.xlu0 %3211
      %v3215 = vsel %vm922, %v3205, 0
      %3217 = vmatprep.subr.bf16.mxu0 %v3207
      %3218 = vmatpush1.bf16.msra.mxu0 %v3206
      %3219 = vmatprep.subr.bf16.mxu0 0
      %3220 = vmatpush1.bf16.msra.mxu0 0
      %3221 = vmatprep.subr.bf16.mxu0 0
      %3222 = vmatpush1.bf16.msra.mxu0 0
      %3223 = vmatprep.subr.bf16.mxu0 0
      %3224 = vmatpush1.bf16.msra.mxu0 0
      %3225 = vmatprep.subr.bf16.mxu0 0
      %3226 = vmatpush1.bf16.msra.mxu0 0
      %3227 = vmatprep.subr.bf16.mxu0 0
      %3228 = vmatpush1.bf16.msra.mxu0 0
      %3229 = vmatprep.subr.bf16.mxu0 0
      %3230 = vmatpush1.bf16.msra.mxu0 0
      %3231 = vmatprep.subr.bf16.mxu0 0
      %3232 = vmatpush1.bf16.msra.mxu0 0
      %3233 = vmatprep.subr.bf16.mxu0 0
      %3234 = vmatpush1.bf16.msra.mxu0 0
      %3235 = vmatprep.subr.bf16.mxu0 0
      %3236 = vmatpush1.bf16.msra.mxu0 0
      %3237 = vmatprep.subr.bf16.mxu0 0
      %3238 = vmatpush1.bf16.msra.mxu0 0
      %3239 = vmatprep.subr.bf16.mxu0 0
      %3240 = vmatpush1.bf16.msra.mxu0 0
      %3241 = vmatprep.subr.bf16.mxu0 0
      %3242 = vmatpush1.bf16.msra.mxu0 0
      %3243 = vmatprep.subr.bf16.mxu0 0
      %3244 = vmatpush1.bf16.msra.mxu0 0
      %3245 = vmatprep.subr.bf16.mxu0 0
      %3246 = vmatpush1.bf16.msra.mxu0 0
      %3247 = vmatprep.subr.bf16.mxu0 0
      %3248 = vmatpush1.bf16.msra.mxu0 0
      %3249 = vmatprep.mubr.bf16.mxu0 0
      %3250 = vmatmul.mubr.bf16.gmra.mrb[0].mxu0 %v3215
      %v3251 = vpop.f32.mrb[0].mxu0
      %v3252 = vadd.f32 %v3212, %v3251
      %v3253 = vpop.f32.mrb[0].mxu0
      %v3254 = vadd.f32 %v3212, %v3253
      %v3255 = vpop.f32.mrb[0].mxu0
      %v3256 = vpop.f32.mrb[0].mxu0
      %3257 = vdwg.mxu0
      %v3258 = vld [vmem:[%s24] sm:$0xf]
      %3260 = vset.pattern.permute.xlu0 0
      %3261 = vperm.xlu0 %3260, %v3258
      %v3262 = vpop.permute.xlu0 %3261
      %v3264 = vmul.f32 %v3252, %v3262
      %v3265 = vmul.f32 %v3254, %v3262
      %v3266 = vld [vmem:[%s25] sm:$0xf]
      %3268 = vset.pattern.permute.xlu0 0
      %3269 = vperm.xlu0 %3268, %v3266
      %v3270 = vpop.permute.xlu0 %3269
      %v3272 = vadd.f32 %v3264, %v3270
      %v3273 = vadd.f32 %v3265, %v3270
      %v3276 = vcombine.low %v3272, %v3273
      %3278 = vst [vmem:[%s791] sm:$0xff] %v3276
      %p3279 = scmp.lt.s32.totalorder %s37, 1
      %s3280 = scalar_select %p3279, %s37, 1
      %s3281 = smul.addr %s3280, 2
      %s3282 = smul.addr %s3281, 4
      %s3283 = scalar_lea.vmem %s26, %s3282
      // Predicated region
      $region125: #{mobilevit_block_v2.1} parent=123 // pred_check
        %p3284 = pneg %p606
      $region126: #{mobilevit_block_v2.1} parent=123 // pred_check_branch
        %3286 = sbr.rel (%p3284) target = $region128
      $region127: #{mobilevit_block_v2.1} parent=123 // pred_region
        _
      $region128: #{mobilevit_block_v2.1} parent=123 // pred_fallthru
        _
    $region124: #{mobilevit_block_v2.1} parent=5 // pred_fallthru
      _
    %p3287 = scmp.le.s32.totalorder 2, %s32
    // Predicated region
    $region129: #{mobilevit_block_v2.1} parent=5 // pred_check
      %p3288 = pneg %p3287
    $region130: #{mobilevit_block_v2.1} parent=5 // pred_check_branch
      %3290 = sbr.rel (%p3288) target = $region132
    $region131: #{mobilevit_block_v2.1} parent=5 // pred_region
      %s3291 = ssub.s32 %s32, 2
      // Predicated region
      $region133: #{mobilevit_block_v2.1} parent=131 // pred_check
        %p3292 = pneg %p612
      $region134: #{mobilevit_block_v2.1} parent=131 // pred_check_branch
        %3294 = sbr.rel (%p3292) target = $region136
      $region135: #{mobilevit_block_v2.1} parent=131 // pred_region
        %p3295 = scmp.lt.s32.totalorder %s38, 1
        %s3296 = scalar_select %p3295, %s38, 1
        %s3297 = smul.addr %s3296, 2
        %s3298 = smul.addr %s3297, 4
        %s3299 = scalar_lea.vmem %s26, %s3298
      $region136: #{mobilevit_block_v2.1} parent=131 // pred_fallthru
        _
    $region132: #{mobilevit_block_v2.1} parent=5 // pred_fallthru
      _
  $region6: #{mobilevit_block_v2.1} parent=0 // loop_footer
    %s36 = sadd.s32 1, %s32
  $region7: #{mobilevit_block_v2.1} parent=0 // loop_footer_branch
    %31 = sbr.rel target = $region3
  $region8: #{mobilevit_block_v2.1} parent=0 // loop_exit
    _

</llo_original>
